<compile_context>
chip_gen: v5e
topology: v5e:2x2
jax: 0.10.0
libtpu: 0.0.40
codegen_flags: <defaults>
</compile_context>

<pallas_src>
import functools

import jax
import jax.numpy as jnp
from jax.experimental import pallas as pl
from jax.experimental.pallas import tpu as pltpu

EPS = 1e-5  # torch.nn.InstanceNorm2d default eps


def _round_up(x, m):
    return (x + m - 1) // m * m


def _conv_block_kernel(mask_ref, x_ref, w1_ref, w2_ref, o_ref, z_ref, *,
                       wp, lv, inv_hw):
    """Fused (conv3x3 -> InstanceNorm -> ReLU) x 2 for one batch element.

    mask_ref: (lv, 1)         1.0 on valid columns, 0.0 on the 2 junk cols/row
    x_ref:    (1, lin, Cin)   zero-padded input, spatial flattened row-major
    w1_ref:   (9, Cin, Cout)  per-tap weights, tap t = ky*3 + kx
    w2_ref:   (9, Cout, Cout)
    o_ref:    (1, lv, Cout)   output on the extended (H, wp) grid
    z_ref:    (lin, Cout)     VMEM scratch: zero-padded layer-1 activation
    """
    mask = mask_ref[...]

    def conv3x3(load, w_ref):
        # 3x3 conv as 9 shifted contiguous slices, each a small MXU matmul.
        acc = None
        for t in range(9):
            ky, kx = divmod(t, 3)
            s = ky * wp + kx
            xs = load(s)                                    # (lv, C_in)
            d = jnp.dot(xs, w_ref[t], preferred_element_type=jnp.float32)
            acc = d if acc is None else acc + d
        return acc                                          # (lv, Cout) f32

    def inst_norm_relu(acc):
        y = acc * mask                                      # zero junk columns
        mean = jnp.sum(y, axis=0, keepdims=True) * inv_hw   # (1, Cout)
        ex2 = jnp.sum(y * y, axis=0, keepdims=True) * inv_hw
        var = ex2 - mean * mean                             # biased variance
        inv = jax.lax.rsqrt(var + EPS)                      # EUP rsqrt
        return jnp.maximum((y - mean) * inv, 0.0)           # ReLU

    # ---- layer 1: conv -> IN -> ReLU, kept entirely in VMEM ----------------
    acc1 = conv3x3(lambda s: x_ref[0, s:s + lv, :], w1_ref)
    y1 = inst_norm_relu(acc1) * mask                        # halo cols stay 0
    z_ref[...] = jnp.zeros_like(z_ref)                      # halo rows / tail
    z_ref[wp + 1:wp + 1 + lv, :] = y1                       # interior @ (1, 1)

    # ---- layer 2: conv -> IN -> ReLU --------------------------------------
    acc2 = conv3x3(lambda s: z_ref[s:s + lv, :], w2_ref)
    o_ref[0] = inst_norm_relu(acc2).astype(o_ref.dtype)


@jax.jit
def conv_block_forward(x_nchw, w1_oihw, w2_oihw):
    """Pallas implementation of ConvBlock.forward; x is NCHW like PyTorch."""
    N, cin, H, W = x_nchw.shape
    cout = w1_oihw.shape[0]
    hp, wp = H + 2, W + 2
    lpad = hp * wp                 # flattened padded image length
    lv = H * wp                    # extended output grid (2 junk cols per row)
    lin = _round_up(lpad + 2, 8)   # room for the largest tap shift (2*wp + 2)

    # NCHW -> NHWC, zero-pad halo, flatten spatial row-major, pad tail.
    x = jnp.transpose(x_nchw, (0, 2, 3, 1))
    x = jnp.pad(x, ((0, 0), (1, 1), (1, 1), (0, 0)))
    x = x.reshape(N, lpad, cin)
    x = jnp.pad(x, ((0, 0), (0, lin - lpad), (0, 0)))       # (N, lin, Cin)

    # (Cout, Cin, 3, 3) torch layout -> (9, Cin, Cout); tap t = ky*3 + kx.
    w1 = jnp.transpose(w1_oihw, (2, 3, 1, 0)).reshape(9, cin, cout)
    w2 = jnp.transpose(w2_oihw, (2, 3, 1, 0)).reshape(9, cout, cout)

    # Valid-column mask on the extended (H, wp) grid.
    mask = ((jnp.arange(lv) % wp) < W).astype(x.dtype).reshape(lv, 1)

    kernel = functools.partial(_conv_block_kernel, wp=wp, lv=lv,
                               inv_hw=1.0 / float(H * W))

    out_ext = pl.pallas_call(
        kernel,
        out_shape=jax.ShapeDtypeStruct((N, lv, cout), x.dtype),
        grid_spec=pltpu.PrefetchScalarGridSpec(
            num_scalar_prefetch=0,
            grid=(N,),
            in_specs=[
                pl.BlockSpec((lv, 1), lambda n: (0, 0)),
                pl.BlockSpec((1, lin, cin), lambda n: (n, 0, 0)),
                pl.BlockSpec((9, cin, cout), lambda n: (0, 0, 0)),
                pl.BlockSpec((9, cout, cout), lambda n: (0, 0, 0)),
            ],
            out_specs=pl.BlockSpec((1, lv, cout), lambda n: (n, 0, 0)),
            scratch_shapes=[pltpu.VMEM((lin, cout), jnp.float32)],
        ),
        compiler_params=pltpu.CompilerParams(
            dimension_semantics=("parallel",),
            vmem_limit_bytes=32 * 1024 * 1024),
    )(mask, x, w1, w2)

    # Drop the 2 junk columns per row and go back to NCHW.
    out = out_ext.reshape(N, H, wp, cout)[:, :, :W, :]
    return jnp.transpose(out, (0, 3, 1, 2))


def _reference(x_nchw, w1, w2):
    """Pure-JAX reference reproducing the PyTorch module semantics."""
    def step(x, w):
        y = jax.lax.conv_general_dilated(
            x, w, window_strides=(1, 1), padding=((1, 1), (1, 1)),
            dimension_numbers=("NCHW", "OIHW", "NCHW"))
        mean = jnp.mean(y, axis=(2, 3), keepdims=True)
        var = jnp.mean(jnp.square(y - mean), axis=(2, 3), keepdims=True)
        y = (y - mean) * jax.lax.rsqrt(var + EPS)
        return jnp.maximum(y, 0.0)
    return step(step(x_nchw, w1), w2)


if __name__ == "__main__":
    # Small shapes consistent with the module: ch_in=4, ch_out=8, 16x16 spatial.
    N, CH_IN, CH_OUT, H, W = 2, 4, 8, 16, 16

    key = jax.random.PRNGKey(0)
    kx, kw1, kw2 = jax.random.split(key, 3)

    x = jax.random.normal(kx, (N, CH_IN, H, W), dtype=jnp.float32)
    # Torch weight layout: (Cout, Cin, kH, kW), no bias.
    w1 = jax.random.normal(kw1, (CH_OUT, CH_IN, 3, 3), dtype=jnp.float32) * (
        1.0 / (9 * CH_IN) ** 0.5)
    w2 = jax.random.normal(kw2, (CH_OUT, CH_OUT, 3, 3), dtype=jnp.float32) * (
        1.0 / (9 * CH_OUT) ** 0.5)

    out = conv_block_forward(x, w1, w2)
    out = jax.block_until_ready(out)

    ref = jax.block_until_ready(_reference(x, w1, w2))
    assert out.shape == (N, CH_OUT, H, W), out.shape
    assert jnp.allclose(out, ref, atol=1e-3, rtol=1e-3), (
        float(jnp.max(jnp.abs(out - ref))))

    print("KERNEL_OK")
</pallas_src>

<mosaic_0001>
module attributes {stable_mosaic.version = 11 : i64} {
  func.func @_conv_block_kernel(%arg0: i32, %arg1: memref<288x1xf32, #tpu.memory_space<vmem>>, %arg2: memref<1x328x4xf32, #tpu.memory_space<vmem>>, %arg3: memref<9x4x8xf32, #tpu.memory_space<vmem>>, %arg4: memref<9x8x8xf32, #tpu.memory_space<vmem>>, %arg5: memref<1x288x8xf32, #tpu.memory_space<vmem>>, %arg6: memref<328x8xf32, #tpu.memory_space<vmem>>) attributes {dimension_semantics = [#tpu.dimension_semantics<parallel>], iteration_bounds = array<i64: 2>, scalar_prefetch = 0 : i64, scratch_operands = 1 : i64, tpu.core_type = #tpu.core_type<tc>, window_params = [{pipeline_mode = #tpu.pipeline_mode<synchronous>, transform_indices = @transform_0, window_bounds = array<i64: 288, 1>}, {transform_indices = @transform_1, window_bounds = array<i64: 1, 328, 4>}, {pipeline_mode = #tpu.pipeline_mode<synchronous>, transform_indices = @transform_2, window_bounds = array<i64: 9, 4, 8>}, {pipeline_mode = #tpu.pipeline_mode<synchronous>, transform_indices = @transform_3, window_bounds = array<i64: 9, 8, 8>}, {transform_indices = @transform_4, window_bounds = array<i64: 1, 288, 8>}]} {
    %c0 = arith.constant 0 : index
    %c0_0 = arith.constant 0 : index
    %0 = vector.load %arg1[%c0, %c0_0] : memref<288x1xf32, #tpu.memory_space<vmem>>, vector<288x1xf32>
    %c0_1 = arith.constant 0 : index
    %c0_2 = arith.constant 0 : index
    %c0_3 = arith.constant 0 : index
    %1 = vector.load %arg2[%c0_1, %c0_2, %c0_3] : memref<1x328x4xf32, #tpu.memory_space<vmem>>, vector<1x288x4xf32>
    %2 = vector.shape_cast %1 : vector<1x288x4xf32> to vector<288x4xf32>
    %c0_4 = arith.constant 0 : index
    %c0_5 = arith.constant 0 : index
    %c0_6 = arith.constant 0 : index
    %3 = vector.load %arg3[%c0_4, %c0_5, %c0_6] : memref<9x4x8xf32, #tpu.memory_space<vmem>>, vector<1x4x8xf32>
    %4 = vector.shape_cast %3 : vector<1x4x8xf32> to vector<4x8xf32>
    %cst = arith.constant dense<0.000000e+00> : vector<288x8xf32>
    %5 = tpu.matmul %2, %4, %cst {dimension_numbers = #tpu.dot_dimension_numbers<[1], [0], [0], [1], [0, 0, 1, 1], [], []>} : vector<288x4xf32>, vector<4x8xf32>, vector<288x8xf32> -> vector<288x8xf32>
    %c0_7 = arith.constant 0 : index
    %c1 = arith.constant 1 : index
    %c0_8 = arith.constant 0 : index
    %6 = vector.load %arg2[%c0_7, %c1, %c0_8] : memref<1x328x4xf32, #tpu.memory_space<vmem>>, vector<1x288x4xf32>
    %7 = vector.shape_cast %6 : vector<1x288x4xf32> to vector<288x4xf32>
    %c1_9 = arith.constant 1 : index
    %c0_10 = arith.constant 0 : index
    %c0_11 = arith.constant 0 : index
    %8 = vector.load %arg3[%c1_9, %c0_10, %c0_11] : memref<9x4x8xf32, #tpu.memory_space<vmem>>, vector<1x4x8xf32>
    %9 = vector.shape_cast %8 : vector<1x4x8xf32> to vector<4x8xf32>
    %cst_12 = arith.constant dense<0.000000e+00> : vector<288x8xf32>
    %10 = tpu.matmul %7, %9, %cst_12 {dimension_numbers = #tpu.dot_dimension_numbers<[1], [0], [0], [1], [0, 0, 1, 1], [], []>} : vector<288x4xf32>, vector<4x8xf32>, vector<288x8xf32> -> vector<288x8xf32>
    %11 = arith.addf %5, %10 : vector<288x8xf32>
    %c0_13 = arith.constant 0 : index
    %c2 = arith.constant 2 : index
    %c0_14 = arith.constant 0 : index
    %12 = vector.load %arg2[%c0_13, %c2, %c0_14] : memref<1x328x4xf32, #tpu.memory_space<vmem>>, vector<1x288x4xf32>
    %13 = vector.shape_cast %12 : vector<1x288x4xf32> to vector<288x4xf32>
    %c2_15 = arith.constant 2 : index
    %c0_16 = arith.constant 0 : index
    %c0_17 = arith.constant 0 : index
    %14 = vector.load %arg3[%c2_15, %c0_16, %c0_17] : memref<9x4x8xf32, #tpu.memory_space<vmem>>, vector<1x4x8xf32>
    %15 = vector.shape_cast %14 : vector<1x4x8xf32> to vector<4x8xf32>
    %cst_18 = arith.constant dense<0.000000e+00> : vector<288x8xf32>
    %16 = tpu.matmul %13, %15, %cst_18 {dimension_numbers = #tpu.dot_dimension_numbers<[1], [0], [0], [1], [0, 0, 1, 1], [], []>} : vector<288x4xf32>, vector<4x8xf32>, vector<288x8xf32> -> vector<288x8xf32>
    %17 = arith.addf %11, %16 : vector<288x8xf32>
    %c0_19 = arith.constant 0 : index
    %c18 = arith.constant 18 : index
    %c0_20 = arith.constant 0 : index
    %18 = vector.load %arg2[%c0_19, %c18, %c0_20] : memref<1x328x4xf32, #tpu.memory_space<vmem>>, vector<1x288x4xf32>
    %19 = vector.shape_cast %18 : vector<1x288x4xf32> to vector<288x4xf32>
    %c3 = arith.constant 3 : index
    %c0_21 = arith.constant 0 : index
    %c0_22 = arith.constant 0 : index
    %20 = vector.load %arg3[%c3, %c0_21, %c0_22] : memref<9x4x8xf32, #tpu.memory_space<vmem>>, vector<1x4x8xf32>
    %21 = vector.shape_cast %20 : vector<1x4x8xf32> to vector<4x8xf32>
    %cst_23 = arith.constant dense<0.000000e+00> : vector<288x8xf32>
    %22 = tpu.matmul %19, %21, %cst_23 {dimension_numbers = #tpu.dot_dimension_numbers<[1], [0], [0], [1], [0, 0, 1, 1], [], []>} : vector<288x4xf32>, vector<4x8xf32>, vector<288x8xf32> -> vector<288x8xf32>
    %23 = arith.addf %17, %22 : vector<288x8xf32>
    %c0_24 = arith.constant 0 : index
    %c19 = arith.constant 19 : index
    %c0_25 = arith.constant 0 : index
    %24 = vector.load %arg2[%c0_24, %c19, %c0_25] : memref<1x328x4xf32, #tpu.memory_space<vmem>>, vector<1x288x4xf32>
    %25 = vector.shape_cast %24 : vector<1x288x4xf32> to vector<288x4xf32>
    %c4 = arith.constant 4 : index
    %c0_26 = arith.constant 0 : index
    %c0_27 = arith.constant 0 : index
    %26 = vector.load %arg3[%c4, %c0_26, %c0_27] : memref<9x4x8xf32, #tpu.memory_space<vmem>>, vector<1x4x8xf32>
    %27 = vector.shape_cast %26 : vector<1x4x8xf32> to vector<4x8xf32>
    %cst_28 = arith.constant dense<0.000000e+00> : vector<288x8xf32>
    %28 = tpu.matmul %25, %27, %cst_28 {dimension_numbers = #tpu.dot_dimension_numbers<[1], [0], [0], [1], [0, 0, 1, 1], [], []>} : vector<288x4xf32>, vector<4x8xf32>, vector<288x8xf32> -> vector<288x8xf32>
    %29 = arith.addf %23, %28 : vector<288x8xf32>
    %c0_29 = arith.constant 0 : index
    %c20 = arith.constant 20 : index
    %c0_30 = arith.constant 0 : index
    %30 = vector.load %arg2[%c0_29, %c20, %c0_30] : memref<1x328x4xf32, #tpu.memory_space<vmem>>, vector<1x288x4xf32>
    %31 = vector.shape_cast %30 : vector<1x288x4xf32> to vector<288x4xf32>
    %c5 = arith.constant 5 : index
    %c0_31 = arith.constant 0 : index
    %c0_32 = arith.constant 0 : index
    %32 = vector.load %arg3[%c5, %c0_31, %c0_32] : memref<9x4x8xf32, #tpu.memory_space<vmem>>, vector<1x4x8xf32>
    %33 = vector.shape_cast %32 : vector<1x4x8xf32> to vector<4x8xf32>
    %cst_33 = arith.constant dense<0.000000e+00> : vector<288x8xf32>
    %34 = tpu.matmul %31, %33, %cst_33 {dimension_numbers = #tpu.dot_dimension_numbers<[1], [0], [0], [1], [0, 0, 1, 1], [], []>} : vector<288x4xf32>, vector<4x8xf32>, vector<288x8xf32> -> vector<288x8xf32>
    %35 = arith.addf %29, %34 : vector<288x8xf32>
    %c0_34 = arith.constant 0 : index
    %c36 = arith.constant 36 : index
    %c0_35 = arith.constant 0 : index
    %36 = vector.load %arg2[%c0_34, %c36, %c0_35] : memref<1x328x4xf32, #tpu.memory_space<vmem>>, vector<1x288x4xf32>
    %37 = vector.shape_cast %36 : vector<1x288x4xf32> to vector<288x4xf32>
    %c6 = arith.constant 6 : index
    %c0_36 = arith.constant 0 : index
    %c0_37 = arith.constant 0 : index
    %38 = vector.load %arg3[%c6, %c0_36, %c0_37] : memref<9x4x8xf32, #tpu.memory_space<vmem>>, vector<1x4x8xf32>
    %39 = vector.shape_cast %38 : vector<1x4x8xf32> to vector<4x8xf32>
    %cst_38 = arith.constant dense<0.000000e+00> : vector<288x8xf32>
    %40 = tpu.matmul %37, %39, %cst_38 {dimension_numbers = #tpu.dot_dimension_numbers<[1], [0], [0], [1], [0, 0, 1, 1], [], []>} : vector<288x4xf32>, vector<4x8xf32>, vector<288x8xf32> -> vector<288x8xf32>
    %41 = arith.addf %35, %40 : vector<288x8xf32>
    %c0_39 = arith.constant 0 : index
    %c37 = arith.constant 37 : index
    %c0_40 = arith.constant 0 : index
    %42 = vector.load %arg2[%c0_39, %c37, %c0_40] : memref<1x328x4xf32, #tpu.memory_space<vmem>>, vector<1x288x4xf32>
    %43 = vector.shape_cast %42 : vector<1x288x4xf32> to vector<288x4xf32>
    %c7 = arith.constant 7 : index
    %c0_41 = arith.constant 0 : index
    %c0_42 = arith.constant 0 : index
    %44 = vector.load %arg3[%c7, %c0_41, %c0_42] : memref<9x4x8xf32, #tpu.memory_space<vmem>>, vector<1x4x8xf32>
    %45 = vector.shape_cast %44 : vector<1x4x8xf32> to vector<4x8xf32>
    %cst_43 = arith.constant dense<0.000000e+00> : vector<288x8xf32>
    %46 = tpu.matmul %43, %45, %cst_43 {dimension_numbers = #tpu.dot_dimension_numbers<[1], [0], [0], [1], [0, 0, 1, 1], [], []>} : vector<288x4xf32>, vector<4x8xf32>, vector<288x8xf32> -> vector<288x8xf32>
    %47 = arith.addf %41, %46 : vector<288x8xf32>
    %c0_44 = arith.constant 0 : index
    %c38 = arith.constant 38 : index
    %c0_45 = arith.constant 0 : index
    %48 = vector.load %arg2[%c0_44, %c38, %c0_45] : memref<1x328x4xf32, #tpu.memory_space<vmem>>, vector<1x288x4xf32>
    %49 = vector.shape_cast %48 : vector<1x288x4xf32> to vector<288x4xf32>
    %c8 = arith.constant 8 : index
    %c0_46 = arith.constant 0 : index
    %c0_47 = arith.constant 0 : index
    %50 = vector.load %arg3[%c8, %c0_46, %c0_47] : memref<9x4x8xf32, #tpu.memory_space<vmem>>, vector<1x4x8xf32>
    %51 = vector.shape_cast %50 : vector<1x4x8xf32> to vector<4x8xf32>
    %cst_48 = arith.constant dense<0.000000e+00> : vector<288x8xf32>
    %52 = tpu.matmul %49, %51, %cst_48 {dimension_numbers = #tpu.dot_dimension_numbers<[1], [0], [0], [1], [0, 0, 1, 1], [], []>} : vector<288x4xf32>, vector<4x8xf32>, vector<288x8xf32> -> vector<288x8xf32>
    %53 = arith.addf %47, %52 : vector<288x8xf32>
    %54 = vector.broadcast %0 : vector<288x1xf32> to vector<288x8xf32>
    %55 = arith.mulf %53, %54 : vector<288x8xf32>
    %cst_49 = arith.constant dense<0.000000e+00> : vector<8xf32>
    %56 = vector.multi_reduction <add>, %55, %cst_49 [0] : vector<288x8xf32> to vector<8xf32>
    %57 = vector.shape_cast %56 : vector<8xf32> to vector<1x8xf32>
    %cst_50 = arith.constant 3.906250e-03 : f32
    %58 = vector.broadcast %cst_50 : f32 to vector<1x8xf32>
    %59 = arith.mulf %57, %58 : vector<1x8xf32>
    %60 = arith.mulf %55, %55 : vector<288x8xf32>
    %cst_51 = arith.constant dense<0.000000e+00> : vector<8xf32>
    %61 = vector.multi_reduction <add>, %60, %cst_51 [0] : vector<288x8xf32> to vector<8xf32>
    %62 = vector.shape_cast %61 : vector<8xf32> to vector<1x8xf32>
    %cst_52 = arith.constant 3.906250e-03 : f32
    %63 = vector.broadcast %cst_52 : f32 to vector<1x8xf32>
    %64 = arith.mulf %62, %63 : vector<1x8xf32>
    %65 = arith.mulf %59, %59 : vector<1x8xf32>
    %66 = arith.subf %64, %65 : vector<1x8xf32>
    %cst_53 = arith.constant 9.99999974E-6 : f32
    %67 = vector.broadcast %cst_53 : f32 to vector<1x8xf32>
    %68 = arith.addf %66, %67 : vector<1x8xf32>
    %69 = math.rsqrt %68 : vector<1x8xf32>
    %70 = vector.broadcast %59 : vector<1x8xf32> to vector<288x8xf32>
    %71 = arith.subf %55, %70 : vector<288x8xf32>
    %72 = vector.broadcast %69 : vector<1x8xf32> to vector<288x8xf32>
    %73 = arith.mulf %71, %72 : vector<288x8xf32>
    %cst_54 = arith.constant 0.000000e+00 : f32
    %74 = vector.broadcast %cst_54 : f32 to vector<288x8xf32>
    %75 = arith.maximumf %73, %74 : vector<288x8xf32>
    %76 = vector.broadcast %0 : vector<288x1xf32> to vector<288x8xf32>
    %77 = arith.mulf %75, %76 : vector<288x8xf32>
    %cst_55 = arith.constant 0.000000e+00 : f32
    %78 = vector.broadcast %cst_55 : f32 to vector<328x8xf32>
    %c0_56 = arith.constant 0 : index
    %c0_57 = arith.constant 0 : index
    %79 = vector.load %arg6[%c0_56, %c0_57] : memref<328x8xf32, #tpu.memory_space<vmem>>, vector<328x8xf32>
    tpu.vector_store %arg6[%c0_56, %c0_57], %78 {strides = array<i32>} : memref<328x8xf32, #tpu.memory_space<vmem>>, vector<328x8xf32>,
    %c19_58 = arith.constant 19 : index
    %c0_59 = arith.constant 0 : index
    %80 = vector.load %arg6[%c19_58, %c0_59] : memref<328x8xf32, #tpu.memory_space<vmem>>, vector<288x8xf32>
    tpu.vector_store %arg6[%c19_58, %c0_59], %77 {strides = array<i32>} : memref<328x8xf32, #tpu.memory_space<vmem>>, vector<288x8xf32>,
    %c0_60 = arith.constant 0 : index
    %c0_61 = arith.constant 0 : index
    %81 = vector.load %arg6[%c0_60, %c0_61] : memref<328x8xf32, #tpu.memory_space<vmem>>, vector<288x8xf32>
    %c0_62 = arith.constant 0 : index
    %c0_63 = arith.constant 0 : index
    %c0_64 = arith.constant 0 : index
    %82 = vector.load %arg4[%c0_62, %c0_63, %c0_64] : memref<9x8x8xf32, #tpu.memory_space<vmem>>, vector<1x8x8xf32>
    %83 = vector.shape_cast %82 : vector<1x8x8xf32> to vector<8x8xf32>
    %cst_65 = arith.constant dense<0.000000e+00> : vector<288x8xf32>
    %84 = tpu.matmul %81, %83, %cst_65 {dimension_numbers = #tpu.dot_dimension_numbers<[1], [0], [0], [1], [0, 0, 1, 1], [], []>} : vector<288x8xf32>, vector<8x8xf32>, vector<288x8xf32> -> vector<288x8xf32>
    %c1_66 = arith.constant 1 : index
    %c0_67 = arith.constant 0 : index
    %85 = vector.load %arg6[%c1_66, %c0_67] : memref<328x8xf32, #tpu.memory_space<vmem>>, vector<288x8xf32>
    %c1_68 = arith.constant 1 : index
    %c0_69 = arith.constant 0 : index
    %c0_70 = arith.constant 0 : index
    %86 = vector.load %arg4[%c1_68, %c0_69, %c0_70] : memref<9x8x8xf32, #tpu.memory_space<vmem>>, vector<1x8x8xf32>
    %87 = vector.shape_cast %86 : vector<1x8x8xf32> to vector<8x8xf32>
    %cst_71 = arith.constant dense<0.000000e+00> : vector<288x8xf32>
    %88 = tpu.matmul %85, %87, %cst_71 {dimension_numbers = #tpu.dot_dimension_numbers<[1], [0], [0], [1], [0, 0, 1, 1], [], []>} : vector<288x8xf32>, vector<8x8xf32>, vector<288x8xf32> -> vector<288x8xf32>
    %89 = arith.addf %84, %88 : vector<288x8xf32>
    %c2_72 = arith.constant 2 : index
    %c0_73 = arith.constant 0 : index
    %90 = vector.load %arg6[%c2_72, %c0_73] : memref<328x8xf32, #tpu.memory_space<vmem>>, vector<288x8xf32>
    %c2_74 = arith.constant 2 : index
    %c0_75 = arith.constant 0 : index
    %c0_76 = arith.constant 0 : index
    %91 = vector.load %arg4[%c2_74, %c0_75, %c0_76] : memref<9x8x8xf32, #tpu.memory_space<vmem>>, vector<1x8x8xf32>
    %92 = vector.shape_cast %91 : vector<1x8x8xf32> to vector<8x8xf32>
    %cst_77 = arith.constant dense<0.000000e+00> : vector<288x8xf32>
    %93 = tpu.matmul %90, %92, %cst_77 {dimension_numbers = #tpu.dot_dimension_numbers<[1], [0], [0], [1], [0, 0, 1, 1], [], []>} : vector<288x8xf32>, vector<8x8xf32>, vector<288x8xf32> -> vector<288x8xf32>
    %94 = arith.addf %89, %93 : vector<288x8xf32>
    %c18_78 = arith.constant 18 : index
    %c0_79 = arith.constant 0 : index
    %95 = vector.load %arg6[%c18_78, %c0_79] : memref<328x8xf32, #tpu.memory_space<vmem>>, vector<288x8xf32>
    %c3_80 = arith.constant 3 : index
    %c0_81 = arith.constant 0 : index
    %c0_82 = arith.constant 0 : index
    %96 = vector.load %arg4[%c3_80, %c0_81, %c0_82] : memref<9x8x8xf32, #tpu.memory_space<vmem>>, vector<1x8x8xf32>
    %97 = vector.shape_cast %96 : vector<1x8x8xf32> to vector<8x8xf32>
    %cst_83 = arith.constant dense<0.000000e+00> : vector<288x8xf32>
    %98 = tpu.matmul %95, %97, %cst_83 {dimension_numbers = #tpu.dot_dimension_numbers<[1], [0], [0], [1], [0, 0, 1, 1], [], []>} : vector<288x8xf32>, vector<8x8xf32>, vector<288x8xf32> -> vector<288x8xf32>
    %99 = arith.addf %94, %98 : vector<288x8xf32>
    %c19_84 = arith.constant 19 : index
    %c0_85 = arith.constant 0 : index
    %100 = vector.load %arg6[%c19_84, %c0_85] : memref<328x8xf32, #tpu.memory_space<vmem>>, vector<288x8xf32>
    %c4_86 = arith.constant 4 : index
    %c0_87 = arith.constant 0 : index
    %c0_88 = arith.constant 0 : index
    %101 = vector.load %arg4[%c4_86, %c0_87, %c0_88] : memref<9x8x8xf32, #tpu.memory_space<vmem>>, vector<1x8x8xf32>
    %102 = vector.shape_cast %101 : vector<1x8x8xf32> to vector<8x8xf32>
    %cst_89 = arith.constant dense<0.000000e+00> : vector<288x8xf32>
    %103 = tpu.matmul %100, %102, %cst_89 {dimension_numbers = #tpu.dot_dimension_numbers<[1], [0], [0], [1], [0, 0, 1, 1], [], []>} : vector<288x8xf32>, vector<8x8xf32>, vector<288x8xf32> -> vector<288x8xf32>
    %104 = arith.addf %99, %103 : vector<288x8xf32>
    %c20_90 = arith.constant 20 : index
    %c0_91 = arith.constant 0 : index
    %105 = vector.load %arg6[%c20_90, %c0_91] : memref<328x8xf32, #tpu.memory_space<vmem>>, vector<288x8xf32>
    %c5_92 = arith.constant 5 : index
    %c0_93 = arith.constant 0 : index
    %c0_94 = arith.constant 0 : index
    %106 = vector.load %arg4[%c5_92, %c0_93, %c0_94] : memref<9x8x8xf32, #tpu.memory_space<vmem>>, vector<1x8x8xf32>
    %107 = vector.shape_cast %106 : vector<1x8x8xf32> to vector<8x8xf32>
    %cst_95 = arith.constant dense<0.000000e+00> : vector<288x8xf32>
    %108 = tpu.matmul %105, %107, %cst_95 {dimension_numbers = #tpu.dot_dimension_numbers<[1], [0], [0], [1], [0, 0, 1, 1], [], []>} : vector<288x8xf32>, vector<8x8xf32>, vector<288x8xf32> -> vector<288x8xf32>
    %109 = arith.addf %104, %108 : vector<288x8xf32>
    %c36_96 = arith.constant 36 : index
    %c0_97 = arith.constant 0 : index
    %110 = vector.load %arg6[%c36_96, %c0_97] : memref<328x8xf32, #tpu.memory_space<vmem>>, vector<288x8xf32>
    %c6_98 = arith.constant 6 : index
    %c0_99 = arith.constant 0 : index
    %c0_100 = arith.constant 0 : index
    %111 = vector.load %arg4[%c6_98, %c0_99, %c0_100] : memref<9x8x8xf32, #tpu.memory_space<vmem>>, vector<1x8x8xf32>
    %112 = vector.shape_cast %111 : vector<1x8x8xf32> to vector<8x8xf32>
    %cst_101 = arith.constant dense<0.000000e+00> : vector<288x8xf32>
    %113 = tpu.matmul %110, %112, %cst_101 {dimension_numbers = #tpu.dot_dimension_numbers<[1], [0], [0], [1], [0, 0, 1, 1], [], []>} : vector<288x8xf32>, vector<8x8xf32>, vector<288x8xf32> -> vector<288x8xf32>
    %114 = arith.addf %109, %113 : vector<288x8xf32>
    %c37_102 = arith.constant 37 : index
    %c0_103 = arith.constant 0 : index
    %115 = vector.load %arg6[%c37_102, %c0_103] : memref<328x8xf32, #tpu.memory_space<vmem>>, vector<288x8xf32>
    %c7_104 = arith.constant 7 : index
    %c0_105 = arith.constant 0 : index
    %c0_106 = arith.constant 0 : index
    %116 = vector.load %arg4[%c7_104, %c0_105, %c0_106] : memref<9x8x8xf32, #tpu.memory_space<vmem>>, vector<1x8x8xf32>
    %117 = vector.shape_cast %116 : vector<1x8x8xf32> to vector<8x8xf32>
    %cst_107 = arith.constant dense<0.000000e+00> : vector<288x8xf32>
    %118 = tpu.matmul %115, %117, %cst_107 {dimension_numbers = #tpu.dot_dimension_numbers<[1], [0], [0], [1], [0, 0, 1, 1], [], []>} : vector<288x8xf32>, vector<8x8xf32>, vector<288x8xf32> -> vector<288x8xf32>
    %119 = arith.addf %114, %118 : vector<288x8xf32>
    %c38_108 = arith.constant 38 : index
    %c0_109 = arith.constant 0 : index
    %120 = vector.load %arg6[%c38_108, %c0_109] : memref<328x8xf32, #tpu.memory_space<vmem>>, vector<288x8xf32>
    %c8_110 = arith.constant 8 : index
    %c0_111 = arith.constant 0 : index
    %c0_112 = arith.constant 0 : index
    %121 = vector.load %arg4[%c8_110, %c0_111, %c0_112] : memref<9x8x8xf32, #tpu.memory_space<vmem>>, vector<1x8x8xf32>
    %122 = vector.shape_cast %121 : vector<1x8x8xf32> to vector<8x8xf32>
    %cst_113 = arith.constant dense<0.000000e+00> : vector<288x8xf32>
    %123 = tpu.matmul %120, %122, %cst_113 {dimension_numbers = #tpu.dot_dimension_numbers<[1], [0], [0], [1], [0, 0, 1, 1], [], []>} : vector<288x8xf32>, vector<8x8xf32>, vector<288x8xf32> -> vector<288x8xf32>
    %124 = arith.addf %119, %123 : vector<288x8xf32>
    %125 = vector.broadcast %0 : vector<288x1xf32> to vector<288x8xf32>
    %126 = arith.mulf %124, %125 : vector<288x8xf32>
    %cst_114 = arith.constant dense<0.000000e+00> : vector<8xf32>
    %127 = vector.multi_reduction <add>, %126, %cst_114 [0] : vector<288x8xf32> to vector<8xf32>
    %128 = vector.shape_cast %127 : vector<8xf32> to vector<1x8xf32>
    %cst_115 = arith.constant 3.906250e-03 : f32
    %129 = vector.broadcast %cst_115 : f32 to vector<1x8xf32>
    %130 = arith.mulf %128, %129 : vector<1x8xf32>
    %131 = arith.mulf %126, %126 : vector<288x8xf32>
    %cst_116 = arith.constant dense<0.000000e+00> : vector<8xf32>
    %132 = vector.multi_reduction <add>, %131, %cst_116 [0] : vector<288x8xf32> to vector<8xf32>
    %133 = vector.shape_cast %132 : vector<8xf32> to vector<1x8xf32>
    %cst_117 = arith.constant 3.906250e-03 : f32
    %134 = vector.broadcast %cst_117 : f32 to vector<1x8xf32>
    %135 = arith.mulf %133, %134 : vector<1x8xf32>
    %136 = arith.mulf %130, %130 : vector<1x8xf32>
    %137 = arith.subf %135, %136 : vector<1x8xf32>
    %cst_118 = arith.constant 9.99999974E-6 : f32
    %138 = vector.broadcast %cst_118 : f32 to vector<1x8xf32>
    %139 = arith.addf %137, %138 : vector<1x8xf32>
    %140 = math.rsqrt %139 : vector<1x8xf32>
    %141 = vector.broadcast %130 : vector<1x8xf32> to vector<288x8xf32>
    %142 = arith.subf %126, %141 : vector<288x8xf32>
    %143 = vector.broadcast %140 : vector<1x8xf32> to vector<288x8xf32>
    %144 = arith.mulf %142, %143 : vector<288x8xf32>
    %cst_119 = arith.constant 0.000000e+00 : f32
    %145 = vector.broadcast %cst_119 : f32 to vector<288x8xf32>
    %146 = arith.maximumf %144, %145 : vector<288x8xf32>
    %c0_120 = arith.constant 0 : index
    %c0_121 = arith.constant 0 : index
    %c0_122 = arith.constant 0 : index
    %147 = vector.load %arg5[%c0_120, %c0_121, %c0_122] : memref<1x288x8xf32, #tpu.memory_space<vmem>>, vector<1x288x8xf32>
    %148 = vector.shape_cast %147 : vector<1x288x8xf32> to vector<288x8xf32>
    %149 = vector.shape_cast %146 : vector<288x8xf32> to vector<1x288x8xf32>
    tpu.vector_store %arg5[%c0_120, %c0_121, %c0_122], %149 {strides = array<i32>} : memref<1x288x8xf32, #tpu.memory_space<vmem>>, vector<1x288x8xf32>,
    return
  }
  func.func @transform_0(%arg0: i32) -> (i32, i32) {
    %c0_i32 = arith.constant 0 : i32
    %c0_i32_0 = arith.constant 0 : i32
    %c0_i32_1 = arith.constant 0 : i32
    return %c0_i32, %c0_i32_0 : i32, i32
  }
  func.func @transform_1(%arg0: i32) -> (i32, i32, i32) {
    %c0_i32 = arith.constant 0 : i32
    %c0_i32_0 = arith.constant 0 : i32
    %c0_i32_1 = arith.constant 0 : i32
    return %arg0, %c0_i32, %c0_i32_0 : i32, i32, i32
  }
  func.func @transform_2(%arg0: i32) -> (i32, i32, i32) {
    %c0_i32 = arith.constant 0 : i32
    %c0_i32_0 = arith.constant 0 : i32
    %c0_i32_1 = arith.constant 0 : i32
    %c0_i32_2 = arith.constant 0 : i32
    return %c0_i32, %c0_i32_0, %c0_i32_1 : i32, i32, i32
  }
  func.func @transform_3(%arg0: i32) -> (i32, i32, i32) {
    %c0_i32 = arith.constant 0 : i32
    %c0_i32_0 = arith.constant 0 : i32
    %c0_i32_1 = arith.constant 0 : i32
    %c0_i32_2 = arith.constant 0 : i32
    return %c0_i32, %c0_i32_0, %c0_i32_1 : i32, i32, i32
  }
  func.func @transform_4(%arg0: i32) -> (i32, i32, i32) {
    %c0_i32 = arith.constant 0 : i32
    %c0_i32_0 = arith.constant 0 : i32
    %c0_i32_1 = arith.constant 0 : i32
    return %arg0, %c0_i32, %c0_i32_0 : i32, i32, i32
  }
}

</mosaic_0001>

<llo_original>
// kernel: conv_block_forward.1
$region0: #{conv_block_forward.1}
  #allocation0 [shape = 'u32[]', space=smem, size = 0x4, offset = 0x4, fixed_abs, tag = 'smem constant byte address 0x4 - core index']
  #allocation1 [shape = 'u32[72,128]{1,0:T(1,128)}', space=vmem, size = 0x9000, scoped, tag = 'internal scratch']
  #allocation2 [shape = 'f32[328,8]{1,0:T(8,128)}', space=vmem, size = 0x29000, scoped, tag = 'scratch operand']
  %s0 = inlined_call_operand.vmem [shape: f32[288,1], index: 0, kind: input, shape index: {}]
  %s1 = inlined_call_operand.vmem [shape: f32[2,328,4], index: 1, kind: input, shape index: {}]
  %s2 = inlined_call_operand.vmem [shape: f32[9,4,8], index: 2, kind: input, shape index: {}]
  %s3 = inlined_call_operand.vmem [shape: f32[9,8,8], index: 3, kind: input, shape index: {}]
  %s4 = inlined_call_operand.vmem [shape: f32[2,288,8], index: 4, kind: output, shape index: {}]
  %s5 = sld [smem:[#allocation0]]
  $region49: #{conv_block_forward.1} parent=0
    _
  %s7 = ssub.s32 1, %s5
  %s8 = scalar_select 0, %s7, %s5
  loop: start=0, step=1, limit=4
  $region2: #{conv_block_forward.1} parent=0 // loop_pre_header
    _
  $region3: #{conv_block_forward.1} parent=0 // loop_header
    %s10 = sphi 0, %s14
    %p11 = scmp.ge.s32.totalorder %s10, 4
    %s18 = sphi 0, %s18
    %s20 = sphi 0, %s18
    %s21 = sphi 0, %s20
    %s35 = sphi 0, %s21
    %s41 = sphi 0, %s43
    %s44 = sphi 0, %s41
    %s45 = sphi 0, %s44
    %s61 = sphi 0, %s45
    %s65 = sphi 0, %s65
    %s67 = sphi 0, %s65
    %s68 = sphi 0, %s67
    %s82 = sphi 0, %s68
    %s86 = sphi 0, %s86
    %s88 = sphi 0, %s86
    %s89 = sphi 0, %s88
    %s103 = sphi 0, %s89
    %s109 = sphi 0, %s111
    %s112 = sphi 0, %s109
    %s113 = sphi 0, %s112
    %s129 = sphi 0, %s113
  $region4: #{conv_block_forward.1} parent=0 // loop_header_branch
    %13 = sbr.rel (%p11) target = $region8
  $region5: #{conv_block_forward.1} parent=0 // loop_body
    %s15 = ssub.s32 %s10, 1
    %s16 = ssub.s32 %s10, 2
    %s17 = sadd.s32 %s10, 1
    %s19 = sadd.s32 %s18, 1
    %p22 = scmp.eq.s32.totalorder %s10, 1
    %p23 = scmp.ne.s32.totalorder %s18, %s20
    %p24 = scmp.eq.s32.totalorder %s10, 0
    %p25 = por %p23, %p24
    %p26 = scmp.ne.s32.totalorder %s18, %s20
    %p27 = scmp.eq.s32.totalorder %s15, 1
    %p28 = por %p26, %p27
    %p29 = scmp.ne.s32.totalorder %s20, %s21
    %p30 = scmp.eq.s32.totalorder %s15, 0
    %p31 = por %p29, %p30
    %p32 = scmp.ne.s32.totalorder %s20, %s21
    %p33 = scmp.eq.s32.totalorder %s16, 1
    %p34 = por %p32, %p33
    %p36 = scmp.ne.s32.totalorder %s21, %s35
    %p37 = scmp.eq.s32.totalorder %s16, 0
    %p38 = por %p36, %p37
    %s39 = ssub.s32 %s10, %s17
    %p40 = scmp.eq.s32.totalorder %s39, 0
    %s42 = sadd.s32 %s41, 1
    %s43 = scalar_select %p40, %s41, %s42
    %p46 = pneg %p40
    %p47 = scmp.eq.s32.totalorder %s10, 1
    %p48 = por %p46, %p47
    %p49 = scmp.ne.s32.totalorder %s41, %s44
    %p50 = scmp.eq.s32.totalorder %s10, 0
    %p51 = por %p49, %p50
    %p52 = scmp.ne.s32.totalorder %s41, %s44
    %p53 = scmp.eq.s32.totalorder %s15, 1
    %p54 = por %p52, %p53
    %p55 = scmp.ne.s32.totalorder %s44, %s45
    %p56 = scmp.eq.s32.totalorder %s15, 0
    %p57 = por %p55, %p56
    %p58 = scmp.ne.s32.totalorder %s44, %s45
    %p59 = scmp.eq.s32.totalorder %s16, 1
    %p60 = por %p58, %p59
    %p62 = scmp.ne.s32.totalorder %s45, %s61
    %p63 = scmp.eq.s32.totalorder %s16, 0
    %p64 = por %p62, %p63
    %s66 = sadd.s32 %s65, 1
    %p69 = scmp.eq.s32.totalorder %s10, 1
    %p70 = scmp.ne.s32.totalorder %s65, %s67
    %p71 = scmp.eq.s32.totalorder %s10, 0
    %p72 = por %p70, %p71
    %p73 = scmp.ne.s32.totalorder %s65, %s67
    %p74 = scmp.eq.s32.totalorder %s15, 1
    %p75 = por %p73, %p74
    %p76 = scmp.ne.s32.totalorder %s67, %s68
    %p77 = scmp.eq.s32.totalorder %s15, 0
    %p78 = por %p76, %p77
    %p79 = scmp.ne.s32.totalorder %s67, %s68
    %p80 = scmp.eq.s32.totalorder %s16, 1
    %p81 = por %p79, %p80
    %p83 = scmp.ne.s32.totalorder %s68, %s82
    %p84 = scmp.eq.s32.totalorder %s16, 0
    %p85 = por %p83, %p84
    %s87 = sadd.s32 %s86, 1
    %p90 = scmp.eq.s32.totalorder %s10, 1
    %p91 = scmp.ne.s32.totalorder %s86, %s88
    %p92 = scmp.eq.s32.totalorder %s10, 0
    %p93 = por %p91, %p92
    %p94 = scmp.ne.s32.totalorder %s86, %s88
    %p95 = scmp.eq.s32.totalorder %s15, 1
    %p96 = por %p94, %p95
    %p97 = scmp.ne.s32.totalorder %s88, %s89
    %p98 = scmp.eq.s32.totalorder %s15, 0
    %p99 = por %p97, %p98
    %p100 = scmp.ne.s32.totalorder %s88, %s89
    %p101 = scmp.eq.s32.totalorder %s16, 1
    %p102 = por %p100, %p101
    %p104 = scmp.ne.s32.totalorder %s89, %s103
    %p105 = scmp.eq.s32.totalorder %s16, 0
    %p106 = por %p104, %p105
    %s107 = ssub.s32 %s10, %s17
    %p108 = scmp.eq.s32.totalorder %s107, 0
    %s110 = sadd.s32 %s109, 1
    %s111 = scalar_select %p108, %s109, %s110
    %p114 = pneg %p108
    %p115 = scmp.eq.s32.totalorder %s10, 1
    %p116 = por %p114, %p115
    %p117 = scmp.ne.s32.totalorder %s109, %s112
    %p118 = scmp.eq.s32.totalorder %s10, 0
    %p119 = por %p117, %p118
    %p120 = scmp.ne.s32.totalorder %s109, %s112
    %p121 = scmp.eq.s32.totalorder %s15, 1
    %p122 = por %p120, %p121
    %p123 = scmp.ne.s32.totalorder %s112, %s113
    %p124 = scmp.eq.s32.totalorder %s15, 0
    %p125 = por %p123, %p124
    %p126 = scmp.ne.s32.totalorder %s112, %s113
    %p127 = scmp.eq.s32.totalorder %s16, 1
    %p128 = por %p126, %p127
    %p130 = scmp.ne.s32.totalorder %s113, %s129
    %p131 = scmp.eq.s32.totalorder %s16, 0
    %p132 = por %p130, %p131
    %p133 = scmp.le.s32.totalorder 1, %s10
    %p134 = scmp.lt.s32.totalorder %s10, 3
    %p135 = pnand %p133, %p134
    %p136 = pneg %p135
    // Predicated region
    $region9: #{conv_block_forward.1} parent=5 // pred_check
      _
    $region10: #{conv_block_forward.1} parent=5 // pred_check_branch
      %138 = sbr.rel (%p135) target = $region12
    $region11: #{conv_block_forward.1} parent=5 // pred_region
      %s139 = ssub.s32 %s10, 1
      // Predicated region
      $region13: #{conv_block_forward.1} parent=11 // pred_check
        %p140 = pneg %p31
      $region14: #{conv_block_forward.1} parent=11 // pred_check_branch
        %142 = sbr.rel (%p140) target = $region16
      $region15: #{conv_block_forward.1} parent=11 // pred_region
        _
      $region16: #{conv_block_forward.1} parent=11 // pred_fallthru
        _
      // Predicated region
      $region17: #{conv_block_forward.1} parent=11 // pred_check
        %p143 = pneg %p78
      $region18: #{conv_block_forward.1} parent=11 // pred_check_branch
        %145 = sbr.rel (%p143) target = $region20
      $region19: #{conv_block_forward.1} parent=11 // pred_region
        _
      $region20: #{conv_block_forward.1} parent=11 // pred_fallthru
        _
      // Predicated region
      $region21: #{conv_block_forward.1} parent=11 // pred_check
        %p146 = pneg %p99
      $region22: #{conv_block_forward.1} parent=11 // pred_check_branch
        %148 = sbr.rel (%p146) target = $region24
      $region23: #{conv_block_forward.1} parent=11 // pred_region
        _
      $region24: #{conv_block_forward.1} parent=11 // pred_fallthru
        _
    $region12: #{conv_block_forward.1} parent=5 // pred_fallthru
      _
    %p149 = scmp.lt.s32.totalorder %s10, 2
    // Predicated region
    $region25: #{conv_block_forward.1} parent=5 // pred_check
      %p150 = pneg %p149
    $region26: #{conv_block_forward.1} parent=5 // pred_check_branch
      %152 = sbr.rel (%p150) target = $region28
    $region27: #{conv_block_forward.1} parent=5 // pred_region
      // Predicated region
      $region29: #{conv_block_forward.1} parent=27 // pred_check
        %p153 = pneg %p51
      $region30: #{conv_block_forward.1} parent=27 // pred_check_branch
        %155 = sbr.rel (%p153) target = $region32
      $region31: #{conv_block_forward.1} parent=27 // pred_region
        %p156 = scmp.lt.s32.totalorder %s10, 1
        %s157 = scalar_select %p156, %s10, 1
        %s158 = smul.addr %s157, 41
        %s159 = smul.addr %s158, 8
        %s160 = scalar_lea.vmem %s1, %s159
      $region32: #{conv_block_forward.1} parent=27 // pred_fallthru
        _
    $region28: #{conv_block_forward.1} parent=5 // pred_fallthru
      _
    %p161 = scmp.le.s32.totalorder 1, %s10
    %p162 = scmp.lt.s32.totalorder %s10, 3
    %p163 = pnand %p161, %p162
    %p164 = pneg %p163
    // Predicated region
    $region33: #{conv_block_forward.1} parent=5 // pred_check
      _
    $region34: #{conv_block_forward.1} parent=5 // pred_check_branch
      %166 = sbr.rel (%p163) target = $region36
    $region35: #{conv_block_forward.1} parent=5 // pred_region
      %s167 = ssub.s32 %s10, 1
      %p168 = pneg %p31
      %p169 = pneg %p28
      %p170 = scmp.lt.s32.totalorder %s15, 1
      %s171 = scalar_select %p170, %s15, 1
      %s172 = smul.addr %s171, 41
      %s173 = smul.addr %s172, 8
      %s174 = scalar_lea.vmem %s1, %s173
      %p175 = pneg %p57
      %p176 = pneg %p54
      %p177 = pneg %p78
      %p178 = pneg %p75
      %p179 = pneg %p99
      %p180 = pneg %p96
      %p181 = pneg %p125
      %p182 = pneg %p122
      %p183 = scmp.lt.s32.totalorder %s15, 1
      %s184 = scalar_select %p183, %s15, 1
      %s185 = smul.addr %s184, 36
      %s186 = smul.addr %s185, 8
      %s187 = scalar_lea.vmem %s4, %s186
      %p188 = scmp.lt.s32.totalorder %s15, 1
      %s189 = scalar_select %p188, %s15, 1
      %s190 = smul.addr %s189, 41
      %s191 = smul.addr %s190, 8
      %s192 = scalar_lea.vmem %s1, %s191
      %p193 = scmp.lt.s32.totalorder %s15, 1
      %s194 = scalar_select %p193, %s15, 1
      %s195 = smul.addr %s194, 36
      %s196 = smul.addr %s195, 8
      %s197 = scalar_lea.vmem %s4, %s196
      %v198 = vld [vmem:[%s0] sm:$0xff]
      %v199 = vld [vmem:[%s0 + $0x8] sm:$0xff]
      %v200 = vld [vmem:[%s0 + $0x10] sm:$0xff]
      %v201 = vld [vmem:[%s0 + $0x18] sm:$0xff]
      %v202 = vld [vmem:[%s0 + $0x20] sm:$0xff]
      %v203 = vld [vmem:[%s0 + $0x28] sm:$0xff]
      %v204 = vld [vmem:[%s0 + $0x30] sm:$0xff]
      %v205 = vld [vmem:[%s0 + $0x38] sm:$0xff]
      %v206 = vld [vmem:[%s0 + $0x40] sm:$0xff]
      %v207 = vld [vmem:[%s0 + $0x48] sm:$0xff]
      %v208 = vld [vmem:[%s0 + $0x50] sm:$0xff]
      %v209 = vld [vmem:[%s0 + $0x58] sm:$0xff]
      %v210 = vld [vmem:[%s0 + $0x60] sm:$0xff]
      %v211 = vld [vmem:[%s0 + $0x68] sm:$0xff]
      %v212 = vld [vmem:[%s0 + $0x70] sm:$0xff]
      %v213 = vld [vmem:[%s0 + $0x78] sm:$0xff]
      %v214 = vld [vmem:[%s0 + $0x80] sm:$0xff]
      %v215 = vld [vmem:[%s0 + $0x88] sm:$0xff]
      %v216 = vld [vmem:[%s0 + $0x90] sm:$0xff]
      %v217 = vld [vmem:[%s0 + $0x98] sm:$0xff]
      %v218 = vld [vmem:[%s0 + $0xa0] sm:$0xff]
      %v219 = vld [vmem:[%s0 + $0xa8] sm:$0xff]
      %v220 = vld [vmem:[%s0 + $0xb0] sm:$0xff]
      %v221 = vld [vmem:[%s0 + $0xb8] sm:$0xff]
      %v222 = vld [vmem:[%s0 + $0xc0] sm:$0xff]
      %v223 = vld [vmem:[%s0 + $0xc8] sm:$0xff]
      %v224 = vld [vmem:[%s0 + $0xd0] sm:$0xff]
      %v225 = vld [vmem:[%s0 + $0xd8] sm:$0xff]
      %v226 = vld [vmem:[%s0 + $0xe0] sm:$0xff]
      %v227 = vld [vmem:[%s0 + $0xe8] sm:$0xff]
      %v228 = vld [vmem:[%s0 + $0xf0] sm:$0xff]
      %v229 = vld [vmem:[%s0 + $0xf8] sm:$0xff]
      %v230 = vld [vmem:[%s0 + $0x100] sm:$0xff]
      %v231 = vld [vmem:[%s0 + $0x108] sm:$0xff]
      %v232 = vld [vmem:[%s0 + $0x110] sm:$0xff]
      %v233 = vld [vmem:[%s0 + $0x118] sm:$0xff]
      %v234 = vld [vmem:[%s192] sm:$0xff]
      %v235 = vld [vmem:[%s192 + $0x8] sm:$0xff]
      %v236 = vld [vmem:[%s192 + $0x10] sm:$0xff]
      %v237 = vld [vmem:[%s192 + $0x18] sm:$0xff]
      %v238 = vld [vmem:[%s192 + $0x20] sm:$0xff]
      %v239 = vld [vmem:[%s192 + $0x28] sm:$0xff]
      %v240 = vld [vmem:[%s192 + $0x30] sm:$0xff]
      %v241 = vld [vmem:[%s192 + $0x38] sm:$0xff]
      %v242 = vld [vmem:[%s192 + $0x40] sm:$0xff]
      %v243 = vld [vmem:[%s192 + $0x48] sm:$0xff]
      %v244 = vld [vmem:[%s192 + $0x50] sm:$0xff]
      %v245 = vld [vmem:[%s192 + $0x58] sm:$0xff]
      %v246 = vld [vmem:[%s192 + $0x60] sm:$0xff]
      %v247 = vld [vmem:[%s192 + $0x68] sm:$0xff]
      %v248 = vld [vmem:[%s192 + $0x70] sm:$0xff]
      %v249 = vld [vmem:[%s192 + $0x78] sm:$0xff]
      %v250 = vld [vmem:[%s192 + $0x80] sm:$0xff]
      %v251 = vld [vmem:[%s192 + $0x88] sm:$0xff]
      %v252 = vld [vmem:[%s192 + $0x90] sm:$0xff]
      %v253 = vld [vmem:[%s192 + $0x98] sm:$0xff]
      %v254 = vld [vmem:[%s192 + $0xa0] sm:$0xff]
      %v255 = vld [vmem:[%s192 + $0xa8] sm:$0xff]
      %v256 = vld [vmem:[%s192 + $0xb0] sm:$0xff]
      %v257 = vld [vmem:[%s192 + $0xb8] sm:$0xff]
      %v258 = vld [vmem:[%s192 + $0xc0] sm:$0xff]
      %v259 = vld [vmem:[%s192 + $0xc8] sm:$0xff]
      %v260 = vld [vmem:[%s192 + $0xd0] sm:$0xff]
      %v261 = vld [vmem:[%s192 + $0xd8] sm:$0xff]
      %v262 = vld [vmem:[%s192 + $0xe0] sm:$0xff]
      %v263 = vld [vmem:[%s192 + $0xe8] sm:$0xff]
      %v264 = vld [vmem:[%s192 + $0xf0] sm:$0xff]
      %v265 = vld [vmem:[%s192 + $0xf8] sm:$0xff]
      %v266 = vld [vmem:[%s192 + $0x100] sm:$0xff]
      %v267 = vld [vmem:[%s192 + $0x108] sm:$0xff]
      %v268 = vld [vmem:[%s192 + $0x110] sm:$0xff]
      %v269 = vld [vmem:[%s192 + $0x118] sm:$0xff]
      %v270 = vld [vmem:[%s2] sm:$0xf]
      %v271 = vld [vmem:[%s192 + $0x1] sm:$0xff]
      %v272 = vld [vmem:[%s192 + $0x9] sm:$0xff]
      %v273 = vld [vmem:[%s192 + $0x11] sm:$0xff]
      %v274 = vld [vmem:[%s192 + $0x19] sm:$0xff]
      %v275 = vld [vmem:[%s192 + $0x21] sm:$0xff]
      %v276 = vld [vmem:[%s192 + $0x29] sm:$0xff]
      %v277 = vld [vmem:[%s192 + $0x31] sm:$0xff]
      %v278 = vld [vmem:[%s192 + $0x39] sm:$0xff]
      %v279 = vld [vmem:[%s192 + $0x41] sm:$0xff]
      %v280 = vld [vmem:[%s192 + $0x49] sm:$0xff]
      %v281 = vld [vmem:[%s192 + $0x51] sm:$0xff]
      %v282 = vld [vmem:[%s192 + $0x59] sm:$0xff]
      %v283 = vld [vmem:[%s192 + $0x61] sm:$0xff]
      %v284 = vld [vmem:[%s192 + $0x69] sm:$0xff]
      %v285 = vld [vmem:[%s192 + $0x71] sm:$0xff]
      %v286 = vld [vmem:[%s192 + $0x79] sm:$0xff]
      %v287 = vld [vmem:[%s192 + $0x81] sm:$0xff]
      %v288 = vld [vmem:[%s192 + $0x89] sm:$0xff]
      %v289 = vld [vmem:[%s192 + $0x91] sm:$0xff]
      %v290 = vld [vmem:[%s192 + $0x99] sm:$0xff]
      %v291 = vld [vmem:[%s192 + $0xa1] sm:$0xff]
      %v292 = vld [vmem:[%s192 + $0xa9] sm:$0xff]
      %v293 = vld [vmem:[%s192 + $0xb1] sm:$0xff]
      %v294 = vld [vmem:[%s192 + $0xb9] sm:$0xff]
      %v295 = vld [vmem:[%s192 + $0xc1] sm:$0xff]
      %v296 = vld [vmem:[%s192 + $0xc9] sm:$0xff]
      %v297 = vld [vmem:[%s192 + $0xd1] sm:$0xff]
      %v298 = vld [vmem:[%s192 + $0xd9] sm:$0xff]
      %v299 = vld [vmem:[%s192 + $0xe1] sm:$0xff]
      %v300 = vld [vmem:[%s192 + $0xe9] sm:$0xff]
      %v301 = vld [vmem:[%s192 + $0xf1] sm:$0xff]
      %v302 = vld [vmem:[%s192 + $0xf9] sm:$0xff]
      %v303 = vld [vmem:[%s192 + $0x101] sm:$0xff]
      %v304 = vld [vmem:[%s192 + $0x109] sm:$0xff]
      %v305 = vld [vmem:[%s192 + $0x111] sm:$0xff]
      %v306 = vld [vmem:[%s192 + $0x119] sm:$0xff]
      %s307 = scalar_lea.vmem %s2, 4
      %v308 = vld [vmem:[%s307] sm:$0xf]
      %vm309 = vcmask 31744
      %v311 = vsel %vm309, %v271, 0
      %v314 = vsel %vm309, %v272, 0
      %v317 = vsel %vm309, %v273, 0
      %v320 = vsel %vm309, %v274, 0
      %v323 = vsel %vm309, %v275, 0
      %v326 = vsel %vm309, %v276, 0
      %v329 = vsel %vm309, %v277, 0
      %v332 = vsel %vm309, %v278, 0
      %v335 = vsel %vm309, %v279, 0
      %v338 = vsel %vm309, %v280, 0
      %v341 = vsel %vm309, %v281, 0
      %v344 = vsel %vm309, %v282, 0
      %v347 = vsel %vm309, %v283, 0
      %v350 = vsel %vm309, %v284, 0
      %v353 = vsel %vm309, %v285, 0
      %v356 = vsel %vm309, %v286, 0
      %v359 = vsel %vm309, %v287, 0
      %v362 = vsel %vm309, %v288, 0
      %v365 = vsel %vm309, %v289, 0
      %v368 = vsel %vm309, %v290, 0
      %v371 = vsel %vm309, %v291, 0
      %v374 = vsel %vm309, %v292, 0
      %v377 = vsel %vm309, %v293, 0
      %v380 = vsel %vm309, %v294, 0
      %v383 = vsel %vm309, %v295, 0
      %v386 = vsel %vm309, %v296, 0
      %v389 = vsel %vm309, %v297, 0
      %v392 = vsel %vm309, %v298, 0
      %v395 = vsel %vm309, %v299, 0
      %v398 = vsel %vm309, %v300, 0
      %v401 = vsel %vm309, %v301, 0
      %v404 = vsel %vm309, %v302, 0
      %v407 = vsel %vm309, %v303, 0
      %v410 = vsel %vm309, %v304, 0
      %v413 = vsel %vm309, %v305, 0
      %v416 = vsel %vm309, %v306, 0
      %vm418 = vcmask 1043456
      %v420 = vsel %vm418, %v308, 0
      %422 = vmatpush.msra.mxu0 0.0
      %423 = vmatpush.msra.mxu0 0.0
      %424 = vmatpush.msra.mxu0 0.0
      %425 = vmatpush.msra.mxu0 0.0
      %426 = vmatpush.msra.mxu0 0.0
      %427 = vmatpush.msra.mxu0 0.0
      %428 = vmatpush.msra.mxu0 0.0
      %429 = vmatpush.msra.mxu0 0.0
      %430 = vmatpush.msra.mxu0 0.0
      %431 = vmatpush.msra.mxu0 0.0
      %432 = vmatpush.msra.mxu0 0.0
      %433 = vmatpush.msra.mxu0 0.0
      %434 = vmatpush.msra.mxu0 0.0
      %435 = vmatpush.msra.mxu0 0.0
      %436 = vmatpush.msra.mxu0 0.0
      %437 = vmatpush.msra.mxu0 %v420
      %438 = vmatmul.f32.gmra.mxu0 %v311
      %v439 = vpop.f32.mrf.mxu0
      %v440 = vadd.f32 0.0, %v439
      %441 = vmatmul.f32.gmra.mxu0 %v314
      %v442 = vpop.f32.mrf.mxu0
      %v443 = vadd.f32 0.0, %v442
      %444 = vmatmul.f32.gmra.mxu0 %v317
      %v445 = vpop.f32.mrf.mxu0
      %v446 = vadd.f32 0.0, %v445
      %447 = vmatmul.f32.gmra.mxu0 %v320
      %v448 = vpop.f32.mrf.mxu0
      %v449 = vadd.f32 0.0, %v448
      %450 = vmatmul.f32.gmra.mxu0 %v323
      %v451 = vpop.f32.mrf.mxu0
      %v452 = vadd.f32 0.0, %v451
      %453 = vmatmul.f32.gmra.mxu0 %v326
      %v454 = vpop.f32.mrf.mxu0
      %v455 = vadd.f32 0.0, %v454
      %456 = vmatmul.f32.gmra.mxu0 %v329
      %v457 = vpop.f32.mrf.mxu0
      %v458 = vadd.f32 0.0, %v457
      %459 = vmatmul.f32.gmra.mxu0 %v332
      %v460 = vpop.f32.mrf.mxu0
      %v461 = vadd.f32 0.0, %v460
      %462 = vmatmul.f32.gmra.mxu0 %v335
      %v463 = vpop.f32.mrf.mxu0
      %v464 = vadd.f32 0.0, %v463
      %465 = vmatmul.f32.gmra.mxu0 %v338
      %v466 = vpop.f32.mrf.mxu0
      %v467 = vadd.f32 0.0, %v466
      %468 = vmatmul.f32.gmra.mxu0 %v341
      %v469 = vpop.f32.mrf.mxu0
      %v470 = vadd.f32 0.0, %v469
      %471 = vmatmul.f32.gmra.mxu0 %v344
      %v472 = vpop.f32.mrf.mxu0
      %v473 = vadd.f32 0.0, %v472
      %474 = vmatmul.f32.gmra.mxu0 %v347
      %v475 = vpop.f32.mrf.mxu0
      %v476 = vadd.f32 0.0, %v475
      %477 = vmatmul.f32.gmra.mxu0 %v350
      %v478 = vpop.f32.mrf.mxu0
      %v479 = vadd.f32 0.0, %v478
      %480 = vmatmul.f32.gmra.mxu0 %v353
      %v481 = vpop.f32.mrf.mxu0
      %v482 = vadd.f32 0.0, %v481
      %483 = vmatmul.f32.gmra.mxu0 %v356
      %v484 = vpop.f32.mrf.mxu0
      %v485 = vadd.f32 0.0, %v484
      %486 = vmatmul.f32.gmra.mxu0 %v359
      %v487 = vpop.f32.mrf.mxu0
      %v488 = vadd.f32 0.0, %v487
      %489 = vmatmul.f32.gmra.mxu0 %v362
      %v490 = vpop.f32.mrf.mxu0
      %v491 = vadd.f32 0.0, %v490
      %492 = vmatmul.f32.gmra.mxu0 %v365
      %v493 = vpop.f32.mrf.mxu0
      %v494 = vadd.f32 0.0, %v493
      %495 = vmatmul.f32.gmra.mxu0 %v368
      %v496 = vpop.f32.mrf.mxu0
      %v497 = vadd.f32 0.0, %v496
      %498 = vmatmul.f32.gmra.mxu0 %v371
      %v499 = vpop.f32.mrf.mxu0
      %v500 = vadd.f32 0.0, %v499
      %501 = vmatmul.f32.gmra.mxu0 %v374
      %v502 = vpop.f32.mrf.mxu0
      %v503 = vadd.f32 0.0, %v502
      %504 = vmatmul.f32.gmra.mxu0 %v377
      %v505 = vpop.f32.mrf.mxu0
      %v506 = vadd.f32 0.0, %v505
      %507 = vmatmul.f32.gmra.mxu0 %v380
      %v508 = vpop.f32.mrf.mxu0
      %v509 = vadd.f32 0.0, %v508
      %510 = vmatmul.f32.gmra.mxu0 %v383
      %v511 = vpop.f32.mrf.mxu0
      %v512 = vadd.f32 0.0, %v511
      %513 = vmatmul.f32.gmra.mxu0 %v386
      %v514 = vpop.f32.mrf.mxu0
      %v515 = vadd.f32 0.0, %v514
      %516 = vmatmul.f32.gmra.mxu0 %v389
      %v517 = vpop.f32.mrf.mxu0
      %v518 = vadd.f32 0.0, %v517
      %519 = vmatmul.f32.gmra.mxu0 %v392
      %v520 = vpop.f32.mrf.mxu0
      %v521 = vadd.f32 0.0, %v520
      %522 = vmatmul.f32.gmra.mxu0 %v395
      %v523 = vpop.f32.mrf.mxu0
      %v524 = vadd.f32 0.0, %v523
      %525 = vmatmul.f32.gmra.mxu0 %v398
      %v526 = vpop.f32.mrf.mxu0
      %v527 = vadd.f32 0.0, %v526
      %528 = vmatmul.f32.gmra.mxu0 %v401
      %v529 = vpop.f32.mrf.mxu0
      %v530 = vadd.f32 0.0, %v529
      %531 = vmatmul.f32.gmra.mxu0 %v404
      %v532 = vpop.f32.mrf.mxu0
      %v533 = vadd.f32 0.0, %v532
      %534 = vmatmul.f32.gmra.mxu0 %v407
      %v535 = vpop.f32.mrf.mxu0
      %v536 = vadd.f32 0.0, %v535
      %537 = vmatmul.f32.gmra.mxu0 %v410
      %v538 = vpop.f32.mrf.mxu0
      %v539 = vadd.f32 0.0, %v538
      %540 = vmatmul.f32.gmra.mxu0 %v413
      %v541 = vpop.f32.mrf.mxu0
      %v542 = vadd.f32 0.0, %v541
      %543 = vmatmul.f32.gmra.mxu0 %v416
      %v544 = vpop.f32.mrf.mxu0
      %v545 = vadd.f32 0.0, %v544
      %546 = vdwg.mxu0
      %v548 = vsel %vm309, %v234, 0
      %v551 = vsel %vm309, %v235, 0
      %v554 = vsel %vm309, %v236, 0
      %v557 = vsel %vm309, %v237, 0
      %v560 = vsel %vm309, %v238, 0
      %v563 = vsel %vm309, %v239, 0
      %v566 = vsel %vm309, %v240, 0
      %v569 = vsel %vm309, %v241, 0
      %v572 = vsel %vm309, %v242, 0
      %v575 = vsel %vm309, %v243, 0
      %v578 = vsel %vm309, %v244, 0
      %v581 = vsel %vm309, %v245, 0
      %v584 = vsel %vm309, %v246, 0
      %v587 = vsel %vm309, %v247, 0
      %v590 = vsel %vm309, %v248, 0
      %v593 = vsel %vm309, %v249, 0
      %v596 = vsel %vm309, %v250, 0
      %v599 = vsel %vm309, %v251, 0
      %v602 = vsel %vm309, %v252, 0
      %v605 = vsel %vm309, %v253, 0
      %v608 = vsel %vm309, %v254, 0
      %v611 = vsel %vm309, %v255, 0
      %v614 = vsel %vm309, %v256, 0
      %v617 = vsel %vm309, %v257, 0
      %v620 = vsel %vm309, %v258, 0
      %v623 = vsel %vm309, %v259, 0
      %v626 = vsel %vm309, %v260, 0
      %v629 = vsel %vm309, %v261, 0
      %v632 = vsel %vm309, %v262, 0
      %v635 = vsel %vm309, %v263, 0
      %v638 = vsel %vm309, %v264, 0
      %v641 = vsel %vm309, %v265, 0
      %v644 = vsel %vm309, %v266, 0
      %v647 = vsel %vm309, %v267, 0
      %v650 = vsel %vm309, %v268, 0
      %v653 = vsel %vm309, %v269, 0
      %v656 = vsel %vm418, %v270, 0
      %658 = vmatpush.msra.mxu0 0.0
      %659 = vmatpush.msra.mxu0 0.0
      %660 = vmatpush.msra.mxu0 0.0
      %661 = vmatpush.msra.mxu0 0.0
      %662 = vmatpush.msra.mxu0 0.0
      %663 = vmatpush.msra.mxu0 0.0
      %664 = vmatpush.msra.mxu0 0.0
      %665 = vmatpush.msra.mxu0 0.0
      %666 = vmatpush.msra.mxu0 0.0
      %667 = vmatpush.msra.mxu0 0.0
      %668 = vmatpush.msra.mxu0 0.0
      %669 = vmatpush.msra.mxu0 0.0
      %670 = vmatpush.msra.mxu0 0.0
      %671 = vmatpush.msra.mxu0 0.0
      %672 = vmatpush.msra.mxu0 0.0
      %673 = vmatpush.msra.mxu0 %v656
      %674 = vmatmul.f32.gmra.mxu0 %v548
      %v675 = vpop.f32.mrf.mxu0
      %v676 = vadd.f32 %v440, %v675
      %677 = vmatmul.f32.gmra.mxu0 %v551
      %v678 = vpop.f32.mrf.mxu0
      %v679 = vadd.f32 %v443, %v678
      %680 = vmatmul.f32.gmra.mxu0 %v554
      %v681 = vpop.f32.mrf.mxu0
      %v682 = vadd.f32 %v446, %v681
      %683 = vmatmul.f32.gmra.mxu0 %v557
      %v684 = vpop.f32.mrf.mxu0
      %v685 = vadd.f32 %v449, %v684
      %686 = vmatmul.f32.gmra.mxu0 %v560
      %v687 = vpop.f32.mrf.mxu0
      %v688 = vadd.f32 %v452, %v687
      %689 = vmatmul.f32.gmra.mxu0 %v563
      %v690 = vpop.f32.mrf.mxu0
      %v691 = vadd.f32 %v455, %v690
      %692 = vmatmul.f32.gmra.mxu0 %v566
      %v693 = vpop.f32.mrf.mxu0
      %v694 = vadd.f32 %v458, %v693
      %695 = vmatmul.f32.gmra.mxu0 %v569
      %v696 = vpop.f32.mrf.mxu0
      %v697 = vadd.f32 %v461, %v696
      %698 = vmatmul.f32.gmra.mxu0 %v572
      %v699 = vpop.f32.mrf.mxu0
      %v700 = vadd.f32 %v464, %v699
      %701 = vmatmul.f32.gmra.mxu0 %v575
      %v702 = vpop.f32.mrf.mxu0
      %v703 = vadd.f32 %v467, %v702
      %704 = vmatmul.f32.gmra.mxu0 %v578
      %v705 = vpop.f32.mrf.mxu0
      %v706 = vadd.f32 %v470, %v705
      %707 = vmatmul.f32.gmra.mxu0 %v581
      %v708 = vpop.f32.mrf.mxu0
      %v709 = vadd.f32 %v473, %v708
      %710 = vmatmul.f32.gmra.mxu0 %v584
      %v711 = vpop.f32.mrf.mxu0
      %v712 = vadd.f32 %v476, %v711
      %713 = vmatmul.f32.gmra.mxu0 %v587
      %v714 = vpop.f32.mrf.mxu0
      %v715 = vadd.f32 %v479, %v714
      %716 = vmatmul.f32.gmra.mxu0 %v590
      %v717 = vpop.f32.mrf.mxu0
      %v718 = vadd.f32 %v482, %v717
      %719 = vmatmul.f32.gmra.mxu0 %v593
      %v720 = vpop.f32.mrf.mxu0
      %v721 = vadd.f32 %v485, %v720
      %722 = vmatmul.f32.gmra.mxu0 %v596
      %v723 = vpop.f32.mrf.mxu0
      %v724 = vadd.f32 %v488, %v723
      %725 = vmatmul.f32.gmra.mxu0 %v599
      %v726 = vpop.f32.mrf.mxu0
      %v727 = vadd.f32 %v491, %v726
      %728 = vmatmul.f32.gmra.mxu0 %v602
      %v729 = vpop.f32.mrf.mxu0
      %v730 = vadd.f32 %v494, %v729
      %731 = vmatmul.f32.gmra.mxu0 %v605
      %v732 = vpop.f32.mrf.mxu0
      %v733 = vadd.f32 %v497, %v732
      %734 = vmatmul.f32.gmra.mxu0 %v608
      %v735 = vpop.f32.mrf.mxu0
      %v736 = vadd.f32 %v500, %v735
      %737 = vmatmul.f32.gmra.mxu0 %v611
      %v738 = vpop.f32.mrf.mxu0
      %v739 = vadd.f32 %v503, %v738
      %740 = vmatmul.f32.gmra.mxu0 %v614
      %v741 = vpop.f32.mrf.mxu0
      %v742 = vadd.f32 %v506, %v741
      %743 = vmatmul.f32.gmra.mxu0 %v617
      %v744 = vpop.f32.mrf.mxu0
      %v745 = vadd.f32 %v509, %v744
      %746 = vmatmul.f32.gmra.mxu0 %v620
      %v747 = vpop.f32.mrf.mxu0
      %v748 = vadd.f32 %v512, %v747
      %749 = vmatmul.f32.gmra.mxu0 %v623
      %v750 = vpop.f32.mrf.mxu0
      %v751 = vadd.f32 %v515, %v750
      %752 = vmatmul.f32.gmra.mxu0 %v626
      %v753 = vpop.f32.mrf.mxu0
      %v754 = vadd.f32 %v518, %v753
      %755 = vmatmul.f32.gmra.mxu0 %v629
      %v756 = vpop.f32.mrf.mxu0
      %v757 = vadd.f32 %v521, %v756
      %758 = vmatmul.f32.gmra.mxu0 %v632
      %v759 = vpop.f32.mrf.mxu0
      %v760 = vadd.f32 %v524, %v759
      %761 = vmatmul.f32.gmra.mxu0 %v635
      %v762 = vpop.f32.mrf.mxu0
      %v763 = vadd.f32 %v527, %v762
      %764 = vmatmul.f32.gmra.mxu0 %v638
      %v765 = vpop.f32.mrf.mxu0
      %v766 = vadd.f32 %v530, %v765
      %767 = vmatmul.f32.gmra.mxu0 %v641
      %v768 = vpop.f32.mrf.mxu0
      %v769 = vadd.f32 %v533, %v768
      %770 = vmatmul.f32.gmra.mxu0 %v644
      %v771 = vpop.f32.mrf.mxu0
      %v772 = vadd.f32 %v536, %v771
      %773 = vmatmul.f32.gmra.mxu0 %v647
      %v774 = vpop.f32.mrf.mxu0
      %v775 = vadd.f32 %v539, %v774
      %776 = vmatmul.f32.gmra.mxu0 %v650
      %v777 = vpop.f32.mrf.mxu0
      %v778 = vadd.f32 %v542, %v777
      %779 = vmatmul.f32.gmra.mxu0 %v653
      %v780 = vpop.f32.mrf.mxu0
      %v781 = vadd.f32 %v545, %v780
      %782 = vdwg.mxu0
      %v783 = vld [vmem:[%s192 + $0x2] sm:$0xff]
      %v784 = vld [vmem:[%s192 + $0xa] sm:$0xff]
      %v785 = vld [vmem:[%s192 + $0x12] sm:$0xff]
      %v786 = vld [vmem:[%s192 + $0x1a] sm:$0xff]
      %v787 = vld [vmem:[%s192 + $0x22] sm:$0xff]
      %v788 = vld [vmem:[%s192 + $0x2a] sm:$0xff]
      %v789 = vld [vmem:[%s192 + $0x32] sm:$0xff]
      %v790 = vld [vmem:[%s192 + $0x3a] sm:$0xff]
      %v791 = vld [vmem:[%s192 + $0x42] sm:$0xff]
      %v792 = vld [vmem:[%s192 + $0x4a] sm:$0xff]
      %v793 = vld [vmem:[%s192 + $0x52] sm:$0xff]
      %v794 = vld [vmem:[%s192 + $0x5a] sm:$0xff]
      %v795 = vld [vmem:[%s192 + $0x62] sm:$0xff]
      %v796 = vld [vmem:[%s192 + $0x6a] sm:$0xff]
      %v797 = vld [vmem:[%s192 + $0x72] sm:$0xff]
      %v798 = vld [vmem:[%s192 + $0x7a] sm:$0xff]
      %v799 = vld [vmem:[%s192 + $0x82] sm:$0xff]
      %v800 = vld [vmem:[%s192 + $0x8a] sm:$0xff]
      %v801 = vld [vmem:[%s192 + $0x92] sm:$0xff]
      %v802 = vld [vmem:[%s192 + $0x9a] sm:$0xff]
      %v803 = vld [vmem:[%s192 + $0xa2] sm:$0xff]
      %v804 = vld [vmem:[%s192 + $0xaa] sm:$0xff]
      %v805 = vld [vmem:[%s192 + $0xb2] sm:$0xff]
      %v806 = vld [vmem:[%s192 + $0xba] sm:$0xff]
      %v807 = vld [vmem:[%s192 + $0xc2] sm:$0xff]
      %v808 = vld [vmem:[%s192 + $0xca] sm:$0xff]
      %v809 = vld [vmem:[%s192 + $0xd2] sm:$0xff]
      %v810 = vld [vmem:[%s192 + $0xda] sm:$0xff]
      %v811 = vld [vmem:[%s192 + $0xe2] sm:$0xff]
      %v812 = vld [vmem:[%s192 + $0xea] sm:$0xff]
      %v813 = vld [vmem:[%s192 + $0xf2] sm:$0xff]
      %v814 = vld [vmem:[%s192 + $0xfa] sm:$0xff]
      %v815 = vld [vmem:[%s192 + $0x102] sm:$0xff]
      %v816 = vld [vmem:[%s192 + $0x10a] sm:$0xff]
      %v817 = vld [vmem:[%s192 + $0x112] sm:$0xff]
      %v818 = vld [vmem:[%s192 + $0x11a] sm:$0xff]
      %s819 = scalar_lea.vmem %s2, 8
      %v820 = vld [vmem:[%s819] sm:$0xf]
      %v822 = vsel %vm309, %v783, 0
      %v825 = vsel %vm309, %v784, 0
      %v828 = vsel %vm309, %v785, 0
      %v831 = vsel %vm309, %v786, 0
      %v834 = vsel %vm309, %v787, 0
      %v837 = vsel %vm309, %v788, 0
      %v840 = vsel %vm309, %v789, 0
      %v843 = vsel %vm309, %v790, 0
      %v846 = vsel %vm309, %v791, 0
      %v849 = vsel %vm309, %v792, 0
      %v852 = vsel %vm309, %v793, 0
      %v855 = vsel %vm309, %v794, 0
      %v858 = vsel %vm309, %v795, 0
      %v861 = vsel %vm309, %v796, 0
      %v864 = vsel %vm309, %v797, 0
      %v867 = vsel %vm309, %v798, 0
      %v870 = vsel %vm309, %v799, 0
      %v873 = vsel %vm309, %v800, 0
      %v876 = vsel %vm309, %v801, 0
      %v879 = vsel %vm309, %v802, 0
      %v882 = vsel %vm309, %v803, 0
      %v885 = vsel %vm309, %v804, 0
      %v888 = vsel %vm309, %v805, 0
      %v891 = vsel %vm309, %v806, 0
      %v894 = vsel %vm309, %v807, 0
      %v897 = vsel %vm309, %v808, 0
      %v900 = vsel %vm309, %v809, 0
      %v903 = vsel %vm309, %v810, 0
      %v906 = vsel %vm309, %v811, 0
      %v909 = vsel %vm309, %v812, 0
      %v912 = vsel %vm309, %v813, 0
      %v915 = vsel %vm309, %v814, 0
      %v918 = vsel %vm309, %v815, 0
      %v921 = vsel %vm309, %v816, 0
      %v924 = vsel %vm309, %v817, 0
      %v927 = vsel %vm309, %v818, 0
      %v930 = vsel %vm418, %v820, 0
      %932 = vmatpush.msra.mxu0 0.0
      %933 = vmatpush.msra.mxu0 0.0
      %934 = vmatpush.msra.mxu0 0.0
      %935 = vmatpush.msra.mxu0 0.0
      %936 = vmatpush.msra.mxu0 0.0
      %937 = vmatpush.msra.mxu0 0.0
      %938 = vmatpush.msra.mxu0 0.0
      %939 = vmatpush.msra.mxu0 0.0
      %940 = vmatpush.msra.mxu0 0.0
      %941 = vmatpush.msra.mxu0 0.0
      %942 = vmatpush.msra.mxu0 0.0
      %943 = vmatpush.msra.mxu0 0.0
      %944 = vmatpush.msra.mxu0 0.0
      %945 = vmatpush.msra.mxu0 0.0
      %946 = vmatpush.msra.mxu0 0.0
      %947 = vmatpush.msra.mxu0 %v930
      %948 = vmatmul.f32.gmra.mxu0 %v822
      %v949 = vpop.f32.mrf.mxu0
      %v950 = vadd.f32 0.0, %v949
      %951 = vmatmul.f32.gmra.mxu0 %v825
      %v952 = vpop.f32.mrf.mxu0
      %v953 = vadd.f32 0.0, %v952
      %954 = vmatmul.f32.gmra.mxu0 %v828
      %v955 = vpop.f32.mrf.mxu0
      %v956 = vadd.f32 0.0, %v955
      %957 = vmatmul.f32.gmra.mxu0 %v831
      %v958 = vpop.f32.mrf.mxu0
      %v959 = vadd.f32 0.0, %v958
      %960 = vmatmul.f32.gmra.mxu0 %v834
      %v961 = vpop.f32.mrf.mxu0
      %v962 = vadd.f32 0.0, %v961
      %963 = vmatmul.f32.gmra.mxu0 %v837
      %v964 = vpop.f32.mrf.mxu0
      %v965 = vadd.f32 0.0, %v964
      %966 = vmatmul.f32.gmra.mxu0 %v840
      %v967 = vpop.f32.mrf.mxu0
      %v968 = vadd.f32 0.0, %v967
      %969 = vmatmul.f32.gmra.mxu0 %v843
      %v970 = vpop.f32.mrf.mxu0
      %v971 = vadd.f32 0.0, %v970
      %972 = vmatmul.f32.gmra.mxu0 %v846
      %v973 = vpop.f32.mrf.mxu0
      %v974 = vadd.f32 0.0, %v973
      %975 = vmatmul.f32.gmra.mxu0 %v849
      %v976 = vpop.f32.mrf.mxu0
      %v977 = vadd.f32 0.0, %v976
      %978 = vmatmul.f32.gmra.mxu0 %v852
      %v979 = vpop.f32.mrf.mxu0
      %v980 = vadd.f32 0.0, %v979
      %981 = vmatmul.f32.gmra.mxu0 %v855
      %v982 = vpop.f32.mrf.mxu0
      %v983 = vadd.f32 0.0, %v982
      %984 = vmatmul.f32.gmra.mxu0 %v858
      %v985 = vpop.f32.mrf.mxu0
      %v986 = vadd.f32 0.0, %v985
      %987 = vmatmul.f32.gmra.mxu0 %v861
      %v988 = vpop.f32.mrf.mxu0
      %v989 = vadd.f32 0.0, %v988
      %990 = vmatmul.f32.gmra.mxu0 %v864
      %v991 = vpop.f32.mrf.mxu0
      %v992 = vadd.f32 0.0, %v991
      %993 = vmatmul.f32.gmra.mxu0 %v867
      %v994 = vpop.f32.mrf.mxu0
      %v995 = vadd.f32 0.0, %v994
      %996 = vmatmul.f32.gmra.mxu0 %v870
      %v997 = vpop.f32.mrf.mxu0
      %v998 = vadd.f32 0.0, %v997
      %999 = vmatmul.f32.gmra.mxu0 %v873
      %v1000 = vpop.f32.mrf.mxu0
      %v1001 = vadd.f32 0.0, %v1000
      %1002 = vmatmul.f32.gmra.mxu0 %v876
      %v1003 = vpop.f32.mrf.mxu0
      %v1004 = vadd.f32 0.0, %v1003
      %1005 = vmatmul.f32.gmra.mxu0 %v879
      %v1006 = vpop.f32.mrf.mxu0
      %v1007 = vadd.f32 0.0, %v1006
      %1008 = vmatmul.f32.gmra.mxu0 %v882
      %v1009 = vpop.f32.mrf.mxu0
      %v1010 = vadd.f32 0.0, %v1009
      %1011 = vmatmul.f32.gmra.mxu0 %v885
      %v1012 = vpop.f32.mrf.mxu0
      %v1013 = vadd.f32 0.0, %v1012
      %1014 = vmatmul.f32.gmra.mxu0 %v888
      %v1015 = vpop.f32.mrf.mxu0
      %v1016 = vadd.f32 0.0, %v1015
      %1017 = vmatmul.f32.gmra.mxu0 %v891
      %v1018 = vpop.f32.mrf.mxu0
      %v1019 = vadd.f32 0.0, %v1018
      %1020 = vmatmul.f32.gmra.mxu0 %v894
      %v1021 = vpop.f32.mrf.mxu0
      %v1022 = vadd.f32 0.0, %v1021
      %1023 = vmatmul.f32.gmra.mxu0 %v897
      %v1024 = vpop.f32.mrf.mxu0
      %v1025 = vadd.f32 0.0, %v1024
      %1026 = vmatmul.f32.gmra.mxu0 %v900
      %v1027 = vpop.f32.mrf.mxu0
      %v1028 = vadd.f32 0.0, %v1027
      %1029 = vmatmul.f32.gmra.mxu0 %v903
      %v1030 = vpop.f32.mrf.mxu0
      %v1031 = vadd.f32 0.0, %v1030
      %1032 = vmatmul.f32.gmra.mxu0 %v906
      %v1033 = vpop.f32.mrf.mxu0
      %v1034 = vadd.f32 0.0, %v1033
      %1035 = vmatmul.f32.gmra.mxu0 %v909
      %v1036 = vpop.f32.mrf.mxu0
      %v1037 = vadd.f32 0.0, %v1036
      %1038 = vmatmul.f32.gmra.mxu0 %v912
      %v1039 = vpop.f32.mrf.mxu0
      %v1040 = vadd.f32 0.0, %v1039
      %1041 = vmatmul.f32.gmra.mxu0 %v915
      %v1042 = vpop.f32.mrf.mxu0
      %v1043 = vadd.f32 0.0, %v1042
      %1044 = vmatmul.f32.gmra.mxu0 %v918
      %v1045 = vpop.f32.mrf.mxu0
      %v1046 = vadd.f32 0.0, %v1045
      %1047 = vmatmul.f32.gmra.mxu0 %v921
      %v1048 = vpop.f32.mrf.mxu0
      %v1049 = vadd.f32 0.0, %v1048
      %1050 = vmatmul.f32.gmra.mxu0 %v924
      %v1051 = vpop.f32.mrf.mxu0
      %v1052 = vadd.f32 0.0, %v1051
      %1053 = vmatmul.f32.gmra.mxu0 %v927
      %v1054 = vpop.f32.mrf.mxu0
      %v1055 = vadd.f32 0.0, %v1054
      %1056 = vdwg.mxu0
      %v1057 = vadd.f32 %v676, %v950
      %v1058 = vadd.f32 %v679, %v953
      %v1059 = vadd.f32 %v682, %v956
      %v1060 = vadd.f32 %v685, %v959
      %v1061 = vadd.f32 %v688, %v962
      %v1062 = vadd.f32 %v691, %v965
      %v1063 = vadd.f32 %v694, %v968
      %v1064 = vadd.f32 %v697, %v971
      %v1065 = vadd.f32 %v700, %v974
      %v1066 = vadd.f32 %v703, %v977
      %v1067 = vadd.f32 %v706, %v980
      %v1068 = vadd.f32 %v709, %v983
      %v1069 = vadd.f32 %v712, %v986
      %v1070 = vadd.f32 %v715, %v989
      %v1071 = vadd.f32 %v718, %v992
      %v1072 = vadd.f32 %v721, %v995
      %v1073 = vadd.f32 %v724, %v998
      %v1074 = vadd.f32 %v727, %v1001
      %v1075 = vadd.f32 %v730, %v1004
      %v1076 = vadd.f32 %v733, %v1007
      %v1077 = vadd.f32 %v736, %v1010
      %v1078 = vadd.f32 %v739, %v1013
      %v1079 = vadd.f32 %v742, %v1016
      %v1080 = vadd.f32 %v745, %v1019
      %v1081 = vadd.f32 %v748, %v1022
      %v1082 = vadd.f32 %v751, %v1025
      %v1083 = vadd.f32 %v754, %v1028
      %v1084 = vadd.f32 %v757, %v1031
      %v1085 = vadd.f32 %v760, %v1034
      %v1086 = vadd.f32 %v763, %v1037
      %v1087 = vadd.f32 %v766, %v1040
      %v1088 = vadd.f32 %v769, %v1043
      %v1089 = vadd.f32 %v772, %v1046
      %v1090 = vadd.f32 %v775, %v1049
      %v1091 = vadd.f32 %v778, %v1052
      %v1092 = vadd.f32 %v781, %v1055
      %v1093 = vld [vmem:[%s192 + $0x12] sm:$0xff]
      %v1094 = vld [vmem:[%s192 + $0x1a] sm:$0xff]
      %v1095 = vld [vmem:[%s192 + $0x22] sm:$0xff]
      %v1096 = vld [vmem:[%s192 + $0x2a] sm:$0xff]
      %v1097 = vld [vmem:[%s192 + $0x32] sm:$0xff]
      %v1098 = vld [vmem:[%s192 + $0x3a] sm:$0xff]
      %v1099 = vld [vmem:[%s192 + $0x42] sm:$0xff]
      %v1100 = vld [vmem:[%s192 + $0x4a] sm:$0xff]
      %v1101 = vld [vmem:[%s192 + $0x52] sm:$0xff]
      %v1102 = vld [vmem:[%s192 + $0x5a] sm:$0xff]
      %v1103 = vld [vmem:[%s192 + $0x62] sm:$0xff]
      %v1104 = vld [vmem:[%s192 + $0x6a] sm:$0xff]
      %v1105 = vld [vmem:[%s192 + $0x72] sm:$0xff]
      %v1106 = vld [vmem:[%s192 + $0x7a] sm:$0xff]
      %v1107 = vld [vmem:[%s192 + $0x82] sm:$0xff]
      %v1108 = vld [vmem:[%s192 + $0x8a] sm:$0xff]
      %v1109 = vld [vmem:[%s192 + $0x92] sm:$0xff]
      %v1110 = vld [vmem:[%s192 + $0x9a] sm:$0xff]
      %v1111 = vld [vmem:[%s192 + $0xa2] sm:$0xff]
      %v1112 = vld [vmem:[%s192 + $0xaa] sm:$0xff]
      %v1113 = vld [vmem:[%s192 + $0xb2] sm:$0xff]
      %v1114 = vld [vmem:[%s192 + $0xba] sm:$0xff]
      %v1115 = vld [vmem:[%s192 + $0xc2] sm:$0xff]
      %v1116 = vld [vmem:[%s192 + $0xca] sm:$0xff]
      %v1117 = vld [vmem:[%s192 + $0xd2] sm:$0xff]
      %v1118 = vld [vmem:[%s192 + $0xda] sm:$0xff]
      %v1119 = vld [vmem:[%s192 + $0xe2] sm:$0xff]
      %v1120 = vld [vmem:[%s192 + $0xea] sm:$0xff]
      %v1121 = vld [vmem:[%s192 + $0xf2] sm:$0xff]
      %v1122 = vld [vmem:[%s192 + $0xfa] sm:$0xff]
      %v1123 = vld [vmem:[%s192 + $0x102] sm:$0xff]
      %v1124 = vld [vmem:[%s192 + $0x10a] sm:$0xff]
      %v1125 = vld [vmem:[%s192 + $0x112] sm:$0xff]
      %v1126 = vld [vmem:[%s192 + $0x11a] sm:$0xff]
      %v1127 = vld [vmem:[%s192 + $0x122] sm:$0xff]
      %v1128 = vld [vmem:[%s192 + $0x12a] sm:$0xff]
      %s1129 = scalar_lea.vmem %s2, 12
      %v1130 = vld [vmem:[%s1129] sm:$0xf]
      %v1132 = vsel %vm309, %v1093, 0
      %v1135 = vsel %vm309, %v1094, 0
      %v1138 = vsel %vm309, %v1095, 0
      %v1141 = vsel %vm309, %v1096, 0
      %v1144 = vsel %vm309, %v1097, 0
      %v1147 = vsel %vm309, %v1098, 0
      %v1150 = vsel %vm309, %v1099, 0
      %v1153 = vsel %vm309, %v1100, 0
      %v1156 = vsel %vm309, %v1101, 0
      %v1159 = vsel %vm309, %v1102, 0
      %v1162 = vsel %vm309, %v1103, 0
      %v1165 = vsel %vm309, %v1104, 0
      %v1168 = vsel %vm309, %v1105, 0
      %v1171 = vsel %vm309, %v1106, 0
      %v1174 = vsel %vm309, %v1107, 0
      %v1177 = vsel %vm309, %v1108, 0
      %v1180 = vsel %vm309, %v1109, 0
      %v1183 = vsel %vm309, %v1110, 0
      %v1186 = vsel %vm309, %v1111, 0
      %v1189 = vsel %vm309, %v1112, 0
      %v1192 = vsel %vm309, %v1113, 0
      %v1195 = vsel %vm309, %v1114, 0
      %v1198 = vsel %vm309, %v1115, 0
      %v1201 = vsel %vm309, %v1116, 0
      %v1204 = vsel %vm309, %v1117, 0
      %v1207 = vsel %vm309, %v1118, 0
      %v1210 = vsel %vm309, %v1119, 0
      %v1213 = vsel %vm309, %v1120, 0
      %v1216 = vsel %vm309, %v1121, 0
      %v1219 = vsel %vm309, %v1122, 0
      %v1222 = vsel %vm309, %v1123, 0
      %v1225 = vsel %vm309, %v1124, 0
      %v1228 = vsel %vm309, %v1125, 0
      %v1231 = vsel %vm309, %v1126, 0
      %v1234 = vsel %vm309, %v1127, 0
      %v1237 = vsel %vm309, %v1128, 0
      %v1240 = vsel %vm418, %v1130, 0
      %1242 = vmatpush.msra.mxu0 0.0
      %1243 = vmatpush.msra.mxu0 0.0
      %1244 = vmatpush.msra.mxu0 0.0
      %1245 = vmatpush.msra.mxu0 0.0
      %1246 = vmatpush.msra.mxu0 0.0
      %1247 = vmatpush.msra.mxu0 0.0
      %1248 = vmatpush.msra.mxu0 0.0
      %1249 = vmatpush.msra.mxu0 0.0
      %1250 = vmatpush.msra.mxu0 0.0
      %1251 = vmatpush.msra.mxu0 0.0
      %1252 = vmatpush.msra.mxu0 0.0
      %1253 = vmatpush.msra.mxu0 0.0
      %1254 = vmatpush.msra.mxu0 0.0
      %1255 = vmatpush.msra.mxu0 0.0
      %1256 = vmatpush.msra.mxu0 0.0
      %1257 = vmatpush.msra.mxu0 %v1240
      %1258 = vmatmul.f32.gmra.mxu0 %v1132
      %v1259 = vpop.f32.mrf.mxu0
      %v1260 = vadd.f32 0.0, %v1259
      %1261 = vmatmul.f32.gmra.mxu0 %v1135
      %v1262 = vpop.f32.mrf.mxu0
      %v1263 = vadd.f32 0.0, %v1262
      %1264 = vmatmul.f32.gmra.mxu0 %v1138
      %v1265 = vpop.f32.mrf.mxu0
      %v1266 = vadd.f32 0.0, %v1265
      %1267 = vmatmul.f32.gmra.mxu0 %v1141
      %v1268 = vpop.f32.mrf.mxu0
      %v1269 = vadd.f32 0.0, %v1268
      %1270 = vmatmul.f32.gmra.mxu0 %v1144
      %v1271 = vpop.f32.mrf.mxu0
      %v1272 = vadd.f32 0.0, %v1271
      %1273 = vmatmul.f32.gmra.mxu0 %v1147
      %v1274 = vpop.f32.mrf.mxu0
      %v1275 = vadd.f32 0.0, %v1274
      %1276 = vmatmul.f32.gmra.mxu0 %v1150
      %v1277 = vpop.f32.mrf.mxu0
      %v1278 = vadd.f32 0.0, %v1277
      %1279 = vmatmul.f32.gmra.mxu0 %v1153
      %v1280 = vpop.f32.mrf.mxu0
      %v1281 = vadd.f32 0.0, %v1280
      %1282 = vmatmul.f32.gmra.mxu0 %v1156
      %v1283 = vpop.f32.mrf.mxu0
      %v1284 = vadd.f32 0.0, %v1283
      %1285 = vmatmul.f32.gmra.mxu0 %v1159
      %v1286 = vpop.f32.mrf.mxu0
      %v1287 = vadd.f32 0.0, %v1286
      %1288 = vmatmul.f32.gmra.mxu0 %v1162
      %v1289 = vpop.f32.mrf.mxu0
      %v1290 = vadd.f32 0.0, %v1289
      %1291 = vmatmul.f32.gmra.mxu0 %v1165
      %v1292 = vpop.f32.mrf.mxu0
      %v1293 = vadd.f32 0.0, %v1292
      %1294 = vmatmul.f32.gmra.mxu0 %v1168
      %v1295 = vpop.f32.mrf.mxu0
      %v1296 = vadd.f32 0.0, %v1295
      %1297 = vmatmul.f32.gmra.mxu0 %v1171
      %v1298 = vpop.f32.mrf.mxu0
      %v1299 = vadd.f32 0.0, %v1298
      %1300 = vmatmul.f32.gmra.mxu0 %v1174
      %v1301 = vpop.f32.mrf.mxu0
      %v1302 = vadd.f32 0.0, %v1301
      %1303 = vmatmul.f32.gmra.mxu0 %v1177
      %v1304 = vpop.f32.mrf.mxu0
      %v1305 = vadd.f32 0.0, %v1304
      %1306 = vmatmul.f32.gmra.mxu0 %v1180
      %v1307 = vpop.f32.mrf.mxu0
      %v1308 = vadd.f32 0.0, %v1307
      %1309 = vmatmul.f32.gmra.mxu0 %v1183
      %v1310 = vpop.f32.mrf.mxu0
      %v1311 = vadd.f32 0.0, %v1310
      %1312 = vmatmul.f32.gmra.mxu0 %v1186
      %v1313 = vpop.f32.mrf.mxu0
      %v1314 = vadd.f32 0.0, %v1313
      %1315 = vmatmul.f32.gmra.mxu0 %v1189
      %v1316 = vpop.f32.mrf.mxu0
      %v1317 = vadd.f32 0.0, %v1316
      %1318 = vmatmul.f32.gmra.mxu0 %v1192
      %v1319 = vpop.f32.mrf.mxu0
      %v1320 = vadd.f32 0.0, %v1319
      %1321 = vmatmul.f32.gmra.mxu0 %v1195
      %v1322 = vpop.f32.mrf.mxu0
      %v1323 = vadd.f32 0.0, %v1322
      %1324 = vmatmul.f32.gmra.mxu0 %v1198
      %v1325 = vpop.f32.mrf.mxu0
      %v1326 = vadd.f32 0.0, %v1325
      %1327 = vmatmul.f32.gmra.mxu0 %v1201
      %v1328 = vpop.f32.mrf.mxu0
      %v1329 = vadd.f32 0.0, %v1328
      %1330 = vmatmul.f32.gmra.mxu0 %v1204
      %v1331 = vpop.f32.mrf.mxu0
      %v1332 = vadd.f32 0.0, %v1331
      %1333 = vmatmul.f32.gmra.mxu0 %v1207
      %v1334 = vpop.f32.mrf.mxu0
      %v1335 = vadd.f32 0.0, %v1334
      %1336 = vmatmul.f32.gmra.mxu0 %v1210
      %v1337 = vpop.f32.mrf.mxu0
      %v1338 = vadd.f32 0.0, %v1337
      %1339 = vmatmul.f32.gmra.mxu0 %v1213
      %v1340 = vpop.f32.mrf.mxu0
      %v1341 = vadd.f32 0.0, %v1340
      %1342 = vmatmul.f32.gmra.mxu0 %v1216
      %v1343 = vpop.f32.mrf.mxu0
      %v1344 = vadd.f32 0.0, %v1343
      %1345 = vmatmul.f32.gmra.mxu0 %v1219
      %v1346 = vpop.f32.mrf.mxu0
      %v1347 = vadd.f32 0.0, %v1346
      %1348 = vmatmul.f32.gmra.mxu0 %v1222
      %v1349 = vpop.f32.mrf.mxu0
      %v1350 = vadd.f32 0.0, %v1349
      %1351 = vmatmul.f32.gmra.mxu0 %v1225
      %v1352 = vpop.f32.mrf.mxu0
      %v1353 = vadd.f32 0.0, %v1352
      %1354 = vmatmul.f32.gmra.mxu0 %v1228
      %v1355 = vpop.f32.mrf.mxu0
      %v1356 = vadd.f32 0.0, %v1355
      %1357 = vmatmul.f32.gmra.mxu0 %v1231
      %v1358 = vpop.f32.mrf.mxu0
      %v1359 = vadd.f32 0.0, %v1358
      %1360 = vmatmul.f32.gmra.mxu0 %v1234
      %v1361 = vpop.f32.mrf.mxu0
      %v1362 = vadd.f32 0.0, %v1361
      %1363 = vmatmul.f32.gmra.mxu0 %v1237
      %v1364 = vpop.f32.mrf.mxu0
      %v1365 = vadd.f32 0.0, %v1364
      %1366 = vdwg.mxu0
      %v1367 = vadd.f32 %v1057, %v1260
      %v1368 = vadd.f32 %v1058, %v1263
      %v1369 = vadd.f32 %v1059, %v1266
      %v1370 = vadd.f32 %v1060, %v1269
      %v1371 = vadd.f32 %v1061, %v1272
      %v1372 = vadd.f32 %v1062, %v1275
      %v1373 = vadd.f32 %v1063, %v1278
      %v1374 = vadd.f32 %v1064, %v1281
      %v1375 = vadd.f32 %v1065, %v1284
      %v1376 = vadd.f32 %v1066, %v1287
      %v1377 = vadd.f32 %v1067, %v1290
      %v1378 = vadd.f32 %v1068, %v1293
      %v1379 = vadd.f32 %v1069, %v1296
      %v1380 = vadd.f32 %v1070, %v1299
      %v1381 = vadd.f32 %v1071, %v1302
      %v1382 = vadd.f32 %v1072, %v1305
      %v1383 = vadd.f32 %v1073, %v1308
      %v1384 = vadd.f32 %v1074, %v1311
      %v1385 = vadd.f32 %v1075, %v1314
      %v1386 = vadd.f32 %v1076, %v1317
      %v1387 = vadd.f32 %v1077, %v1320
      %v1388 = vadd.f32 %v1078, %v1323
      %v1389 = vadd.f32 %v1079, %v1326
      %v1390 = vadd.f32 %v1080, %v1329
      %v1391 = vadd.f32 %v1081, %v1332
      %v1392 = vadd.f32 %v1082, %v1335
      %v1393 = vadd.f32 %v1083, %v1338
      %v1394 = vadd.f32 %v1084, %v1341
      %v1395 = vadd.f32 %v1085, %v1344
      %v1396 = vadd.f32 %v1086, %v1347
      %v1397 = vadd.f32 %v1087, %v1350
      %v1398 = vadd.f32 %v1088, %v1353
      %v1399 = vadd.f32 %v1089, %v1356
      %v1400 = vadd.f32 %v1090, %v1359
      %v1401 = vadd.f32 %v1091, %v1362
      %v1402 = vadd.f32 %v1092, %v1365
      %v1403 = vld [vmem:[%s192 + $0x13] sm:$0xff]
      %v1404 = vld [vmem:[%s192 + $0x1b] sm:$0xff]
      %v1405 = vld [vmem:[%s192 + $0x23] sm:$0xff]
      %v1406 = vld [vmem:[%s192 + $0x2b] sm:$0xff]
      %v1407 = vld [vmem:[%s192 + $0x33] sm:$0xff]
      %v1408 = vld [vmem:[%s192 + $0x3b] sm:$0xff]
      %v1409 = vld [vmem:[%s192 + $0x43] sm:$0xff]
      %v1410 = vld [vmem:[%s192 + $0x4b] sm:$0xff]
      %v1411 = vld [vmem:[%s192 + $0x53] sm:$0xff]
      %v1412 = vld [vmem:[%s192 + $0x5b] sm:$0xff]
      %v1413 = vld [vmem:[%s192 + $0x63] sm:$0xff]
      %v1414 = vld [vmem:[%s192 + $0x6b] sm:$0xff]
      %v1415 = vld [vmem:[%s192 + $0x73] sm:$0xff]
      %v1416 = vld [vmem:[%s192 + $0x7b] sm:$0xff]
      %v1417 = vld [vmem:[%s192 + $0x83] sm:$0xff]
      %v1418 = vld [vmem:[%s192 + $0x8b] sm:$0xff]
      %v1419 = vld [vmem:[%s192 + $0x93] sm:$0xff]
      %v1420 = vld [vmem:[%s192 + $0x9b] sm:$0xff]
      %v1421 = vld [vmem:[%s192 + $0xa3] sm:$0xff]
      %v1422 = vld [vmem:[%s192 + $0xab] sm:$0xff]
      %v1423 = vld [vmem:[%s192 + $0xb3] sm:$0xff]
      %v1424 = vld [vmem:[%s192 + $0xbb] sm:$0xff]
      %v1425 = vld [vmem:[%s192 + $0xc3] sm:$0xff]
      %v1426 = vld [vmem:[%s192 + $0xcb] sm:$0xff]
      %v1427 = vld [vmem:[%s192 + $0xd3] sm:$0xff]
      %v1428 = vld [vmem:[%s192 + $0xdb] sm:$0xff]
      %v1429 = vld [vmem:[%s192 + $0xe3] sm:$0xff]
      %v1430 = vld [vmem:[%s192 + $0xeb] sm:$0xff]
      %v1431 = vld [vmem:[%s192 + $0xf3] sm:$0xff]
      %v1432 = vld [vmem:[%s192 + $0xfb] sm:$0xff]
      %v1433 = vld [vmem:[%s192 + $0x103] sm:$0xff]
      %v1434 = vld [vmem:[%s192 + $0x10b] sm:$0xff]
      %v1435 = vld [vmem:[%s192 + $0x113] sm:$0xff]
      %v1436 = vld [vmem:[%s192 + $0x11b] sm:$0xff]
      %v1437 = vld [vmem:[%s192 + $0x123] sm:$0xff]
      %v1438 = vld [vmem:[%s192 + $0x12b] sm:$0xff]
      %s1439 = scalar_lea.vmem %s2, 16
      %v1440 = vld [vmem:[%s1439] sm:$0xf]
      %v1442 = vsel %vm309, %v1403, 0
      %v1445 = vsel %vm309, %v1404, 0
      %v1448 = vsel %vm309, %v1405, 0
      %v1451 = vsel %vm309, %v1406, 0
      %v1454 = vsel %vm309, %v1407, 0
      %v1457 = vsel %vm309, %v1408, 0
      %v1460 = vsel %vm309, %v1409, 0
      %v1463 = vsel %vm309, %v1410, 0
      %v1466 = vsel %vm309, %v1411, 0
      %v1469 = vsel %vm309, %v1412, 0
      %v1472 = vsel %vm309, %v1413, 0
      %v1475 = vsel %vm309, %v1414, 0
      %v1478 = vsel %vm309, %v1415, 0
      %v1481 = vsel %vm309, %v1416, 0
      %v1484 = vsel %vm309, %v1417, 0
      %v1487 = vsel %vm309, %v1418, 0
      %v1490 = vsel %vm309, %v1419, 0
      %v1493 = vsel %vm309, %v1420, 0
      %v1496 = vsel %vm309, %v1421, 0
      %v1499 = vsel %vm309, %v1422, 0
      %v1502 = vsel %vm309, %v1423, 0
      %v1505 = vsel %vm309, %v1424, 0
      %v1508 = vsel %vm309, %v1425, 0
      %v1511 = vsel %vm309, %v1426, 0
      %v1514 = vsel %vm309, %v1427, 0
      %v1517 = vsel %vm309, %v1428, 0
      %v1520 = vsel %vm309, %v1429, 0
      %v1523 = vsel %vm309, %v1430, 0
      %v1526 = vsel %vm309, %v1431, 0
      %v1529 = vsel %vm309, %v1432, 0
      %v1532 = vsel %vm309, %v1433, 0
      %v1535 = vsel %vm309, %v1434, 0
      %v1538 = vsel %vm309, %v1435, 0
      %v1541 = vsel %vm309, %v1436, 0
      %v1544 = vsel %vm309, %v1437, 0
      %v1547 = vsel %vm309, %v1438, 0
      %v1550 = vsel %vm418, %v1440, 0
      %1552 = vmatpush.msra.mxu0 0.0
      %1553 = vmatpush.msra.mxu0 0.0
      %1554 = vmatpush.msra.mxu0 0.0
      %1555 = vmatpush.msra.mxu0 0.0
      %1556 = vmatpush.msra.mxu0 0.0
      %1557 = vmatpush.msra.mxu0 0.0
      %1558 = vmatpush.msra.mxu0 0.0
      %1559 = vmatpush.msra.mxu0 0.0
      %1560 = vmatpush.msra.mxu0 0.0
      %1561 = vmatpush.msra.mxu0 0.0
      %1562 = vmatpush.msra.mxu0 0.0
      %1563 = vmatpush.msra.mxu0 0.0
      %1564 = vmatpush.msra.mxu0 0.0
      %1565 = vmatpush.msra.mxu0 0.0
      %1566 = vmatpush.msra.mxu0 0.0
      %1567 = vmatpush.msra.mxu0 %v1550
      %1568 = vmatmul.f32.gmra.mxu0 %v1442
      %v1569 = vpop.f32.mrf.mxu0
      %v1570 = vadd.f32 0.0, %v1569
      %1571 = vmatmul.f32.gmra.mxu0 %v1445
      %v1572 = vpop.f32.mrf.mxu0
      %v1573 = vadd.f32 0.0, %v1572
      %1574 = vmatmul.f32.gmra.mxu0 %v1448
      %v1575 = vpop.f32.mrf.mxu0
      %v1576 = vadd.f32 0.0, %v1575
      %1577 = vmatmul.f32.gmra.mxu0 %v1451
      %v1578 = vpop.f32.mrf.mxu0
      %v1579 = vadd.f32 0.0, %v1578
      %1580 = vmatmul.f32.gmra.mxu0 %v1454
      %v1581 = vpop.f32.mrf.mxu0
      %v1582 = vadd.f32 0.0, %v1581
      %1583 = vmatmul.f32.gmra.mxu0 %v1457
      %v1584 = vpop.f32.mrf.mxu0
      %v1585 = vadd.f32 0.0, %v1584
      %1586 = vmatmul.f32.gmra.mxu0 %v1460
      %v1587 = vpop.f32.mrf.mxu0
      %v1588 = vadd.f32 0.0, %v1587
      %1589 = vmatmul.f32.gmra.mxu0 %v1463
      %v1590 = vpop.f32.mrf.mxu0
      %v1591 = vadd.f32 0.0, %v1590
      %1592 = vmatmul.f32.gmra.mxu0 %v1466
      %v1593 = vpop.f32.mrf.mxu0
      %v1594 = vadd.f32 0.0, %v1593
      %1595 = vmatmul.f32.gmra.mxu0 %v1469
      %v1596 = vpop.f32.mrf.mxu0
      %v1597 = vadd.f32 0.0, %v1596
      %1598 = vmatmul.f32.gmra.mxu0 %v1472
      %v1599 = vpop.f32.mrf.mxu0
      %v1600 = vadd.f32 0.0, %v1599
      %1601 = vmatmul.f32.gmra.mxu0 %v1475
      %v1602 = vpop.f32.mrf.mxu0
      %v1603 = vadd.f32 0.0, %v1602
      %1604 = vmatmul.f32.gmra.mxu0 %v1478
      %v1605 = vpop.f32.mrf.mxu0
      %v1606 = vadd.f32 0.0, %v1605
      %1607 = vmatmul.f32.gmra.mxu0 %v1481
      %v1608 = vpop.f32.mrf.mxu0
      %v1609 = vadd.f32 0.0, %v1608
      %1610 = vmatmul.f32.gmra.mxu0 %v1484
      %v1611 = vpop.f32.mrf.mxu0
      %v1612 = vadd.f32 0.0, %v1611
      %1613 = vmatmul.f32.gmra.mxu0 %v1487
      %v1614 = vpop.f32.mrf.mxu0
      %v1615 = vadd.f32 0.0, %v1614
      %1616 = vmatmul.f32.gmra.mxu0 %v1490
      %v1617 = vpop.f32.mrf.mxu0
      %v1618 = vadd.f32 0.0, %v1617
      %1619 = vmatmul.f32.gmra.mxu0 %v1493
      %v1620 = vpop.f32.mrf.mxu0
      %v1621 = vadd.f32 0.0, %v1620
      %1622 = vmatmul.f32.gmra.mxu0 %v1496
      %v1623 = vpop.f32.mrf.mxu0
      %v1624 = vadd.f32 0.0, %v1623
      %1625 = vmatmul.f32.gmra.mxu0 %v1499
      %v1626 = vpop.f32.mrf.mxu0
      %v1627 = vadd.f32 0.0, %v1626
      %1628 = vmatmul.f32.gmra.mxu0 %v1502
      %v1629 = vpop.f32.mrf.mxu0
      %v1630 = vadd.f32 0.0, %v1629
      %1631 = vmatmul.f32.gmra.mxu0 %v1505
      %v1632 = vpop.f32.mrf.mxu0
      %v1633 = vadd.f32 0.0, %v1632
      %1634 = vmatmul.f32.gmra.mxu0 %v1508
      %v1635 = vpop.f32.mrf.mxu0
      %v1636 = vadd.f32 0.0, %v1635
      %1637 = vmatmul.f32.gmra.mxu0 %v1511
      %v1638 = vpop.f32.mrf.mxu0
      %v1639 = vadd.f32 0.0, %v1638
      %1640 = vmatmul.f32.gmra.mxu0 %v1514
      %v1641 = vpop.f32.mrf.mxu0
      %v1642 = vadd.f32 0.0, %v1641
      %1643 = vmatmul.f32.gmra.mxu0 %v1517
      %v1644 = vpop.f32.mrf.mxu0
      %v1645 = vadd.f32 0.0, %v1644
      %1646 = vmatmul.f32.gmra.mxu0 %v1520
      %v1647 = vpop.f32.mrf.mxu0
      %v1648 = vadd.f32 0.0, %v1647
      %1649 = vmatmul.f32.gmra.mxu0 %v1523
      %v1650 = vpop.f32.mrf.mxu0
      %v1651 = vadd.f32 0.0, %v1650
      %1652 = vmatmul.f32.gmra.mxu0 %v1526
      %v1653 = vpop.f32.mrf.mxu0
      %v1654 = vadd.f32 0.0, %v1653
      %1655 = vmatmul.f32.gmra.mxu0 %v1529
      %v1656 = vpop.f32.mrf.mxu0
      %v1657 = vadd.f32 0.0, %v1656
      %1658 = vmatmul.f32.gmra.mxu0 %v1532
      %v1659 = vpop.f32.mrf.mxu0
      %v1660 = vadd.f32 0.0, %v1659
      %1661 = vmatmul.f32.gmra.mxu0 %v1535
      %v1662 = vpop.f32.mrf.mxu0
      %v1663 = vadd.f32 0.0, %v1662
      %1664 = vmatmul.f32.gmra.mxu0 %v1538
      %v1665 = vpop.f32.mrf.mxu0
      %v1666 = vadd.f32 0.0, %v1665
      %1667 = vmatmul.f32.gmra.mxu0 %v1541
      %v1668 = vpop.f32.mrf.mxu0
      %v1669 = vadd.f32 0.0, %v1668
      %1670 = vmatmul.f32.gmra.mxu0 %v1544
      %v1671 = vpop.f32.mrf.mxu0
      %v1672 = vadd.f32 0.0, %v1671
      %1673 = vmatmul.f32.gmra.mxu0 %v1547
      %v1674 = vpop.f32.mrf.mxu0
      %v1675 = vadd.f32 0.0, %v1674
      %1676 = vdwg.mxu0
      %v1677 = vadd.f32 %v1367, %v1570
      %v1678 = vadd.f32 %v1368, %v1573
      %v1679 = vadd.f32 %v1369, %v1576
      %v1680 = vadd.f32 %v1370, %v1579
      %v1681 = vadd.f32 %v1371, %v1582
      %v1682 = vadd.f32 %v1372, %v1585
      %v1683 = vadd.f32 %v1373, %v1588
      %v1684 = vadd.f32 %v1374, %v1591
      %v1685 = vadd.f32 %v1375, %v1594
      %v1686 = vadd.f32 %v1376, %v1597
      %v1687 = vadd.f32 %v1377, %v1600
      %v1688 = vadd.f32 %v1378, %v1603
      %v1689 = vadd.f32 %v1379, %v1606
      %v1690 = vadd.f32 %v1380, %v1609
      %v1691 = vadd.f32 %v1381, %v1612
      %v1692 = vadd.f32 %v1382, %v1615
      %v1693 = vadd.f32 %v1383, %v1618
      %v1694 = vadd.f32 %v1384, %v1621
      %v1695 = vadd.f32 %v1385, %v1624
      %v1696 = vadd.f32 %v1386, %v1627
      %v1697 = vadd.f32 %v1387, %v1630
      %v1698 = vadd.f32 %v1388, %v1633
      %v1699 = vadd.f32 %v1389, %v1636
      %v1700 = vadd.f32 %v1390, %v1639
      %v1701 = vadd.f32 %v1391, %v1642
      %v1702 = vadd.f32 %v1392, %v1645
      %v1703 = vadd.f32 %v1393, %v1648
      %v1704 = vadd.f32 %v1394, %v1651
      %v1705 = vadd.f32 %v1395, %v1654
      %v1706 = vadd.f32 %v1396, %v1657
      %v1707 = vadd.f32 %v1397, %v1660
      %v1708 = vadd.f32 %v1398, %v1663
      %v1709 = vadd.f32 %v1399, %v1666
      %v1710 = vadd.f32 %v1400, %v1669
      %v1711 = vadd.f32 %v1401, %v1672
      %v1712 = vadd.f32 %v1402, %v1675
      %v1713 = vld [vmem:[%s192 + $0x14] sm:$0xff]
      %v1714 = vld [vmem:[%s192 + $0x1c] sm:$0xff]
      %v1715 = vld [vmem:[%s192 + $0x24] sm:$0xff]
      %v1716 = vld [vmem:[%s192 + $0x2c] sm:$0xff]
      %v1717 = vld [vmem:[%s192 + $0x34] sm:$0xff]
      %v1718 = vld [vmem:[%s192 + $0x3c] sm:$0xff]
      %v1719 = vld [vmem:[%s192 + $0x44] sm:$0xff]
      %v1720 = vld [vmem:[%s192 + $0x4c] sm:$0xff]
      %v1721 = vld [vmem:[%s192 + $0x54] sm:$0xff]
      %v1722 = vld [vmem:[%s192 + $0x5c] sm:$0xff]
      %v1723 = vld [vmem:[%s192 + $0x64] sm:$0xff]
      %v1724 = vld [vmem:[%s192 + $0x6c] sm:$0xff]
      %v1725 = vld [vmem:[%s192 + $0x74] sm:$0xff]
      %v1726 = vld [vmem:[%s192 + $0x7c] sm:$0xff]
      %v1727 = vld [vmem:[%s192 + $0x84] sm:$0xff]
      %v1728 = vld [vmem:[%s192 + $0x8c] sm:$0xff]
      %v1729 = vld [vmem:[%s192 + $0x94] sm:$0xff]
      %v1730 = vld [vmem:[%s192 + $0x9c] sm:$0xff]
      %v1731 = vld [vmem:[%s192 + $0xa4] sm:$0xff]
      %v1732 = vld [vmem:[%s192 + $0xac] sm:$0xff]
      %v1733 = vld [vmem:[%s192 + $0xb4] sm:$0xff]
      %v1734 = vld [vmem:[%s192 + $0xbc] sm:$0xff]
      %v1735 = vld [vmem:[%s192 + $0xc4] sm:$0xff]
      %v1736 = vld [vmem:[%s192 + $0xcc] sm:$0xff]
      %v1737 = vld [vmem:[%s192 + $0xd4] sm:$0xff]
      %v1738 = vld [vmem:[%s192 + $0xdc] sm:$0xff]
      %v1739 = vld [vmem:[%s192 + $0xe4] sm:$0xff]
      %v1740 = vld [vmem:[%s192 + $0xec] sm:$0xff]
      %v1741 = vld [vmem:[%s192 + $0xf4] sm:$0xff]
      %v1742 = vld [vmem:[%s192 + $0xfc] sm:$0xff]
      %v1743 = vld [vmem:[%s192 + $0x104] sm:$0xff]
      %v1744 = vld [vmem:[%s192 + $0x10c] sm:$0xff]
      %v1745 = vld [vmem:[%s192 + $0x114] sm:$0xff]
      %v1746 = vld [vmem:[%s192 + $0x11c] sm:$0xff]
      %v1747 = vld [vmem:[%s192 + $0x124] sm:$0xff]
      %v1748 = vld [vmem:[%s192 + $0x12c] sm:$0xff]
      %s1749 = scalar_lea.vmem %s2, 20
      %v1750 = vld [vmem:[%s1749] sm:$0xf]
      %v1752 = vsel %vm309, %v1713, 0
      %v1755 = vsel %vm309, %v1714, 0
      %v1758 = vsel %vm309, %v1715, 0
      %v1761 = vsel %vm309, %v1716, 0
      %v1764 = vsel %vm309, %v1717, 0
      %v1767 = vsel %vm309, %v1718, 0
      %v1770 = vsel %vm309, %v1719, 0
      %v1773 = vsel %vm309, %v1720, 0
      %v1776 = vsel %vm309, %v1721, 0
      %v1779 = vsel %vm309, %v1722, 0
      %v1782 = vsel %vm309, %v1723, 0
      %v1785 = vsel %vm309, %v1724, 0
      %v1788 = vsel %vm309, %v1725, 0
      %v1791 = vsel %vm309, %v1726, 0
      %v1794 = vsel %vm309, %v1727, 0
      %v1797 = vsel %vm309, %v1728, 0
      %v1800 = vsel %vm309, %v1729, 0
      %v1803 = vsel %vm309, %v1730, 0
      %v1806 = vsel %vm309, %v1731, 0
      %v1809 = vsel %vm309, %v1732, 0
      %v1812 = vsel %vm309, %v1733, 0
      %v1815 = vsel %vm309, %v1734, 0
      %v1818 = vsel %vm309, %v1735, 0
      %v1821 = vsel %vm309, %v1736, 0
      %v1824 = vsel %vm309, %v1737, 0
      %v1827 = vsel %vm309, %v1738, 0
      %v1830 = vsel %vm309, %v1739, 0
      %v1833 = vsel %vm309, %v1740, 0
      %v1836 = vsel %vm309, %v1741, 0
      %v1839 = vsel %vm309, %v1742, 0
      %v1842 = vsel %vm309, %v1743, 0
      %v1845 = vsel %vm309, %v1744, 0
      %v1848 = vsel %vm309, %v1745, 0
      %v1851 = vsel %vm309, %v1746, 0
      %v1854 = vsel %vm309, %v1747, 0
      %v1857 = vsel %vm309, %v1748, 0
      %v1860 = vsel %vm418, %v1750, 0
      %1862 = vmatpush.msra.mxu0 0.0
      %1863 = vmatpush.msra.mxu0 0.0
      %1864 = vmatpush.msra.mxu0 0.0
      %1865 = vmatpush.msra.mxu0 0.0
      %1866 = vmatpush.msra.mxu0 0.0
      %1867 = vmatpush.msra.mxu0 0.0
      %1868 = vmatpush.msra.mxu0 0.0
      %1869 = vmatpush.msra.mxu0 0.0
      %1870 = vmatpush.msra.mxu0 0.0
      %1871 = vmatpush.msra.mxu0 0.0
      %1872 = vmatpush.msra.mxu0 0.0
      %1873 = vmatpush.msra.mxu0 0.0
      %1874 = vmatpush.msra.mxu0 0.0
      %1875 = vmatpush.msra.mxu0 0.0
      %1876 = vmatpush.msra.mxu0 0.0
      %1877 = vmatpush.msra.mxu0 %v1860
      %1878 = vmatmul.f32.gmra.mxu0 %v1752
      %v1879 = vpop.f32.mrf.mxu0
      %v1880 = vadd.f32 0.0, %v1879
      %1881 = vmatmul.f32.gmra.mxu0 %v1755
      %v1882 = vpop.f32.mrf.mxu0
      %v1883 = vadd.f32 0.0, %v1882
      %1884 = vmatmul.f32.gmra.mxu0 %v1758
      %v1885 = vpop.f32.mrf.mxu0
      %v1886 = vadd.f32 0.0, %v1885
      %1887 = vmatmul.f32.gmra.mxu0 %v1761
      %v1888 = vpop.f32.mrf.mxu0
      %v1889 = vadd.f32 0.0, %v1888
      %1890 = vmatmul.f32.gmra.mxu0 %v1764
      %v1891 = vpop.f32.mrf.mxu0
      %v1892 = vadd.f32 0.0, %v1891
      %1893 = vmatmul.f32.gmra.mxu0 %v1767
      %v1894 = vpop.f32.mrf.mxu0
      %v1895 = vadd.f32 0.0, %v1894
      %1896 = vmatmul.f32.gmra.mxu0 %v1770
      %v1897 = vpop.f32.mrf.mxu0
      %v1898 = vadd.f32 0.0, %v1897
      %1899 = vmatmul.f32.gmra.mxu0 %v1773
      %v1900 = vpop.f32.mrf.mxu0
      %v1901 = vadd.f32 0.0, %v1900
      %1902 = vmatmul.f32.gmra.mxu0 %v1776
      %v1903 = vpop.f32.mrf.mxu0
      %v1904 = vadd.f32 0.0, %v1903
      %1905 = vmatmul.f32.gmra.mxu0 %v1779
      %v1906 = vpop.f32.mrf.mxu0
      %v1907 = vadd.f32 0.0, %v1906
      %1908 = vmatmul.f32.gmra.mxu0 %v1782
      %v1909 = vpop.f32.mrf.mxu0
      %v1910 = vadd.f32 0.0, %v1909
      %1911 = vmatmul.f32.gmra.mxu0 %v1785
      %v1912 = vpop.f32.mrf.mxu0
      %v1913 = vadd.f32 0.0, %v1912
      %1914 = vmatmul.f32.gmra.mxu0 %v1788
      %v1915 = vpop.f32.mrf.mxu0
      %v1916 = vadd.f32 0.0, %v1915
      %1917 = vmatmul.f32.gmra.mxu0 %v1791
      %v1918 = vpop.f32.mrf.mxu0
      %v1919 = vadd.f32 0.0, %v1918
      %1920 = vmatmul.f32.gmra.mxu0 %v1794
      %v1921 = vpop.f32.mrf.mxu0
      %v1922 = vadd.f32 0.0, %v1921
      %1923 = vmatmul.f32.gmra.mxu0 %v1797
      %v1924 = vpop.f32.mrf.mxu0
      %v1925 = vadd.f32 0.0, %v1924
      %1926 = vmatmul.f32.gmra.mxu0 %v1800
      %v1927 = vpop.f32.mrf.mxu0
      %v1928 = vadd.f32 0.0, %v1927
      %1929 = vmatmul.f32.gmra.mxu0 %v1803
      %v1930 = vpop.f32.mrf.mxu0
      %v1931 = vadd.f32 0.0, %v1930
      %1932 = vmatmul.f32.gmra.mxu0 %v1806
      %v1933 = vpop.f32.mrf.mxu0
      %v1934 = vadd.f32 0.0, %v1933
      %1935 = vmatmul.f32.gmra.mxu0 %v1809
      %v1936 = vpop.f32.mrf.mxu0
      %v1937 = vadd.f32 0.0, %v1936
      %1938 = vmatmul.f32.gmra.mxu0 %v1812
      %v1939 = vpop.f32.mrf.mxu0
      %v1940 = vadd.f32 0.0, %v1939
      %1941 = vmatmul.f32.gmra.mxu0 %v1815
      %v1942 = vpop.f32.mrf.mxu0
      %v1943 = vadd.f32 0.0, %v1942
      %1944 = vmatmul.f32.gmra.mxu0 %v1818
      %v1945 = vpop.f32.mrf.mxu0
      %v1946 = vadd.f32 0.0, %v1945
      %1947 = vmatmul.f32.gmra.mxu0 %v1821
      %v1948 = vpop.f32.mrf.mxu0
      %v1949 = vadd.f32 0.0, %v1948
      %1950 = vmatmul.f32.gmra.mxu0 %v1824
      %v1951 = vpop.f32.mrf.mxu0
      %v1952 = vadd.f32 0.0, %v1951
      %1953 = vmatmul.f32.gmra.mxu0 %v1827
      %v1954 = vpop.f32.mrf.mxu0
      %v1955 = vadd.f32 0.0, %v1954
      %1956 = vmatmul.f32.gmra.mxu0 %v1830
      %v1957 = vpop.f32.mrf.mxu0
      %v1958 = vadd.f32 0.0, %v1957
      %1959 = vmatmul.f32.gmra.mxu0 %v1833
      %v1960 = vpop.f32.mrf.mxu0
      %v1961 = vadd.f32 0.0, %v1960
      %1962 = vmatmul.f32.gmra.mxu0 %v1836
      %v1963 = vpop.f32.mrf.mxu0
      %v1964 = vadd.f32 0.0, %v1963
      %1965 = vmatmul.f32.gmra.mxu0 %v1839
      %v1966 = vpop.f32.mrf.mxu0
      %v1967 = vadd.f32 0.0, %v1966
      %1968 = vmatmul.f32.gmra.mxu0 %v1842
      %v1969 = vpop.f32.mrf.mxu0
      %v1970 = vadd.f32 0.0, %v1969
      %1971 = vmatmul.f32.gmra.mxu0 %v1845
      %v1972 = vpop.f32.mrf.mxu0
      %v1973 = vadd.f32 0.0, %v1972
      %1974 = vmatmul.f32.gmra.mxu0 %v1848
      %v1975 = vpop.f32.mrf.mxu0
      %v1976 = vadd.f32 0.0, %v1975
      %1977 = vmatmul.f32.gmra.mxu0 %v1851
      %v1978 = vpop.f32.mrf.mxu0
      %v1979 = vadd.f32 0.0, %v1978
      %1980 = vmatmul.f32.gmra.mxu0 %v1854
      %v1981 = vpop.f32.mrf.mxu0
      %v1982 = vadd.f32 0.0, %v1981
      %1983 = vmatmul.f32.gmra.mxu0 %v1857
      %v1984 = vpop.f32.mrf.mxu0
      %v1985 = vadd.f32 0.0, %v1984
      %1986 = vdwg.mxu0
      %v1987 = vadd.f32 %v1677, %v1880
      %v1988 = vadd.f32 %v1678, %v1883
      %v1989 = vadd.f32 %v1679, %v1886
      %v1990 = vadd.f32 %v1680, %v1889
      %v1991 = vadd.f32 %v1681, %v1892
      %v1992 = vadd.f32 %v1682, %v1895
      %v1993 = vadd.f32 %v1683, %v1898
      %v1994 = vadd.f32 %v1684, %v1901
      %v1995 = vadd.f32 %v1685, %v1904
      %v1996 = vadd.f32 %v1686, %v1907
      %v1997 = vadd.f32 %v1687, %v1910
      %v1998 = vadd.f32 %v1688, %v1913
      %v1999 = vadd.f32 %v1689, %v1916
      %v2000 = vadd.f32 %v1690, %v1919
      %v2001 = vadd.f32 %v1691, %v1922
      %v2002 = vadd.f32 %v1692, %v1925
      %v2003 = vadd.f32 %v1693, %v1928
      %v2004 = vadd.f32 %v1694, %v1931
      %v2005 = vadd.f32 %v1695, %v1934
      %v2006 = vadd.f32 %v1696, %v1937
      %v2007 = vadd.f32 %v1697, %v1940
      %v2008 = vadd.f32 %v1698, %v1943
      %v2009 = vadd.f32 %v1699, %v1946
      %v2010 = vadd.f32 %v1700, %v1949
      %v2011 = vadd.f32 %v1701, %v1952
      %v2012 = vadd.f32 %v1702, %v1955
      %v2013 = vadd.f32 %v1703, %v1958
      %v2014 = vadd.f32 %v1704, %v1961
      %v2015 = vadd.f32 %v1705, %v1964
      %v2016 = vadd.f32 %v1706, %v1967
      %v2017 = vadd.f32 %v1707, %v1970
      %v2018 = vadd.f32 %v1708, %v1973
      %v2019 = vadd.f32 %v1709, %v1976
      %v2020 = vadd.f32 %v1710, %v1979
      %v2021 = vadd.f32 %v1711, %v1982
      %v2022 = vadd.f32 %v1712, %v1985
      %v2023 = vld [vmem:[%s192 + $0x24] sm:$0xff]
      %v2024 = vld [vmem:[%s192 + $0x2c] sm:$0xff]
      %v2025 = vld [vmem:[%s192 + $0x34] sm:$0xff]
      %v2026 = vld [vmem:[%s192 + $0x3c] sm:$0xff]
      %v2027 = vld [vmem:[%s192 + $0x44] sm:$0xff]
      %v2028 = vld [vmem:[%s192 + $0x4c] sm:$0xff]
      %v2029 = vld [vmem:[%s192 + $0x54] sm:$0xff]
      %v2030 = vld [vmem:[%s192 + $0x5c] sm:$0xff]
      %v2031 = vld [vmem:[%s192 + $0x64] sm:$0xff]
      %v2032 = vld [vmem:[%s192 + $0x6c] sm:$0xff]
      %v2033 = vld [vmem:[%s192 + $0x74] sm:$0xff]
      %v2034 = vld [vmem:[%s192 + $0x7c] sm:$0xff]
      %v2035 = vld [vmem:[%s192 + $0x84] sm:$0xff]
      %v2036 = vld [vmem:[%s192 + $0x8c] sm:$0xff]
      %v2037 = vld [vmem:[%s192 + $0x94] sm:$0xff]
      %v2038 = vld [vmem:[%s192 + $0x9c] sm:$0xff]
      %v2039 = vld [vmem:[%s192 + $0xa4] sm:$0xff]
      %v2040 = vld [vmem:[%s192 + $0xac] sm:$0xff]
      %v2041 = vld [vmem:[%s192 + $0xb4] sm:$0xff]
      %v2042 = vld [vmem:[%s192 + $0xbc] sm:$0xff]
      %v2043 = vld [vmem:[%s192 + $0xc4] sm:$0xff]
      %v2044 = vld [vmem:[%s192 + $0xcc] sm:$0xff]
      %v2045 = vld [vmem:[%s192 + $0xd4] sm:$0xff]
      %v2046 = vld [vmem:[%s192 + $0xdc] sm:$0xff]
      %v2047 = vld [vmem:[%s192 + $0xe4] sm:$0xff]
      %v2048 = vld [vmem:[%s192 + $0xec] sm:$0xff]
      %v2049 = vld [vmem:[%s192 + $0xf4] sm:$0xff]
      %v2050 = vld [vmem:[%s192 + $0xfc] sm:$0xff]
      %v2051 = vld [vmem:[%s192 + $0x104] sm:$0xff]
      %v2052 = vld [vmem:[%s192 + $0x10c] sm:$0xff]
      %v2053 = vld [vmem:[%s192 + $0x114] sm:$0xff]
      %v2054 = vld [vmem:[%s192 + $0x11c] sm:$0xff]
      %v2055 = vld [vmem:[%s192 + $0x124] sm:$0xff]
      %v2056 = vld [vmem:[%s192 + $0x12c] sm:$0xff]
      %v2057 = vld [vmem:[%s192 + $0x134] sm:$0xff]
      %v2058 = vld [vmem:[%s192 + $0x13c] sm:$0xff]
      %s2059 = scalar_lea.vmem %s2, 24
      %v2060 = vld [vmem:[%s2059] sm:$0xf]
      %v2062 = vsel %vm309, %v2023, 0
      %v2065 = vsel %vm309, %v2024, 0
      %v2068 = vsel %vm309, %v2025, 0
      %v2071 = vsel %vm309, %v2026, 0
      %v2074 = vsel %vm309, %v2027, 0
      %v2077 = vsel %vm309, %v2028, 0
      %v2080 = vsel %vm309, %v2029, 0
      %v2083 = vsel %vm309, %v2030, 0
      %v2086 = vsel %vm309, %v2031, 0
      %v2089 = vsel %vm309, %v2032, 0
      %v2092 = vsel %vm309, %v2033, 0
      %v2095 = vsel %vm309, %v2034, 0
      %v2098 = vsel %vm309, %v2035, 0
      %v2101 = vsel %vm309, %v2036, 0
      %v2104 = vsel %vm309, %v2037, 0
      %v2107 = vsel %vm309, %v2038, 0
      %v2110 = vsel %vm309, %v2039, 0
      %v2113 = vsel %vm309, %v2040, 0
      %v2116 = vsel %vm309, %v2041, 0
      %v2119 = vsel %vm309, %v2042, 0
      %v2122 = vsel %vm309, %v2043, 0
      %v2125 = vsel %vm309, %v2044, 0
      %v2128 = vsel %vm309, %v2045, 0
      %v2131 = vsel %vm309, %v2046, 0
      %v2134 = vsel %vm309, %v2047, 0
      %v2137 = vsel %vm309, %v2048, 0
      %v2140 = vsel %vm309, %v2049, 0
      %v2143 = vsel %vm309, %v2050, 0
      %v2146 = vsel %vm309, %v2051, 0
      %v2149 = vsel %vm309, %v2052, 0
      %v2152 = vsel %vm309, %v2053, 0
      %v2155 = vsel %vm309, %v2054, 0
      %v2158 = vsel %vm309, %v2055, 0
      %v2161 = vsel %vm309, %v2056, 0
      %v2164 = vsel %vm309, %v2057, 0
      %v2167 = vsel %vm309, %v2058, 0
      %v2170 = vsel %vm418, %v2060, 0
      %2172 = vmatpush.msra.mxu0 0.0
      %2173 = vmatpush.msra.mxu0 0.0
      %2174 = vmatpush.msra.mxu0 0.0
      %2175 = vmatpush.msra.mxu0 0.0
      %2176 = vmatpush.msra.mxu0 0.0
      %2177 = vmatpush.msra.mxu0 0.0
      %2178 = vmatpush.msra.mxu0 0.0
      %2179 = vmatpush.msra.mxu0 0.0
      %2180 = vmatpush.msra.mxu0 0.0
      %2181 = vmatpush.msra.mxu0 0.0
      %2182 = vmatpush.msra.mxu0 0.0
      %2183 = vmatpush.msra.mxu0 0.0
      %2184 = vmatpush.msra.mxu0 0.0
      %2185 = vmatpush.msra.mxu0 0.0
      %2186 = vmatpush.msra.mxu0 0.0
      %2187 = vmatpush.msra.mxu0 %v2170
      %2188 = vmatmul.f32.gmra.mxu0 %v2062
      %v2189 = vpop.f32.mrf.mxu0
      %v2190 = vadd.f32 0.0, %v2189
      %2191 = vmatmul.f32.gmra.mxu0 %v2065
      %v2192 = vpop.f32.mrf.mxu0
      %v2193 = vadd.f32 0.0, %v2192
      %2194 = vmatmul.f32.gmra.mxu0 %v2068
      %v2195 = vpop.f32.mrf.mxu0
      %v2196 = vadd.f32 0.0, %v2195
      %2197 = vmatmul.f32.gmra.mxu0 %v2071
      %v2198 = vpop.f32.mrf.mxu0
      %v2199 = vadd.f32 0.0, %v2198
      %2200 = vmatmul.f32.gmra.mxu0 %v2074
      %v2201 = vpop.f32.mrf.mxu0
      %v2202 = vadd.f32 0.0, %v2201
      %2203 = vmatmul.f32.gmra.mxu0 %v2077
      %v2204 = vpop.f32.mrf.mxu0
      %v2205 = vadd.f32 0.0, %v2204
      %2206 = vmatmul.f32.gmra.mxu0 %v2080
      %v2207 = vpop.f32.mrf.mxu0
      %v2208 = vadd.f32 0.0, %v2207
      %2209 = vmatmul.f32.gmra.mxu0 %v2083
      %v2210 = vpop.f32.mrf.mxu0
      %v2211 = vadd.f32 0.0, %v2210
      %2212 = vmatmul.f32.gmra.mxu0 %v2086
      %v2213 = vpop.f32.mrf.mxu0
      %v2214 = vadd.f32 0.0, %v2213
      %2215 = vmatmul.f32.gmra.mxu0 %v2089
      %v2216 = vpop.f32.mrf.mxu0
      %v2217 = vadd.f32 0.0, %v2216
      %2218 = vmatmul.f32.gmra.mxu0 %v2092
      %v2219 = vpop.f32.mrf.mxu0
      %v2220 = vadd.f32 0.0, %v2219
      %2221 = vmatmul.f32.gmra.mxu0 %v2095
      %v2222 = vpop.f32.mrf.mxu0
      %v2223 = vadd.f32 0.0, %v2222
      %2224 = vmatmul.f32.gmra.mxu0 %v2098
      %v2225 = vpop.f32.mrf.mxu0
      %v2226 = vadd.f32 0.0, %v2225
      %2227 = vmatmul.f32.gmra.mxu0 %v2101
      %v2228 = vpop.f32.mrf.mxu0
      %v2229 = vadd.f32 0.0, %v2228
      %2230 = vmatmul.f32.gmra.mxu0 %v2104
      %v2231 = vpop.f32.mrf.mxu0
      %v2232 = vadd.f32 0.0, %v2231
      %2233 = vmatmul.f32.gmra.mxu0 %v2107
      %v2234 = vpop.f32.mrf.mxu0
      %v2235 = vadd.f32 0.0, %v2234
      %2236 = vmatmul.f32.gmra.mxu0 %v2110
      %v2237 = vpop.f32.mrf.mxu0
      %v2238 = vadd.f32 0.0, %v2237
      %2239 = vmatmul.f32.gmra.mxu0 %v2113
      %v2240 = vpop.f32.mrf.mxu0
      %v2241 = vadd.f32 0.0, %v2240
      %2242 = vmatmul.f32.gmra.mxu0 %v2116
      %v2243 = vpop.f32.mrf.mxu0
      %v2244 = vadd.f32 0.0, %v2243
      %2245 = vmatmul.f32.gmra.mxu0 %v2119
      %v2246 = vpop.f32.mrf.mxu0
      %v2247 = vadd.f32 0.0, %v2246
      %2248 = vmatmul.f32.gmra.mxu0 %v2122
      %v2249 = vpop.f32.mrf.mxu0
      %v2250 = vadd.f32 0.0, %v2249
      %2251 = vmatmul.f32.gmra.mxu0 %v2125
      %v2252 = vpop.f32.mrf.mxu0
      %v2253 = vadd.f32 0.0, %v2252
      %2254 = vmatmul.f32.gmra.mxu0 %v2128
      %v2255 = vpop.f32.mrf.mxu0
      %v2256 = vadd.f32 0.0, %v2255
      %2257 = vmatmul.f32.gmra.mxu0 %v2131
      %v2258 = vpop.f32.mrf.mxu0
      %v2259 = vadd.f32 0.0, %v2258
      %2260 = vmatmul.f32.gmra.mxu0 %v2134
      %v2261 = vpop.f32.mrf.mxu0
      %v2262 = vadd.f32 0.0, %v2261
      %2263 = vmatmul.f32.gmra.mxu0 %v2137
      %v2264 = vpop.f32.mrf.mxu0
      %v2265 = vadd.f32 0.0, %v2264
      %2266 = vmatmul.f32.gmra.mxu0 %v2140
      %v2267 = vpop.f32.mrf.mxu0
      %v2268 = vadd.f32 0.0, %v2267
      %2269 = vmatmul.f32.gmra.mxu0 %v2143
      %v2270 = vpop.f32.mrf.mxu0
      %v2271 = vadd.f32 0.0, %v2270
      %2272 = vmatmul.f32.gmra.mxu0 %v2146
      %v2273 = vpop.f32.mrf.mxu0
      %v2274 = vadd.f32 0.0, %v2273
      %2275 = vmatmul.f32.gmra.mxu0 %v2149
      %v2276 = vpop.f32.mrf.mxu0
      %v2277 = vadd.f32 0.0, %v2276
      %2278 = vmatmul.f32.gmra.mxu0 %v2152
      %v2279 = vpop.f32.mrf.mxu0
      %v2280 = vadd.f32 0.0, %v2279
      %2281 = vmatmul.f32.gmra.mxu0 %v2155
      %v2282 = vpop.f32.mrf.mxu0
      %v2283 = vadd.f32 0.0, %v2282
      %2284 = vmatmul.f32.gmra.mxu0 %v2158
      %v2285 = vpop.f32.mrf.mxu0
      %v2286 = vadd.f32 0.0, %v2285
      %2287 = vmatmul.f32.gmra.mxu0 %v2161
      %v2288 = vpop.f32.mrf.mxu0
      %v2289 = vadd.f32 0.0, %v2288
      %2290 = vmatmul.f32.gmra.mxu0 %v2164
      %v2291 = vpop.f32.mrf.mxu0
      %v2292 = vadd.f32 0.0, %v2291
      %2293 = vmatmul.f32.gmra.mxu0 %v2167
      %v2294 = vpop.f32.mrf.mxu0
      %v2295 = vadd.f32 0.0, %v2294
      %2296 = vdwg.mxu0
      %v2297 = vadd.f32 %v1987, %v2190
      %v2298 = vadd.f32 %v1988, %v2193
      %v2299 = vadd.f32 %v1989, %v2196
      %v2300 = vadd.f32 %v1990, %v2199
      %v2301 = vadd.f32 %v1991, %v2202
      %v2302 = vadd.f32 %v1992, %v2205
      %v2303 = vadd.f32 %v1993, %v2208
      %v2304 = vadd.f32 %v1994, %v2211
      %v2305 = vadd.f32 %v1995, %v2214
      %v2306 = vadd.f32 %v1996, %v2217
      %v2307 = vadd.f32 %v1997, %v2220
      %v2308 = vadd.f32 %v1998, %v2223
      %v2309 = vadd.f32 %v1999, %v2226
      %v2310 = vadd.f32 %v2000, %v2229
      %v2311 = vadd.f32 %v2001, %v2232
      %v2312 = vadd.f32 %v2002, %v2235
      %v2313 = vadd.f32 %v2003, %v2238
      %v2314 = vadd.f32 %v2004, %v2241
      %v2315 = vadd.f32 %v2005, %v2244
      %v2316 = vadd.f32 %v2006, %v2247
      %v2317 = vadd.f32 %v2007, %v2250
      %v2318 = vadd.f32 %v2008, %v2253
      %v2319 = vadd.f32 %v2009, %v2256
      %v2320 = vadd.f32 %v2010, %v2259
      %v2321 = vadd.f32 %v2011, %v2262
      %v2322 = vadd.f32 %v2012, %v2265
      %v2323 = vadd.f32 %v2013, %v2268
      %v2324 = vadd.f32 %v2014, %v2271
      %v2325 = vadd.f32 %v2015, %v2274
      %v2326 = vadd.f32 %v2016, %v2277
      %v2327 = vadd.f32 %v2017, %v2280
      %v2328 = vadd.f32 %v2018, %v2283
      %v2329 = vadd.f32 %v2019, %v2286
      %v2330 = vadd.f32 %v2020, %v2289
      %v2331 = vadd.f32 %v2021, %v2292
      %v2332 = vadd.f32 %v2022, %v2295
      %v2333 = vld [vmem:[%s192 + $0x25] sm:$0xff]
      %v2334 = vld [vmem:[%s192 + $0x2d] sm:$0xff]
      %v2335 = vld [vmem:[%s192 + $0x35] sm:$0xff]
      %v2336 = vld [vmem:[%s192 + $0x3d] sm:$0xff]
      %v2337 = vld [vmem:[%s192 + $0x45] sm:$0xff]
      %v2338 = vld [vmem:[%s192 + $0x4d] sm:$0xff]
      %v2339 = vld [vmem:[%s192 + $0x55] sm:$0xff]
      %v2340 = vld [vmem:[%s192 + $0x5d] sm:$0xff]
      %v2341 = vld [vmem:[%s192 + $0x65] sm:$0xff]
      %v2342 = vld [vmem:[%s192 + $0x6d] sm:$0xff]
      %v2343 = vld [vmem:[%s192 + $0x75] sm:$0xff]
      %v2344 = vld [vmem:[%s192 + $0x7d] sm:$0xff]
      %v2345 = vld [vmem:[%s192 + $0x85] sm:$0xff]
      %v2346 = vld [vmem:[%s192 + $0x8d] sm:$0xff]
      %v2347 = vld [vmem:[%s192 + $0x95] sm:$0xff]
      %v2348 = vld [vmem:[%s192 + $0x9d] sm:$0xff]
      %v2349 = vld [vmem:[%s192 + $0xa5] sm:$0xff]
      %v2350 = vld [vmem:[%s192 + $0xad] sm:$0xff]
      %v2351 = vld [vmem:[%s192 + $0xb5] sm:$0xff]
      %v2352 = vld [vmem:[%s192 + $0xbd] sm:$0xff]
      %v2353 = vld [vmem:[%s192 + $0xc5] sm:$0xff]
      %v2354 = vld [vmem:[%s192 + $0xcd] sm:$0xff]
      %v2355 = vld [vmem:[%s192 + $0xd5] sm:$0xff]
      %v2356 = vld [vmem:[%s192 + $0xdd] sm:$0xff]
      %v2357 = vld [vmem:[%s192 + $0xe5] sm:$0xff]
      %v2358 = vld [vmem:[%s192 + $0xed] sm:$0xff]
      %v2359 = vld [vmem:[%s192 + $0xf5] sm:$0xff]
      %v2360 = vld [vmem:[%s192 + $0xfd] sm:$0xff]
      %v2361 = vld [vmem:[%s192 + $0x105] sm:$0xff]
      %v2362 = vld [vmem:[%s192 + $0x10d] sm:$0xff]
      %v2363 = vld [vmem:[%s192 + $0x115] sm:$0xff]
      %v2364 = vld [vmem:[%s192 + $0x11d] sm:$0xff]
      %v2365 = vld [vmem:[%s192 + $0x125] sm:$0xff]
      %v2366 = vld [vmem:[%s192 + $0x12d] sm:$0xff]
      %v2367 = vld [vmem:[%s192 + $0x135] sm:$0xff]
      %v2368 = vld [vmem:[%s192 + $0x13d] sm:$0xff]
      %s2369 = scalar_lea.vmem %s2, 28
      %v2370 = vld [vmem:[%s2369] sm:$0xf]
      %v2372 = vsel %vm309, %v2333, 0
      %v2375 = vsel %vm309, %v2334, 0
      %v2378 = vsel %vm309, %v2335, 0
      %v2381 = vsel %vm309, %v2336, 0
      %v2384 = vsel %vm309, %v2337, 0
      %v2387 = vsel %vm309, %v2338, 0
      %v2390 = vsel %vm309, %v2339, 0
      %v2393 = vsel %vm309, %v2340, 0
      %v2396 = vsel %vm309, %v2341, 0
      %v2399 = vsel %vm309, %v2342, 0
      %v2402 = vsel %vm309, %v2343, 0
      %v2405 = vsel %vm309, %v2344, 0
      %v2408 = vsel %vm309, %v2345, 0
      %v2411 = vsel %vm309, %v2346, 0
      %v2414 = vsel %vm309, %v2347, 0
      %v2417 = vsel %vm309, %v2348, 0
      %v2420 = vsel %vm309, %v2349, 0
      %v2423 = vsel %vm309, %v2350, 0
      %v2426 = vsel %vm309, %v2351, 0
      %v2429 = vsel %vm309, %v2352, 0
      %v2432 = vsel %vm309, %v2353, 0
      %v2435 = vsel %vm309, %v2354, 0
      %v2438 = vsel %vm309, %v2355, 0
      %v2441 = vsel %vm309, %v2356, 0
      %v2444 = vsel %vm309, %v2357, 0
      %v2447 = vsel %vm309, %v2358, 0
      %v2450 = vsel %vm309, %v2359, 0
      %v2453 = vsel %vm309, %v2360, 0
      %v2456 = vsel %vm309, %v2361, 0
      %v2459 = vsel %vm309, %v2362, 0
      %v2462 = vsel %vm309, %v2363, 0
      %v2465 = vsel %vm309, %v2364, 0
      %v2468 = vsel %vm309, %v2365, 0
      %v2471 = vsel %vm309, %v2366, 0
      %v2474 = vsel %vm309, %v2367, 0
      %v2477 = vsel %vm309, %v2368, 0
      %v2480 = vsel %vm418, %v2370, 0
      %2482 = vmatpush.msra.mxu0 0.0
      %2483 = vmatpush.msra.mxu0 0.0
      %2484 = vmatpush.msra.mxu0 0.0
      %2485 = vmatpush.msra.mxu0 0.0
      %2486 = vmatpush.msra.mxu0 0.0
      %2487 = vmatpush.msra.mxu0 0.0
      %2488 = vmatpush.msra.mxu0 0.0
      %2489 = vmatpush.msra.mxu0 0.0
      %2490 = vmatpush.msra.mxu0 0.0
      %2491 = vmatpush.msra.mxu0 0.0
      %2492 = vmatpush.msra.mxu0 0.0
      %2493 = vmatpush.msra.mxu0 0.0
      %2494 = vmatpush.msra.mxu0 0.0
      %2495 = vmatpush.msra.mxu0 0.0
      %2496 = vmatpush.msra.mxu0 0.0
      %2497 = vmatpush.msra.mxu0 %v2480
      %2498 = vmatmul.f32.gmra.mxu0 %v2372
      %v2499 = vpop.f32.mrf.mxu0
      %v2500 = vadd.f32 0.0, %v2499
      %2501 = vmatmul.f32.gmra.mxu0 %v2375
      %v2502 = vpop.f32.mrf.mxu0
      %v2503 = vadd.f32 0.0, %v2502
      %2504 = vmatmul.f32.gmra.mxu0 %v2378
      %v2505 = vpop.f32.mrf.mxu0
      %v2506 = vadd.f32 0.0, %v2505
      %2507 = vmatmul.f32.gmra.mxu0 %v2381
      %v2508 = vpop.f32.mrf.mxu0
      %v2509 = vadd.f32 0.0, %v2508
      %2510 = vmatmul.f32.gmra.mxu0 %v2384
      %v2511 = vpop.f32.mrf.mxu0
      %v2512 = vadd.f32 0.0, %v2511
      %2513 = vmatmul.f32.gmra.mxu0 %v2387
      %v2514 = vpop.f32.mrf.mxu0
      %v2515 = vadd.f32 0.0, %v2514
      %2516 = vmatmul.f32.gmra.mxu0 %v2390
      %v2517 = vpop.f32.mrf.mxu0
      %v2518 = vadd.f32 0.0, %v2517
      %2519 = vmatmul.f32.gmra.mxu0 %v2393
      %v2520 = vpop.f32.mrf.mxu0
      %v2521 = vadd.f32 0.0, %v2520
      %2522 = vmatmul.f32.gmra.mxu0 %v2396
      %v2523 = vpop.f32.mrf.mxu0
      %v2524 = vadd.f32 0.0, %v2523
      %2525 = vmatmul.f32.gmra.mxu0 %v2399
      %v2526 = vpop.f32.mrf.mxu0
      %v2527 = vadd.f32 0.0, %v2526
      %2528 = vmatmul.f32.gmra.mxu0 %v2402
      %v2529 = vpop.f32.mrf.mxu0
      %v2530 = vadd.f32 0.0, %v2529
      %2531 = vmatmul.f32.gmra.mxu0 %v2405
      %v2532 = vpop.f32.mrf.mxu0
      %v2533 = vadd.f32 0.0, %v2532
      %2534 = vmatmul.f32.gmra.mxu0 %v2408
      %v2535 = vpop.f32.mrf.mxu0
      %v2536 = vadd.f32 0.0, %v2535
      %2537 = vmatmul.f32.gmra.mxu0 %v2411
      %v2538 = vpop.f32.mrf.mxu0
      %v2539 = vadd.f32 0.0, %v2538
      %2540 = vmatmul.f32.gmra.mxu0 %v2414
      %v2541 = vpop.f32.mrf.mxu0
      %v2542 = vadd.f32 0.0, %v2541
      %2543 = vmatmul.f32.gmra.mxu0 %v2417
      %v2544 = vpop.f32.mrf.mxu0
      %v2545 = vadd.f32 0.0, %v2544
      %2546 = vmatmul.f32.gmra.mxu0 %v2420
      %v2547 = vpop.f32.mrf.mxu0
      %v2548 = vadd.f32 0.0, %v2547
      %2549 = vmatmul.f32.gmra.mxu0 %v2423
      %v2550 = vpop.f32.mrf.mxu0
      %v2551 = vadd.f32 0.0, %v2550
      %2552 = vmatmul.f32.gmra.mxu0 %v2426
      %v2553 = vpop.f32.mrf.mxu0
      %v2554 = vadd.f32 0.0, %v2553
      %2555 = vmatmul.f32.gmra.mxu0 %v2429
      %v2556 = vpop.f32.mrf.mxu0
      %v2557 = vadd.f32 0.0, %v2556
      %2558 = vmatmul.f32.gmra.mxu0 %v2432
      %v2559 = vpop.f32.mrf.mxu0
      %v2560 = vadd.f32 0.0, %v2559
      %2561 = vmatmul.f32.gmra.mxu0 %v2435
      %v2562 = vpop.f32.mrf.mxu0
      %v2563 = vadd.f32 0.0, %v2562
      %2564 = vmatmul.f32.gmra.mxu0 %v2438
      %v2565 = vpop.f32.mrf.mxu0
      %v2566 = vadd.f32 0.0, %v2565
      %2567 = vmatmul.f32.gmra.mxu0 %v2441
      %v2568 = vpop.f32.mrf.mxu0
      %v2569 = vadd.f32 0.0, %v2568
      %2570 = vmatmul.f32.gmra.mxu0 %v2444
      %v2571 = vpop.f32.mrf.mxu0
      %v2572 = vadd.f32 0.0, %v2571
      %2573 = vmatmul.f32.gmra.mxu0 %v2447
      %v2574 = vpop.f32.mrf.mxu0
      %v2575 = vadd.f32 0.0, %v2574
      %2576 = vmatmul.f32.gmra.mxu0 %v2450
      %v2577 = vpop.f32.mrf.mxu0
      %v2578 = vadd.f32 0.0, %v2577
      %2579 = vmatmul.f32.gmra.mxu0 %v2453
      %v2580 = vpop.f32.mrf.mxu0
      %v2581 = vadd.f32 0.0, %v2580
      %2582 = vmatmul.f32.gmra.mxu0 %v2456
      %v2583 = vpop.f32.mrf.mxu0
      %v2584 = vadd.f32 0.0, %v2583
      %2585 = vmatmul.f32.gmra.mxu0 %v2459
      %v2586 = vpop.f32.mrf.mxu0
      %v2587 = vadd.f32 0.0, %v2586
      %2588 = vmatmul.f32.gmra.mxu0 %v2462
      %v2589 = vpop.f32.mrf.mxu0
      %v2590 = vadd.f32 0.0, %v2589
      %2591 = vmatmul.f32.gmra.mxu0 %v2465
      %v2592 = vpop.f32.mrf.mxu0
      %v2593 = vadd.f32 0.0, %v2592
      %2594 = vmatmul.f32.gmra.mxu0 %v2468
      %v2595 = vpop.f32.mrf.mxu0
      %v2596 = vadd.f32 0.0, %v2595
      %2597 = vmatmul.f32.gmra.mxu0 %v2471
      %v2598 = vpop.f32.mrf.mxu0
      %v2599 = vadd.f32 0.0, %v2598
      %2600 = vmatmul.f32.gmra.mxu0 %v2474
      %v2601 = vpop.f32.mrf.mxu0
      %v2602 = vadd.f32 0.0, %v2601
      %2603 = vmatmul.f32.gmra.mxu0 %v2477
      %v2604 = vpop.f32.mrf.mxu0
      %v2605 = vadd.f32 0.0, %v2604
      %2606 = vdwg.mxu0
      %v2607 = vadd.f32 %v2297, %v2500
      %v2608 = vadd.f32 %v2298, %v2503
      %v2609 = vadd.f32 %v2299, %v2506
      %v2610 = vadd.f32 %v2300, %v2509
      %v2611 = vadd.f32 %v2301, %v2512
      %v2612 = vadd.f32 %v2302, %v2515
      %v2613 = vadd.f32 %v2303, %v2518
      %v2614 = vadd.f32 %v2304, %v2521
      %v2615 = vadd.f32 %v2305, %v2524
      %v2616 = vadd.f32 %v2306, %v2527
      %v2617 = vadd.f32 %v2307, %v2530
      %v2618 = vadd.f32 %v2308, %v2533
      %v2619 = vadd.f32 %v2309, %v2536
      %v2620 = vadd.f32 %v2310, %v2539
      %v2621 = vadd.f32 %v2311, %v2542
      %v2622 = vadd.f32 %v2312, %v2545
      %v2623 = vadd.f32 %v2313, %v2548
      %v2624 = vadd.f32 %v2314, %v2551
      %v2625 = vadd.f32 %v2315, %v2554
      %v2626 = vadd.f32 %v2316, %v2557
      %v2627 = vadd.f32 %v2317, %v2560
      %v2628 = vadd.f32 %v2318, %v2563
      %v2629 = vadd.f32 %v2319, %v2566
      %v2630 = vadd.f32 %v2320, %v2569
      %v2631 = vadd.f32 %v2321, %v2572
      %v2632 = vadd.f32 %v2322, %v2575
      %v2633 = vadd.f32 %v2323, %v2578
      %v2634 = vadd.f32 %v2324, %v2581
      %v2635 = vadd.f32 %v2325, %v2584
      %v2636 = vadd.f32 %v2326, %v2587
      %v2637 = vadd.f32 %v2327, %v2590
      %v2638 = vadd.f32 %v2328, %v2593
      %v2639 = vadd.f32 %v2329, %v2596
      %v2640 = vadd.f32 %v2330, %v2599
      %v2641 = vadd.f32 %v2331, %v2602
      %v2642 = vadd.f32 %v2332, %v2605
      %v2643 = vld [vmem:[%s192 + $0x26] sm:$0xff]
      %v2644 = vld [vmem:[%s192 + $0x2e] sm:$0xff]
      %v2645 = vld [vmem:[%s192 + $0x36] sm:$0xff]
      %v2646 = vld [vmem:[%s192 + $0x3e] sm:$0xff]
      %v2647 = vld [vmem:[%s192 + $0x46] sm:$0xff]
      %v2648 = vld [vmem:[%s192 + $0x4e] sm:$0xff]
      %v2649 = vld [vmem:[%s192 + $0x56] sm:$0xff]
      %v2650 = vld [vmem:[%s192 + $0x5e] sm:$0xff]
      %v2651 = vld [vmem:[%s192 + $0x66] sm:$0xff]
      %v2652 = vld [vmem:[%s192 + $0x6e] sm:$0xff]
      %v2653 = vld [vmem:[%s192 + $0x76] sm:$0xff]
      %v2654 = vld [vmem:[%s192 + $0x7e] sm:$0xff]
      %v2655 = vld [vmem:[%s192 + $0x86] sm:$0xff]
      %v2656 = vld [vmem:[%s192 + $0x8e] sm:$0xff]
      %v2657 = vld [vmem:[%s192 + $0x96] sm:$0xff]
      %v2658 = vld [vmem:[%s192 + $0x9e] sm:$0xff]
      %v2659 = vld [vmem:[%s192 + $0xa6] sm:$0xff]
      %v2660 = vld [vmem:[%s192 + $0xae] sm:$0xff]
      %v2661 = vld [vmem:[%s192 + $0xb6] sm:$0xff]
      %v2662 = vld [vmem:[%s192 + $0xbe] sm:$0xff]
      %v2663 = vld [vmem:[%s192 + $0xc6] sm:$0xff]
      %v2664 = vld [vmem:[%s192 + $0xce] sm:$0xff]
      %v2665 = vld [vmem:[%s192 + $0xd6] sm:$0xff]
      %v2666 = vld [vmem:[%s192 + $0xde] sm:$0xff]
      %v2667 = vld [vmem:[%s192 + $0xe6] sm:$0xff]
      %v2668 = vld [vmem:[%s192 + $0xee] sm:$0xff]
      %v2669 = vld [vmem:[%s192 + $0xf6] sm:$0xff]
      %v2670 = vld [vmem:[%s192 + $0xfe] sm:$0xff]
      %v2671 = vld [vmem:[%s192 + $0x106] sm:$0xff]
      %v2672 = vld [vmem:[%s192 + $0x10e] sm:$0xff]
      %v2673 = vld [vmem:[%s192 + $0x116] sm:$0xff]
      %v2674 = vld [vmem:[%s192 + $0x11e] sm:$0xff]
      %v2675 = vld [vmem:[%s192 + $0x126] sm:$0xff]
      %v2676 = vld [vmem:[%s192 + $0x12e] sm:$0xff]
      %v2677 = vld [vmem:[%s192 + $0x136] sm:$0xff]
      %v2678 = vld [vmem:[%s192 + $0x13e] sm:$0xff]
      %s2679 = scalar_lea.vmem %s2, 32
      %v2680 = vld [vmem:[%s2679] sm:$0xf]
      %v2682 = vsel %vm309, %v2643, 0
      %v2685 = vsel %vm309, %v2644, 0
      %v2688 = vsel %vm309, %v2645, 0
      %v2691 = vsel %vm309, %v2646, 0
      %v2694 = vsel %vm309, %v2647, 0
      %v2697 = vsel %vm309, %v2648, 0
      %v2700 = vsel %vm309, %v2649, 0
      %v2703 = vsel %vm309, %v2650, 0
      %v2706 = vsel %vm309, %v2651, 0
      %v2709 = vsel %vm309, %v2652, 0
      %v2712 = vsel %vm309, %v2653, 0
      %v2715 = vsel %vm309, %v2654, 0
      %v2718 = vsel %vm309, %v2655, 0
      %v2721 = vsel %vm309, %v2656, 0
      %v2724 = vsel %vm309, %v2657, 0
      %v2727 = vsel %vm309, %v2658, 0
      %v2730 = vsel %vm309, %v2659, 0
      %v2733 = vsel %vm309, %v2660, 0
      %v2736 = vsel %vm309, %v2661, 0
      %v2739 = vsel %vm309, %v2662, 0
      %v2742 = vsel %vm309, %v2663, 0
      %v2745 = vsel %vm309, %v2664, 0
      %v2748 = vsel %vm309, %v2665, 0
      %v2751 = vsel %vm309, %v2666, 0
      %v2754 = vsel %vm309, %v2667, 0
      %v2757 = vsel %vm309, %v2668, 0
      %v2760 = vsel %vm309, %v2669, 0
      %v2763 = vsel %vm309, %v2670, 0
      %v2766 = vsel %vm309, %v2671, 0
      %v2769 = vsel %vm309, %v2672, 0
      %v2772 = vsel %vm309, %v2673, 0
      %v2775 = vsel %vm309, %v2674, 0
      %v2778 = vsel %vm309, %v2675, 0
      %v2781 = vsel %vm309, %v2676, 0
      %v2784 = vsel %vm309, %v2677, 0
      %v2787 = vsel %vm309, %v2678, 0
      %v2790 = vsel %vm418, %v2680, 0
      %2792 = vmatpush.msra.mxu0 0.0
      %2793 = vmatpush.msra.mxu0 0.0
      %2794 = vmatpush.msra.mxu0 0.0
      %2795 = vmatpush.msra.mxu0 0.0
      %2796 = vmatpush.msra.mxu0 0.0
      %2797 = vmatpush.msra.mxu0 0.0
      %2798 = vmatpush.msra.mxu0 0.0
      %2799 = vmatpush.msra.mxu0 0.0
      %2800 = vmatpush.msra.mxu0 0.0
      %2801 = vmatpush.msra.mxu0 0.0
      %2802 = vmatpush.msra.mxu0 0.0
      %2803 = vmatpush.msra.mxu0 0.0
      %2804 = vmatpush.msra.mxu0 0.0
      %2805 = vmatpush.msra.mxu0 0.0
      %2806 = vmatpush.msra.mxu0 0.0
      %2807 = vmatpush.msra.mxu0 %v2790
      %2808 = vmatmul.f32.gmra.mxu0 %v2682
      %v2809 = vpop.f32.mrf.mxu0
      %v2810 = vadd.f32 0.0, %v2809
      %2811 = vmatmul.f32.gmra.mxu0 %v2685
      %v2812 = vpop.f32.mrf.mxu0
      %v2813 = vadd.f32 0.0, %v2812
      %2814 = vmatmul.f32.gmra.mxu0 %v2688
      %v2815 = vpop.f32.mrf.mxu0
      %v2816 = vadd.f32 0.0, %v2815
      %2817 = vmatmul.f32.gmra.mxu0 %v2691
      %v2818 = vpop.f32.mrf.mxu0
      %v2819 = vadd.f32 0.0, %v2818
      %2820 = vmatmul.f32.gmra.mxu0 %v2694
      %v2821 = vpop.f32.mrf.mxu0
      %v2822 = vadd.f32 0.0, %v2821
      %2823 = vmatmul.f32.gmra.mxu0 %v2697
      %v2824 = vpop.f32.mrf.mxu0
      %v2825 = vadd.f32 0.0, %v2824
      %2826 = vmatmul.f32.gmra.mxu0 %v2700
      %v2827 = vpop.f32.mrf.mxu0
      %v2828 = vadd.f32 0.0, %v2827
      %2829 = vmatmul.f32.gmra.mxu0 %v2703
      %v2830 = vpop.f32.mrf.mxu0
      %v2831 = vadd.f32 0.0, %v2830
      %2832 = vmatmul.f32.gmra.mxu0 %v2706
      %v2833 = vpop.f32.mrf.mxu0
      %v2834 = vadd.f32 0.0, %v2833
      %2835 = vmatmul.f32.gmra.mxu0 %v2709
      %v2836 = vpop.f32.mrf.mxu0
      %v2837 = vadd.f32 0.0, %v2836
      %2838 = vmatmul.f32.gmra.mxu0 %v2712
      %v2839 = vpop.f32.mrf.mxu0
      %v2840 = vadd.f32 0.0, %v2839
      %2841 = vmatmul.f32.gmra.mxu0 %v2715
      %v2842 = vpop.f32.mrf.mxu0
      %v2843 = vadd.f32 0.0, %v2842
      %2844 = vmatmul.f32.gmra.mxu0 %v2718
      %v2845 = vpop.f32.mrf.mxu0
      %v2846 = vadd.f32 0.0, %v2845
      %2847 = vmatmul.f32.gmra.mxu0 %v2721
      %v2848 = vpop.f32.mrf.mxu0
      %v2849 = vadd.f32 0.0, %v2848
      %2850 = vmatmul.f32.gmra.mxu0 %v2724
      %v2851 = vpop.f32.mrf.mxu0
      %v2852 = vadd.f32 0.0, %v2851
      %2853 = vmatmul.f32.gmra.mxu0 %v2727
      %v2854 = vpop.f32.mrf.mxu0
      %v2855 = vadd.f32 0.0, %v2854
      %2856 = vmatmul.f32.gmra.mxu0 %v2730
      %v2857 = vpop.f32.mrf.mxu0
      %v2858 = vadd.f32 0.0, %v2857
      %2859 = vmatmul.f32.gmra.mxu0 %v2733
      %v2860 = vpop.f32.mrf.mxu0
      %v2861 = vadd.f32 0.0, %v2860
      %2862 = vmatmul.f32.gmra.mxu0 %v2736
      %v2863 = vpop.f32.mrf.mxu0
      %v2864 = vadd.f32 0.0, %v2863
      %2865 = vmatmul.f32.gmra.mxu0 %v2739
      %v2866 = vpop.f32.mrf.mxu0
      %v2867 = vadd.f32 0.0, %v2866
      %2868 = vmatmul.f32.gmra.mxu0 %v2742
      %v2869 = vpop.f32.mrf.mxu0
      %v2870 = vadd.f32 0.0, %v2869
      %2871 = vmatmul.f32.gmra.mxu0 %v2745
      %v2872 = vpop.f32.mrf.mxu0
      %v2873 = vadd.f32 0.0, %v2872
      %2874 = vmatmul.f32.gmra.mxu0 %v2748
      %v2875 = vpop.f32.mrf.mxu0
      %v2876 = vadd.f32 0.0, %v2875
      %2877 = vmatmul.f32.gmra.mxu0 %v2751
      %v2878 = vpop.f32.mrf.mxu0
      %v2879 = vadd.f32 0.0, %v2878
      %2880 = vmatmul.f32.gmra.mxu0 %v2754
      %v2881 = vpop.f32.mrf.mxu0
      %v2882 = vadd.f32 0.0, %v2881
      %2883 = vmatmul.f32.gmra.mxu0 %v2757
      %v2884 = vpop.f32.mrf.mxu0
      %v2885 = vadd.f32 0.0, %v2884
      %2886 = vmatmul.f32.gmra.mxu0 %v2760
      %v2887 = vpop.f32.mrf.mxu0
      %v2888 = vadd.f32 0.0, %v2887
      %2889 = vmatmul.f32.gmra.mxu0 %v2763
      %v2890 = vpop.f32.mrf.mxu0
      %v2891 = vadd.f32 0.0, %v2890
      %2892 = vmatmul.f32.gmra.mxu0 %v2766
      %v2893 = vpop.f32.mrf.mxu0
      %v2894 = vadd.f32 0.0, %v2893
      %2895 = vmatmul.f32.gmra.mxu0 %v2769
      %v2896 = vpop.f32.mrf.mxu0
      %v2897 = vadd.f32 0.0, %v2896
      %2898 = vmatmul.f32.gmra.mxu0 %v2772
      %v2899 = vpop.f32.mrf.mxu0
      %v2900 = vadd.f32 0.0, %v2899
      %2901 = vmatmul.f32.gmra.mxu0 %v2775
      %v2902 = vpop.f32.mrf.mxu0
      %v2903 = vadd.f32 0.0, %v2902
      %2904 = vmatmul.f32.gmra.mxu0 %v2778
      %v2905 = vpop.f32.mrf.mxu0
      %v2906 = vadd.f32 0.0, %v2905
      %2907 = vmatmul.f32.gmra.mxu0 %v2781
      %v2908 = vpop.f32.mrf.mxu0
      %v2909 = vadd.f32 0.0, %v2908
      %2910 = vmatmul.f32.gmra.mxu0 %v2784
      %v2911 = vpop.f32.mrf.mxu0
      %v2912 = vadd.f32 0.0, %v2911
      %2913 = vmatmul.f32.gmra.mxu0 %v2787
      %v2914 = vpop.f32.mrf.mxu0
      %v2915 = vadd.f32 0.0, %v2914
      %2916 = vdwg.mxu0
      %v2917 = vadd.f32 %v2607, %v2810
      %v2918 = vadd.f32 %v2608, %v2813
      %v2919 = vadd.f32 %v2609, %v2816
      %v2920 = vadd.f32 %v2610, %v2819
      %v2921 = vadd.f32 %v2611, %v2822
      %v2922 = vadd.f32 %v2612, %v2825
      %v2923 = vadd.f32 %v2613, %v2828
      %v2924 = vadd.f32 %v2614, %v2831
      %v2925 = vadd.f32 %v2615, %v2834
      %v2926 = vadd.f32 %v2616, %v2837
      %v2927 = vadd.f32 %v2617, %v2840
      %v2928 = vadd.f32 %v2618, %v2843
      %v2929 = vadd.f32 %v2619, %v2846
      %v2930 = vadd.f32 %v2620, %v2849
      %v2931 = vadd.f32 %v2621, %v2852
      %v2932 = vadd.f32 %v2622, %v2855
      %v2933 = vadd.f32 %v2623, %v2858
      %v2934 = vadd.f32 %v2624, %v2861
      %v2935 = vadd.f32 %v2625, %v2864
      %v2936 = vadd.f32 %v2626, %v2867
      %v2937 = vadd.f32 %v2627, %v2870
      %v2938 = vadd.f32 %v2628, %v2873
      %v2939 = vadd.f32 %v2629, %v2876
      %v2940 = vadd.f32 %v2630, %v2879
      %v2941 = vadd.f32 %v2631, %v2882
      %v2942 = vadd.f32 %v2632, %v2885
      %v2943 = vadd.f32 %v2633, %v2888
      %v2944 = vadd.f32 %v2634, %v2891
      %v2945 = vadd.f32 %v2635, %v2894
      %v2946 = vadd.f32 %v2636, %v2897
      %v2947 = vadd.f32 %v2637, %v2900
      %v2948 = vadd.f32 %v2638, %v2903
      %v2949 = vadd.f32 %v2639, %v2906
      %v2950 = vadd.f32 %v2640, %v2909
      %v2951 = vadd.f32 %v2641, %v2912
      %v2952 = vadd.f32 %v2642, %v2915
      %2954 = vset.pattern.permute.xlu0 0
      %2955 = vperm.xlu0 %2954, %v198
      %v2956 = vpop.permute.xlu0 %2955
      %2959 = vset.pattern.permute.xlu0 0
      %2960 = vperm.xlu0 %2959, %v199
      %v2961 = vpop.permute.xlu0 %2960
      %2964 = vset.pattern.permute.xlu0 0
      %2965 = vperm.xlu0 %2964, %v200
      %v2966 = vpop.permute.xlu0 %2965
      %2969 = vset.pattern.permute.xlu0 0
      %2970 = vperm.xlu0 %2969, %v201
      %v2971 = vpop.permute.xlu0 %2970
      %2974 = vset.pattern.permute.xlu0 0
      %2975 = vperm.xlu0 %2974, %v202
      %v2976 = vpop.permute.xlu0 %2975
      %2979 = vset.pattern.permute.xlu0 0
      %2980 = vperm.xlu0 %2979, %v203
      %v2981 = vpop.permute.xlu0 %2980
      %2984 = vset.pattern.permute.xlu0 0
      %2985 = vperm.xlu0 %2984, %v204
      %v2986 = vpop.permute.xlu0 %2985
      %2989 = vset.pattern.permute.xlu0 0
      %2990 = vperm.xlu0 %2989, %v205
      %v2991 = vpop.permute.xlu0 %2990
      %2994 = vset.pattern.permute.xlu0 0
      %2995 = vperm.xlu0 %2994, %v206
      %v2996 = vpop.permute.xlu0 %2995
      %2999 = vset.pattern.permute.xlu0 0
      %3000 = vperm.xlu0 %2999, %v207
      %v3001 = vpop.permute.xlu0 %3000
      %3004 = vset.pattern.permute.xlu0 0
      %3005 = vperm.xlu0 %3004, %v208
      %v3006 = vpop.permute.xlu0 %3005
      %3009 = vset.pattern.permute.xlu0 0
      %3010 = vperm.xlu0 %3009, %v209
      %v3011 = vpop.permute.xlu0 %3010
      %3014 = vset.pattern.permute.xlu0 0
      %3015 = vperm.xlu0 %3014, %v210
      %v3016 = vpop.permute.xlu0 %3015
      %3019 = vset.pattern.permute.xlu0 0
      %3020 = vperm.xlu0 %3019, %v211
      %v3021 = vpop.permute.xlu0 %3020
      %3024 = vset.pattern.permute.xlu0 0
      %3025 = vperm.xlu0 %3024, %v212
      %v3026 = vpop.permute.xlu0 %3025
      %3029 = vset.pattern.permute.xlu0 0
      %3030 = vperm.xlu0 %3029, %v213
      %v3031 = vpop.permute.xlu0 %3030
      %3034 = vset.pattern.permute.xlu0 0
      %3035 = vperm.xlu0 %3034, %v214
      %v3036 = vpop.permute.xlu0 %3035
      %3039 = vset.pattern.permute.xlu0 0
      %3040 = vperm.xlu0 %3039, %v215
      %v3041 = vpop.permute.xlu0 %3040
      %3044 = vset.pattern.permute.xlu0 0
      %3045 = vperm.xlu0 %3044, %v216
      %v3046 = vpop.permute.xlu0 %3045
      %3049 = vset.pattern.permute.xlu0 0
      %3050 = vperm.xlu0 %3049, %v217
      %v3051 = vpop.permute.xlu0 %3050
      %3054 = vset.pattern.permute.xlu0 0
      %3055 = vperm.xlu0 %3054, %v218
      %v3056 = vpop.permute.xlu0 %3055
      %3059 = vset.pattern.permute.xlu0 0
      %3060 = vperm.xlu0 %3059, %v219
      %v3061 = vpop.permute.xlu0 %3060
      %3064 = vset.pattern.permute.xlu0 0
      %3065 = vperm.xlu0 %3064, %v220
      %v3066 = vpop.permute.xlu0 %3065
      %3069 = vset.pattern.permute.xlu0 0
      %3070 = vperm.xlu0 %3069, %v221
      %v3071 = vpop.permute.xlu0 %3070
      %3074 = vset.pattern.permute.xlu0 0
      %3075 = vperm.xlu0 %3074, %v222
      %v3076 = vpop.permute.xlu0 %3075
      %3079 = vset.pattern.permute.xlu0 0
      %3080 = vperm.xlu0 %3079, %v223
      %v3081 = vpop.permute.xlu0 %3080
      %3084 = vset.pattern.permute.xlu0 0
      %3085 = vperm.xlu0 %3084, %v224
      %v3086 = vpop.permute.xlu0 %3085
      %3089 = vset.pattern.permute.xlu0 0
      %3090 = vperm.xlu0 %3089, %v225
      %v3091 = vpop.permute.xlu0 %3090
      %3094 = vset.pattern.permute.xlu0 0
      %3095 = vperm.xlu0 %3094, %v226
      %v3096 = vpop.permute.xlu0 %3095
      %3099 = vset.pattern.permute.xlu0 0
      %3100 = vperm.xlu0 %3099, %v227
      %v3101 = vpop.permute.xlu0 %3100
      %3104 = vset.pattern.permute.xlu0 0
      %3105 = vperm.xlu0 %3104, %v228
      %v3106 = vpop.permute.xlu0 %3105
      %3109 = vset.pattern.permute.xlu0 0
      %3110 = vperm.xlu0 %3109, %v229
      %v3111 = vpop.permute.xlu0 %3110
      %3114 = vset.pattern.permute.xlu0 0
      %3115 = vperm.xlu0 %3114, %v230
      %v3116 = vpop.permute.xlu0 %3115
      %3119 = vset.pattern.permute.xlu0 0
      %3120 = vperm.xlu0 %3119, %v231
      %v3121 = vpop.permute.xlu0 %3120
      %3124 = vset.pattern.permute.xlu0 0
      %3125 = vperm.xlu0 %3124, %v232
      %v3126 = vpop.permute.xlu0 %3125
      %3129 = vset.pattern.permute.xlu0 0
      %3130 = vperm.xlu0 %3129, %v233
      %v3131 = vpop.permute.xlu0 %3130
      %v3133 = vmul.f32 %v2917, %v2956
      %v3134 = vmul.f32 %v2918, %v2961
      %v3135 = vmul.f32 %v2919, %v2966
      %v3136 = vmul.f32 %v2920, %v2971
      %v3137 = vmul.f32 %v2921, %v2976
      %v3138 = vmul.f32 %v2922, %v2981
      %v3139 = vmul.f32 %v2923, %v2986
      %v3140 = vmul.f32 %v2924, %v2991
      %v3141 = vmul.f32 %v2925, %v2996
      %v3142 = vmul.f32 %v2926, %v3001
      %v3143 = vmul.f32 %v2927, %v3006
      %v3144 = vmul.f32 %v2928, %v3011
      %v3145 = vmul.f32 %v2929, %v3016
      %v3146 = vmul.f32 %v2930, %v3021
      %v3147 = vmul.f32 %v2931, %v3026
      %v3148 = vmul.f32 %v2932, %v3031
      %v3149 = vmul.f32 %v2933, %v3036
      %v3150 = vmul.f32 %v2934, %v3041
      %v3151 = vmul.f32 %v2935, %v3046
      %v3152 = vmul.f32 %v2936, %v3051
      %v3153 = vmul.f32 %v2937, %v3056
      %v3154 = vmul.f32 %v2938, %v3061
      %v3155 = vmul.f32 %v2939, %v3066
      %v3156 = vmul.f32 %v2940, %v3071
      %v3157 = vmul.f32 %v2941, %v3076
      %v3158 = vmul.f32 %v2942, %v3081
      %v3159 = vmul.f32 %v2943, %v3086
      %v3160 = vmul.f32 %v2944, %v3091
      %v3161 = vmul.f32 %v2945, %v3096
      %v3162 = vmul.f32 %v2946, %v3101
      %v3163 = vmul.f32 %v2947, %v3106
      %v3164 = vmul.f32 %v2948, %v3111
      %v3165 = vmul.f32 %v2949, %v3116
      %v3166 = vmul.f32 %v2950, %v3121
      %v3167 = vmul.f32 %v2951, %v3126
      %v3168 = vmul.f32 %v2952, %v3131
      %vm3169 = vcmask 64512
      %v3170 = vsel %vm3169, %v3133, 0.0
      %v3171 = vsel %vm3169, %v3134, 0.0
      %v3172 = vadd.f32 %v3170, %v3171
      %v3173 = vsel %vm3169, %v3135, 0.0
      %v3174 = vadd.f32 %v3172, %v3173
      %v3175 = vsel %vm3169, %v3136, 0.0
      %v3176 = vadd.f32 %v3174, %v3175
      %v3177 = vsel %vm3169, %v3137, 0.0
      %v3178 = vadd.f32 %v3176, %v3177
      %v3179 = vsel %vm3169, %v3138, 0.0
      %v3180 = vadd.f32 %v3178, %v3179
      %v3181 = vsel %vm3169, %v3139, 0.0
      %v3182 = vadd.f32 %v3180, %v3181
      %v3183 = vsel %vm3169, %v3140, 0.0
      %v3184 = vadd.f32 %v3182, %v3183
      %v3185 = vsel %vm3169, %v3141, 0.0
      %v3186 = vadd.f32 %v3184, %v3185
      %v3187 = vsel %vm3169, %v3142, 0.0
      %v3188 = vadd.f32 %v3186, %v3187
      %v3189 = vsel %vm3169, %v3143, 0.0
      %v3190 = vadd.f32 %v3188, %v3189
      %v3191 = vsel %vm3169, %v3144, 0.0
      %v3192 = vadd.f32 %v3190, %v3191
      %v3193 = vsel %vm3169, %v3145, 0.0
      %v3194 = vadd.f32 %v3192, %v3193
      %v3195 = vsel %vm3169, %v3146, 0.0
      %v3196 = vadd.f32 %v3194, %v3195
      %v3197 = vsel %vm3169, %v3147, 0.0
      %v3198 = vadd.f32 %v3196, %v3197
      %v3199 = vsel %vm3169, %v3148, 0.0
      %v3200 = vadd.f32 %v3198, %v3199
      %v3201 = vsel %vm3169, %v3149, 0.0
      %v3202 = vadd.f32 %v3200, %v3201
      %v3203 = vsel %vm3169, %v3150, 0.0
      %v3204 = vadd.f32 %v3202, %v3203
      %v3205 = vsel %vm3169, %v3151, 0.0
      %v3206 = vadd.f32 %v3204, %v3205
      %v3207 = vsel %vm3169, %v3152, 0.0
      %v3208 = vadd.f32 %v3206, %v3207
      %v3209 = vsel %vm3169, %v3153, 0.0
      %v3210 = vadd.f32 %v3208, %v3209
      %v3211 = vsel %vm3169, %v3154, 0.0
      %v3212 = vadd.f32 %v3210, %v3211
      %v3213 = vsel %vm3169, %v3155, 0.0
      %v3214 = vadd.f32 %v3212, %v3213
      %v3215 = vsel %vm3169, %v3156, 0.0
      %v3216 = vadd.f32 %v3214, %v3215
      %v3217 = vsel %vm3169, %v3157, 0.0
      %v3218 = vadd.f32 %v3216, %v3217
      %v3219 = vsel %vm3169, %v3158, 0.0
      %v3220 = vadd.f32 %v3218, %v3219
      %v3221 = vsel %vm3169, %v3159, 0.0
      %v3222 = vadd.f32 %v3220, %v3221
      %v3223 = vsel %vm3169, %v3160, 0.0
      %v3224 = vadd.f32 %v3222, %v3223
      %v3225 = vsel %vm3169, %v3161, 0.0
      %v3226 = vadd.f32 %v3224, %v3225
      %v3227 = vsel %vm3169, %v3162, 0.0
      %v3228 = vadd.f32 %v3226, %v3227
      %v3229 = vsel %vm3169, %v3163, 0.0
      %v3230 = vadd.f32 %v3228, %v3229
      %v3231 = vsel %vm3169, %v3164, 0.0
      %v3232 = vadd.f32 %v3230, %v3231
      %v3233 = vsel %vm3169, %v3165, 0.0
      %v3234 = vadd.f32 %v3232, %v3233
      %v3235 = vsel %vm3169, %v3166, 0.0
      %v3236 = vadd.f32 %v3234, %v3235
      %v3237 = vsel %vm3169, %v3167, 0.0
      %v3238 = vadd.f32 %v3236, %v3237
      %v3239 = vsel %vm3169, %v3168, 0.0
      %v3240 = vadd.f32 %v3238, %v3239
      %v3241 = vrot.slane %v3240, 4
      %v3242 = vadd.f32 %v3240, %v3241
      %v3243 = vrot.slane %v3242, 2
      %v3244 = vadd.f32 %v3242, %v3243
      %v3245 = vrot.slane %v3244, 1
      %v3246 = vadd.f32 %v3244, %v3245
      %v3247 = vmul.f32 %v3246, 0.00390625
      %v3248 = vmul.f32 %v3133, %v3133
      %v3249 = vmul.f32 %v3134, %v3134
      %v3250 = vmul.f32 %v3135, %v3135
      %v3251 = vmul.f32 %v3136, %v3136
      %v3252 = vmul.f32 %v3137, %v3137
      %v3253 = vmul.f32 %v3138, %v3138
      %v3254 = vmul.f32 %v3139, %v3139
      %v3255 = vmul.f32 %v3140, %v3140
      %v3256 = vmul.f32 %v3141, %v3141
      %v3257 = vmul.f32 %v3142, %v3142
      %v3258 = vmul.f32 %v3143, %v3143
      %v3259 = vmul.f32 %v3144, %v3144
      %v3260 = vmul.f32 %v3145, %v3145
      %v3261 = vmul.f32 %v3146, %v3146
      %v3262 = vmul.f32 %v3147, %v3147
      %v3263 = vmul.f32 %v3148, %v3148
      %v3264 = vmul.f32 %v3149, %v3149
      %v3265 = vmul.f32 %v3150, %v3150
      %v3266 = vmul.f32 %v3151, %v3151
      %v3267 = vmul.f32 %v3152, %v3152
      %v3268 = vmul.f32 %v3153, %v3153
      %v3269 = vmul.f32 %v3154, %v3154
      %v3270 = vmul.f32 %v3155, %v3155
      %v3271 = vmul.f32 %v3156, %v3156
      %v3272 = vmul.f32 %v3157, %v3157
      %v3273 = vmul.f32 %v3158, %v3158
      %v3274 = vmul.f32 %v3159, %v3159
      %v3275 = vmul.f32 %v3160, %v3160
      %v3276 = vmul.f32 %v3161, %v3161
      %v3277 = vmul.f32 %v3162, %v3162
      %v3278 = vmul.f32 %v3163, %v3163
      %v3279 = vmul.f32 %v3164, %v3164
      %v3280 = vmul.f32 %v3165, %v3165
      %v3281 = vmul.f32 %v3166, %v3166
      %v3282 = vmul.f32 %v3167, %v3167
      %v3283 = vmul.f32 %v3168, %v3168
      %v3284 = vsel %vm3169, %v3248, 0.0
      %v3285 = vsel %vm3169, %v3249, 0.0
      %v3286 = vadd.f32 %v3284, %v3285
      %v3287 = vsel %vm3169, %v3250, 0.0
      %v3288 = vadd.f32 %v3286, %v3287
      %v3289 = vsel %vm3169, %v3251, 0.0
      %v3290 = vadd.f32 %v3288, %v3289
      %v3291 = vsel %vm3169, %v3252, 0.0
      %v3292 = vadd.f32 %v3290, %v3291
      %v3293 = vsel %vm3169, %v3253, 0.0
      %v3294 = vadd.f32 %v3292, %v3293
      %v3295 = vsel %vm3169, %v3254, 0.0
      %v3296 = vadd.f32 %v3294, %v3295
      %v3297 = vsel %vm3169, %v3255, 0.0
      %v3298 = vadd.f32 %v3296, %v3297
      %v3299 = vsel %vm3169, %v3256, 0.0
      %v3300 = vadd.f32 %v3298, %v3299
      %v3301 = vsel %vm3169, %v3257, 0.0
      %v3302 = vadd.f32 %v3300, %v3301
      %v3303 = vsel %vm3169, %v3258, 0.0
      %v3304 = vadd.f32 %v3302, %v3303
      %v3305 = vsel %vm3169, %v3259, 0.0
      %v3306 = vadd.f32 %v3304, %v3305
      %v3307 = vsel %vm3169, %v3260, 0.0
      %v3308 = vadd.f32 %v3306, %v3307
      %v3309 = vsel %vm3169, %v3261, 0.0
      %v3310 = vadd.f32 %v3308, %v3309
      %v3311 = vsel %vm3169, %v3262, 0.0
      %v3312 = vadd.f32 %v3310, %v3311
      %v3313 = vsel %vm3169, %v3263, 0.0
      %v3314 = vadd.f32 %v3312, %v3313
      %v3315 = vsel %vm3169, %v3264, 0.0
      %v3316 = vadd.f32 %v3314, %v3315
      %v3317 = vsel %vm3169, %v3265, 0.0
      %v3318 = vadd.f32 %v3316, %v3317
      %v3319 = vsel %vm3169, %v3266, 0.0
      %v3320 = vadd.f32 %v3318, %v3319
      %v3321 = vsel %vm3169, %v3267, 0.0
      %v3322 = vadd.f32 %v3320, %v3321
      %v3323 = vsel %vm3169, %v3268, 0.0
      %v3324 = vadd.f32 %v3322, %v3323
      %v3325 = vsel %vm3169, %v3269, 0.0
      %v3326 = vadd.f32 %v3324, %v3325
      %v3327 = vsel %vm3169, %v3270, 0.0
      %v3328 = vadd.f32 %v3326, %v3327
      %v3329 = vsel %vm3169, %v3271, 0.0
      %v3330 = vadd.f32 %v3328, %v3329
      %v3331 = vsel %vm3169, %v3272, 0.0
      %v3332 = vadd.f32 %v3330, %v3331
      %v3333 = vsel %vm3169, %v3273, 0.0
      %v3334 = vadd.f32 %v3332, %v3333
      %v3335 = vsel %vm3169, %v3274, 0.0
      %v3336 = vadd.f32 %v3334, %v3335
      %v3337 = vsel %vm3169, %v3275, 0.0
      %v3338 = vadd.f32 %v3336, %v3337
      %v3339 = vsel %vm3169, %v3276, 0.0
      %v3340 = vadd.f32 %v3338, %v3339
      %v3341 = vsel %vm3169, %v3277, 0.0
      %v3342 = vadd.f32 %v3340, %v3341
      %v3343 = vsel %vm3169, %v3278, 0.0
      %v3344 = vadd.f32 %v3342, %v3343
      %v3345 = vsel %vm3169, %v3279, 0.0
      %v3346 = vadd.f32 %v3344, %v3345
      %v3347 = vsel %vm3169, %v3280, 0.0
      %v3348 = vadd.f32 %v3346, %v3347
      %v3349 = vsel %vm3169, %v3281, 0.0
      %v3350 = vadd.f32 %v3348, %v3349
      %v3351 = vsel %vm3169, %v3282, 0.0
      %v3352 = vadd.f32 %v3350, %v3351
      %v3353 = vsel %vm3169, %v3283, 0.0
      %v3354 = vadd.f32 %v3352, %v3353
      %v3355 = vrot.slane %v3354, 4
      %v3356 = vadd.f32 %v3354, %v3355
      %v3357 = vrot.slane %v3356, 2
      %v3358 = vadd.f32 %v3356, %v3357
      %v3359 = vrot.slane %v3358, 1
      %v3360 = vadd.f32 %v3358, %v3359
      %v3361 = vmul.f32 %v3360, 0.00390625
      %v3362 = vmul.f32 %v3247, %v3247
      %v3363 = vsub.f32 %v3361, %v3362
      %v3364 = vadd.f32 %v3363, 1e-05
      %v3365 = vrsqrt.pop %v3364
      %v3366 = vmul.f32 %v3365, %v3364
      %v3367 = vmul.f32 %v3366, %v3365
      %v3368 = vmul.f32 0.5, %v3367
      %v3369 = vsub.f32 1.5, %v3368
      %v3370 = vmul.f32 %v3365, %v3369
      %vm3371 = vweird.f32 %v3364
      %vm3372 = vweird.f32 %v3365
      %vm3373 = vmor %vm3371, %vm3372
      %v3374 = vsel %vm3373, %v3365, %v3370
      %v3375 = vsub.f32 %v3133, %v3247
      %v3376 = vsub.f32 %v3134, %v3247
      %v3377 = vsub.f32 %v3135, %v3247
      %v3378 = vsub.f32 %v3136, %v3247
      %v3379 = vsub.f32 %v3137, %v3247
      %v3380 = vsub.f32 %v3138, %v3247
      %v3381 = vsub.f32 %v3139, %v3247
      %v3382 = vsub.f32 %v3140, %v3247
      %v3383 = vsub.f32 %v3141, %v3247
      %v3384 = vsub.f32 %v3142, %v3247
      %v3385 = vsub.f32 %v3143, %v3247
      %v3386 = vsub.f32 %v3144, %v3247
      %v3387 = vsub.f32 %v3145, %v3247
      %v3388 = vsub.f32 %v3146, %v3247
      %v3389 = vsub.f32 %v3147, %v3247
      %v3390 = vsub.f32 %v3148, %v3247
      %v3391 = vsub.f32 %v3149, %v3247
      %v3392 = vsub.f32 %v3150, %v3247
      %v3393 = vsub.f32 %v3151, %v3247
      %v3394 = vsub.f32 %v3152, %v3247
      %v3395 = vsub.f32 %v3153, %v3247
      %v3396 = vsub.f32 %v3154, %v3247
      %v3397 = vsub.f32 %v3155, %v3247
      %v3398 = vsub.f32 %v3156, %v3247
      %v3399 = vsub.f32 %v3157, %v3247
      %v3400 = vsub.f32 %v3158, %v3247
      %v3401 = vsub.f32 %v3159, %v3247
      %v3402 = vsub.f32 %v3160, %v3247
      %v3403 = vsub.f32 %v3161, %v3247
      %v3404 = vsub.f32 %v3162, %v3247
      %v3405 = vsub.f32 %v3163, %v3247
      %v3406 = vsub.f32 %v3164, %v3247
      %v3407 = vsub.f32 %v3165, %v3247
      %v3408 = vsub.f32 %v3166, %v3247
      %v3409 = vsub.f32 %v3167, %v3247
      %v3410 = vsub.f32 %v3168, %v3247
      %v3411 = vmul.f32 %v3375, %v3374
      %v3412 = vmul.f32 %v3376, %v3374
      %v3413 = vmul.f32 %v3377, %v3374
      %v3414 = vmul.f32 %v3378, %v3374
      %v3415 = vmul.f32 %v3379, %v3374
      %v3416 = vmul.f32 %v3380, %v3374
      %v3417 = vmul.f32 %v3381, %v3374
      %v3418 = vmul.f32 %v3382, %v3374
      %v3419 = vmul.f32 %v3383, %v3374
      %v3420 = vmul.f32 %v3384, %v3374
      %v3421 = vmul.f32 %v3385, %v3374
      %v3422 = vmul.f32 %v3386, %v3374
      %v3423 = vmul.f32 %v3387, %v3374
      %v3424 = vmul.f32 %v3388, %v3374
      %v3425 = vmul.f32 %v3389, %v3374
      %v3426 = vmul.f32 %v3390, %v3374
      %v3427 = vmul.f32 %v3391, %v3374
      %v3428 = vmul.f32 %v3392, %v3374
      %v3429 = vmul.f32 %v3393, %v3374
      %v3430 = vmul.f32 %v3394, %v3374
      %v3431 = vmul.f32 %v3395, %v3374
      %v3432 = vmul.f32 %v3396, %v3374
      %v3433 = vmul.f32 %v3397, %v3374
      %v3434 = vmul.f32 %v3398, %v3374
      %v3435 = vmul.f32 %v3399, %v3374
      %v3436 = vmul.f32 %v3400, %v3374
      %v3437 = vmul.f32 %v3401, %v3374
      %v3438 = vmul.f32 %v3402, %v3374
      %v3439 = vmul.f32 %v3403, %v3374
      %v3440 = vmul.f32 %v3404, %v3374
      %v3441 = vmul.f32 %v3405, %v3374
      %v3442 = vmul.f32 %v3406, %v3374
      %v3443 = vmul.f32 %v3407, %v3374
      %v3444 = vmul.f32 %v3408, %v3374
      %v3445 = vmul.f32 %v3409, %v3374
      %v3446 = vmul.f32 %v3410, %v3374
      %v3447 = vmax.f32 %v3411, 0.0
      %v3448 = vmax.f32 %v3412, 0.0
      %v3449 = vmax.f32 %v3413, 0.0
      %v3450 = vmax.f32 %v3414, 0.0
      %v3451 = vmax.f32 %v3415, 0.0
      %v3452 = vmax.f32 %v3416, 0.0
      %v3453 = vmax.f32 %v3417, 0.0
      %v3454 = vmax.f32 %v3418, 0.0
      %v3455 = vmax.f32 %v3419, 0.0
      %v3456 = vmax.f32 %v3420, 0.0
      %v3457 = vmax.f32 %v3421, 0.0
      %v3458 = vmax.f32 %v3422, 0.0
      %v3459 = vmax.f32 %v3423, 0.0
      %v3460 = vmax.f32 %v3424, 0.0
      %v3461 = vmax.f32 %v3425, 0.0
      %v3462 = vmax.f32 %v3426, 0.0
      %v3463 = vmax.f32 %v3427, 0.0
      %v3464 = vmax.f32 %v3428, 0.0
      %v3465 = vmax.f32 %v3429, 0.0
      %v3466 = vmax.f32 %v3430, 0.0
      %v3467 = vmax.f32 %v3431, 0.0
      %v3468 = vmax.f32 %v3432, 0.0
      %v3469 = vmax.f32 %v3433, 0.0
      %v3470 = vmax.f32 %v3434, 0.0
      %v3471 = vmax.f32 %v3435, 0.0
      %v3472 = vmax.f32 %v3436, 0.0
      %v3473 = vmax.f32 %v3437, 0.0
      %v3474 = vmax.f32 %v3438, 0.0
      %v3475 = vmax.f32 %v3439, 0.0
      %v3476 = vmax.f32 %v3440, 0.0
      %v3477 = vmax.f32 %v3441, 0.0
      %v3478 = vmax.f32 %v3442, 0.0
      %v3479 = vmax.f32 %v3443, 0.0
      %v3480 = vmax.f32 %v3444, 0.0
      %v3481 = vmax.f32 %v3445, 0.0
      %v3482 = vmax.f32 %v3446, 0.0
      %v3483 = vmul.f32 %v3447, %v2956
      %v3484 = vmul.f32 %v3448, %v2961
      %v3485 = vmul.f32 %v3449, %v2966
      %v3486 = vmul.f32 %v3450, %v2971
      %v3487 = vmul.f32 %v3451, %v2976
      %v3488 = vmul.f32 %v3452, %v2981
      %v3489 = vmul.f32 %v3453, %v2986
      %v3490 = vmul.f32 %v3454, %v2991
      %v3491 = vmul.f32 %v3455, %v2996
      %v3492 = vmul.f32 %v3456, %v3001
      %v3493 = vmul.f32 %v3457, %v3006
      %v3494 = vmul.f32 %v3458, %v3011
      %v3495 = vmul.f32 %v3459, %v3016
      %v3496 = vmul.f32 %v3460, %v3021
      %v3497 = vmul.f32 %v3461, %v3026
      %v3498 = vmul.f32 %v3462, %v3031
      %v3499 = vmul.f32 %v3463, %v3036
      %v3500 = vmul.f32 %v3464, %v3041
      %v3501 = vmul.f32 %v3465, %v3046
      %v3502 = vmul.f32 %v3466, %v3051
      %v3503 = vmul.f32 %v3467, %v3056
      %v3504 = vmul.f32 %v3468, %v3061
      %v3505 = vmul.f32 %v3469, %v3066
      %v3506 = vmul.f32 %v3470, %v3071
      %v3507 = vmul.f32 %v3471, %v3076
      %v3508 = vmul.f32 %v3472, %v3081
      %v3509 = vmul.f32 %v3473, %v3086
      %v3510 = vmul.f32 %v3474, %v3091
      %v3511 = vmul.f32 %v3475, %v3096
      %v3512 = vmul.f32 %v3476, %v3101
      %v3513 = vmul.f32 %v3477, %v3106
      %v3514 = vmul.f32 %v3478, %v3111
      %v3515 = vmul.f32 %v3479, %v3116
      %v3516 = vmul.f32 %v3480, %v3121
      %v3517 = vmul.f32 %v3481, %v3126
      %v3518 = vmul.f32 %v3482, %v3131
      %3519 = vst.msk [vmem:[#allocation2] sm:$0xff] %vm3169, 0.0
      %3520 = vst.msk [vmem:[#allocation2 + $0x8] sm:$0xff] %vm3169, 0.0
      %3521 = vst.msk [vmem:[#allocation2 + $0x10] sm:$0xff] %vm3169, 0.0
      %3522 = vst.msk [vmem:[#allocation2 + $0x18] sm:$0xff] %vm3169, 0.0
      %3523 = vst.msk [vmem:[#allocation2 + $0x20] sm:$0xff] %vm3169, 0.0
      %3524 = vst.msk [vmem:[#allocation2 + $0x28] sm:$0xff] %vm3169, 0.0
      %3525 = vst.msk [vmem:[#allocation2 + $0x30] sm:$0xff] %vm3169, 0.0
      %3526 = vst.msk [vmem:[#allocation2 + $0x38] sm:$0xff] %vm3169, 0.0
      %3527 = vst.msk [vmem:[#allocation2 + $0x40] sm:$0xff] %vm3169, 0.0
      %3528 = vst.msk [vmem:[#allocation2 + $0x48] sm:$0xff] %vm3169, 0.0
      %3529 = vst.msk [vmem:[#allocation2 + $0x50] sm:$0xff] %vm3169, 0.0
      %3530 = vst.msk [vmem:[#allocation2 + $0x58] sm:$0xff] %vm3169, 0.0
      %3531 = vst.msk [vmem:[#allocation2 + $0x60] sm:$0xff] %vm3169, 0.0
      %3532 = vst.msk [vmem:[#allocation2 + $0x68] sm:$0xff] %vm3169, 0.0
      %3533 = vst.msk [vmem:[#allocation2 + $0x70] sm:$0xff] %vm3169, 0.0
      %3534 = vst.msk [vmem:[#allocation2 + $0x78] sm:$0xff] %vm3169, 0.0
      %3535 = vst.msk [vmem:[#allocation2 + $0x80] sm:$0xff] %vm3169, 0.0
      %3536 = vst.msk [vmem:[#allocation2 + $0x88] sm:$0xff] %vm3169, 0.0
      %3537 = vst.msk [vmem:[#allocation2 + $0x90] sm:$0xff] %vm3169, 0.0
      %3538 = vst.msk [vmem:[#allocation2 + $0x98] sm:$0xff] %vm3169, 0.0
      %3539 = vst.msk [vmem:[#allocation2 + $0xa0] sm:$0xff] %vm3169, 0.0
      %3540 = vst.msk [vmem:[#allocation2 + $0xa8] sm:$0xff] %vm3169, 0.0
      %3541 = vst.msk [vmem:[#allocation2 + $0xb0] sm:$0xff] %vm3169, 0.0
      %3542 = vst.msk [vmem:[#allocation2 + $0xb8] sm:$0xff] %vm3169, 0.0
      %3543 = vst.msk [vmem:[#allocation2 + $0xc0] sm:$0xff] %vm3169, 0.0
      %3544 = vst.msk [vmem:[#allocation2 + $0xc8] sm:$0xff] %vm3169, 0.0
      %3545 = vst.msk [vmem:[#allocation2 + $0xd0] sm:$0xff] %vm3169, 0.0
      %3546 = vst.msk [vmem:[#allocation2 + $0xd8] sm:$0xff] %vm3169, 0.0
      %3547 = vst.msk [vmem:[#allocation2 + $0xe0] sm:$0xff] %vm3169, 0.0
      %3548 = vst.msk [vmem:[#allocation2 + $0xe8] sm:$0xff] %vm3169, 0.0
      %3549 = vst.msk [vmem:[#allocation2 + $0xf0] sm:$0xff] %vm3169, 0.0
      %3550 = vst.msk [vmem:[#allocation2 + $0xf8] sm:$0xff] %vm3169, 0.0
      %3551 = vst.msk [vmem:[#allocation2 + $0x100] sm:$0xff] %vm3169, 0.0
      %3552 = vst.msk [vmem:[#allocation2 + $0x108] sm:$0xff] %vm3169, 0.0
      %3553 = vst.msk [vmem:[#allocation2 + $0x110] sm:$0xff] %vm3169, 0.0
      %3554 = vst.msk [vmem:[#allocation2 + $0x118] sm:$0xff] %vm3169, 0.0
      %3555 = vst.msk [vmem:[#allocation2 + $0x120] sm:$0xff] %vm3169, 0.0
      %3556 = vst.msk [vmem:[#allocation2 + $0x128] sm:$0xff] %vm3169, 0.0
      %3557 = vst.msk [vmem:[#allocation2 + $0x130] sm:$0xff] %vm3169, 0.0
      %3558 = vst.msk [vmem:[#allocation2 + $0x138] sm:$0xff] %vm3169, 0.0
      %3559 = vst.msk [vmem:[#allocation2 + $0x140] sm:$0xff] %vm3169, 0.0
      %3560 = vst.msk [vmem:[#allocation2 + $0x13] sm:$0xff] %vm3169, %v3483
      %3561 = vst.msk [vmem:[#allocation2 + $0x1b] sm:$0xff] %vm3169, %v3484
      %3562 = vst.msk [vmem:[#allocation2 + $0x23] sm:$0xff] %vm3169, %v3485
      %3563 = vst.msk [vmem:[#allocation2 + $0x2b] sm:$0xff] %vm3169, %v3486
      %3564 = vst.msk [vmem:[#allocation2 + $0x33] sm:$0xff] %vm3169, %v3487
      %3565 = vst.msk [vmem:[#allocation2 + $0x3b] sm:$0xff] %vm3169, %v3488
      %3566 = vst.msk [vmem:[#allocation2 + $0x43] sm:$0xff] %vm3169, %v3489
      %3567 = vst.msk [vmem:[#allocation2 + $0x4b] sm:$0xff] %vm3169, %v3490
      %3568 = vst.msk [vmem:[#allocation2 + $0x53] sm:$0xff] %vm3169, %v3491
      %3569 = vst.msk [vmem:[#allocation2 + $0x5b] sm:$0xff] %vm3169, %v3492
      %3570 = vst.msk [vmem:[#allocation2 + $0x63] sm:$0xff] %vm3169, %v3493
      %3571 = vst.msk [vmem:[#allocation2 + $0x6b] sm:$0xff] %vm3169, %v3494
      %3572 = vst.msk [vmem:[#allocation2 + $0x73] sm:$0xff] %vm3169, %v3495
      %3573 = vst.msk [vmem:[#allocation2 + $0x7b] sm:$0xff] %vm3169, %v3496
      %3574 = vst.msk [vmem:[#allocation2 + $0x83] sm:$0xff] %vm3169, %v3497
      %3575 = vst.msk [vmem:[#allocation2 + $0x8b] sm:$0xff] %vm3169, %v3498
      %3576 = vst.msk [vmem:[#allocation2 + $0x93] sm:$0xff] %vm3169, %v3499
      %3577 = vst.msk [vmem:[#allocation2 + $0x9b] sm:$0xff] %vm3169, %v3500
      %3578 = vst.msk [vmem:[#allocation2 + $0xa3] sm:$0xff] %vm3169, %v3501
      %3579 = vst.msk [vmem:[#allocation2 + $0xab] sm:$0xff] %vm3169, %v3502
      %3580 = vst.msk [vmem:[#allocation2 + $0xb3] sm:$0xff] %vm3169, %v3503
      %3581 = vst.msk [vmem:[#allocation2 + $0xbb] sm:$0xff] %vm3169, %v3504
      %3582 = vst.msk [vmem:[#allocation2 + $0xc3] sm:$0xff] %vm3169, %v3505
      %3583 = vst.msk [vmem:[#allocation2 + $0xcb] sm:$0xff] %vm3169, %v3506
      %3584 = vst.msk [vmem:[#allocation2 + $0xd3] sm:$0xff] %vm3169, %v3507
      %3585 = vst.msk [vmem:[#allocation2 + $0xdb] sm:$0xff] %vm3169, %v3508
      %3586 = vst.msk [vmem:[#allocation2 + $0xe3] sm:$0xff] %vm3169, %v3509
      %3587 = vst.msk [vmem:[#allocation2 + $0xeb] sm:$0xff] %vm3169, %v3510
      %3588 = vst.msk [vmem:[#allocation2 + $0xf3] sm:$0xff] %vm3169, %v3511
      %3589 = vst.msk [vmem:[#allocation2 + $0xfb] sm:$0xff] %vm3169, %v3512
      %3590 = vst.msk [vmem:[#allocation2 + $0x103] sm:$0xff] %vm3169, %v3513
      %3591 = vst.msk [vmem:[#allocation2 + $0x10b] sm:$0xff] %vm3169, %v3514
      %3592 = vst.msk [vmem:[#allocation2 + $0x113] sm:$0xff] %vm3169, %v3515
      %3593 = vst.msk [vmem:[#allocation2 + $0x11b] sm:$0xff] %vm3169, %v3516
      %3594 = vst.msk [vmem:[#allocation2 + $0x123] sm:$0xff] %vm3169, %v3517
      %3595 = vst.msk [vmem:[#allocation2 + $0x12b] sm:$0xff] %vm3169, %v3518
      %v3596 = vld [vmem:[#allocation2] sm:$0xff]
      %v3597 = vld [vmem:[#allocation2 + $0x8] sm:$0xff]
      %v3598 = vld [vmem:[#allocation2 + $0x10] sm:$0xff]
      %v3599 = vld [vmem:[#allocation2 + $0x18] sm:$0xff]
      %v3600 = vld [vmem:[#allocation2 + $0x20] sm:$0xff]
      %v3601 = vld [vmem:[#allocation2 + $0x28] sm:$0xff]
      %v3602 = vld [vmem:[#allocation2 + $0x30] sm:$0xff]
      %v3603 = vld [vmem:[#allocation2 + $0x38] sm:$0xff]
      %v3604 = vld [vmem:[#allocation2 + $0x40] sm:$0xff]
      %v3605 = vld [vmem:[#allocation2 + $0x48] sm:$0xff]
      %v3606 = vld [vmem:[#allocation2 + $0x50] sm:$0xff]
      %v3607 = vld [vmem:[#allocation2 + $0x58] sm:$0xff]
      %v3608 = vld [vmem:[#allocation2 + $0x60] sm:$0xff]
      %v3609 = vld [vmem:[#allocation2 + $0x68] sm:$0xff]
      %v3610 = vld [vmem:[#allocation2 + $0x70] sm:$0xff]
      %v3611 = vld [vmem:[#allocation2 + $0x78] sm:$0xff]
      %v3612 = vld [vmem:[#allocation2 + $0x80] sm:$0xff]
      %v3613 = vld [vmem:[#allocation2 + $0x88] sm:$0xff]
      %v3614 = vld [vmem:[#allocation2 + $0x90] sm:$0xff]
      %v3615 = vld [vmem:[#allocation2 + $0x98] sm:$0xff]
      %v3616 = vld [vmem:[#allocation2 + $0xa0] sm:$0xff]
      %v3617 = vld [vmem:[#allocation2 + $0xa8] sm:$0xff]
      %v3618 = vld [vmem:[#allocation2 + $0xb0] sm:$0xff]
      %v3619 = vld [vmem:[#allocation2 + $0xb8] sm:$0xff]
      %v3620 = vld [vmem:[#allocation2 + $0xc0] sm:$0xff]
      %v3621 = vld [vmem:[#allocation2 + $0xc8] sm:$0xff]
      %v3622 = vld [vmem:[#allocation2 + $0xd0] sm:$0xff]
      %v3623 = vld [vmem:[#allocation2 + $0xd8] sm:$0xff]
      %v3624 = vld [vmem:[#allocation2 + $0xe0] sm:$0xff]
      %v3625 = vld [vmem:[#allocation2 + $0xe8] sm:$0xff]
      %v3626 = vld [vmem:[#allocation2 + $0xf0] sm:$0xff]
      %v3627 = vld [vmem:[#allocation2 + $0xf8] sm:$0xff]
      %v3628 = vld [vmem:[#allocation2 + $0x100] sm:$0xff]
      %v3629 = vld [vmem:[#allocation2 + $0x108] sm:$0xff]
      %v3630 = vld [vmem:[#allocation2 + $0x110] sm:$0xff]
      %v3631 = vld [vmem:[#allocation2 + $0x118] sm:$0xff]
      %v3632 = vld [vmem:[%s3] sm:$0xff]
      %v3633 = vld [vmem:[#allocation2 + $0x1] sm:$0xff]
      %v3634 = vld [vmem:[#allocation2 + $0x9] sm:$0xff]
      %v3635 = vld [vmem:[#allocation2 + $0x11] sm:$0xff]
      %v3636 = vld [vmem:[#allocation2 + $0x19] sm:$0xff]
      %v3637 = vld [vmem:[#allocation2 + $0x21] sm:$0xff]
      %v3638 = vld [vmem:[#allocation2 + $0x29] sm:$0xff]
      %v3639 = vld [vmem:[#allocation2 + $0x31] sm:$0xff]
      %v3640 = vld [vmem:[#allocation2 + $0x39] sm:$0xff]
      %v3641 = vld [vmem:[#allocation2 + $0x41] sm:$0xff]
      %v3642 = vld [vmem:[#allocation2 + $0x49] sm:$0xff]
      %v3643 = vld [vmem:[#allocation2 + $0x51] sm:$0xff]
      %v3644 = vld [vmem:[#allocation2 + $0x59] sm:$0xff]
      %v3645 = vld [vmem:[#allocation2 + $0x61] sm:$0xff]
      %v3646 = vld [vmem:[#allocation2 + $0x69] sm:$0xff]
      %v3647 = vld [vmem:[#allocation2 + $0x71] sm:$0xff]
      %v3648 = vld [vmem:[#allocation2 + $0x79] sm:$0xff]
      %v3649 = vld [vmem:[#allocation2 + $0x81] sm:$0xff]
      %v3650 = vld [vmem:[#allocation2 + $0x89] sm:$0xff]
      %v3651 = vld [vmem:[#allocation2 + $0x91] sm:$0xff]
      %v3652 = vld [vmem:[#allocation2 + $0x99] sm:$0xff]
      %v3653 = vld [vmem:[#allocation2 + $0xa1] sm:$0xff]
      %v3654 = vld [vmem:[#allocation2 + $0xa9] sm:$0xff]
      %v3655 = vld [vmem:[#allocation2 + $0xb1] sm:$0xff]
      %v3656 = vld [vmem:[#allocation2 + $0xb9] sm:$0xff]
      %v3657 = vld [vmem:[#allocation2 + $0xc1] sm:$0xff]
      %v3658 = vld [vmem:[#allocation2 + $0xc9] sm:$0xff]
      %v3659 = vld [vmem:[#allocation2 + $0xd1] sm:$0xff]
      %v3660 = vld [vmem:[#allocation2 + $0xd9] sm:$0xff]
      %v3661 = vld [vmem:[#allocation2 + $0xe1] sm:$0xff]
      %v3662 = vld [vmem:[#allocation2 + $0xe9] sm:$0xff]
      %v3663 = vld [vmem:[#allocation2 + $0xf1] sm:$0xff]
      %v3664 = vld [vmem:[#allocation2 + $0xf9] sm:$0xff]
      %v3665 = vld [vmem:[#allocation2 + $0x101] sm:$0xff]
      %v3666 = vld [vmem:[#allocation2 + $0x109] sm:$0xff]
      %v3667 = vld [vmem:[#allocation2 + $0x111] sm:$0xff]
      %v3668 = vld [vmem:[#allocation2 + $0x119] sm:$0xff]
      %s3669 = scalar_lea.vmem %s3, 8
      %v3670 = vld [vmem:[%s3669] sm:$0xff]
      %v3672 = vsel %vm3169, %v3633, 0
      %v3675 = vsel %vm3169, %v3634, 0
      %v3678 = vsel %vm3169, %v3635, 0
      %v3681 = vsel %vm3169, %v3636, 0
      %v3684 = vsel %vm3169, %v3637, 0
      %v3687 = vsel %vm3169, %v3638, 0
      %v3690 = vsel %vm3169, %v3639, 0
      %v3693 = vsel %vm3169, %v3640, 0
      %v3696 = vsel %vm3169, %v3641, 0
      %v3699 = vsel %vm3169, %v3642, 0
      %v3702 = vsel %vm3169, %v3643, 0
      %v3705 = vsel %vm3169, %v3644, 0
      %v3708 = vsel %vm3169, %v3645, 0
      %v3711 = vsel %vm3169, %v3646, 0
      %v3714 = vsel %vm3169, %v3647, 0
      %v3717 = vsel %vm3169, %v3648, 0
      %v3720 = vsel %vm3169, %v3649, 0
      %v3723 = vsel %vm3169, %v3650, 0
      %v3726 = vsel %vm3169, %v3651, 0
      %v3729 = vsel %vm3169, %v3652, 0
      %v3732 = vsel %vm3169, %v3653, 0
      %v3735 = vsel %vm3169, %v3654, 0
      %v3738 = vsel %vm3169, %v3655, 0
      %v3741 = vsel %vm3169, %v3656, 0
      %v3744 = vsel %vm3169, %v3657, 0
      %v3747 = vsel %vm3169, %v3658, 0
      %v3750 = vsel %vm3169, %v3659, 0
      %v3753 = vsel %vm3169, %v3660, 0
      %v3756 = vsel %vm3169, %v3661, 0
      %v3759 = vsel %vm3169, %v3662, 0
      %v3762 = vsel %vm3169, %v3663, 0
      %v3765 = vsel %vm3169, %v3664, 0
      %v3768 = vsel %vm3169, %v3665, 0
      %v3771 = vsel %vm3169, %v3666, 0
      %v3774 = vsel %vm3169, %v3667, 0
      %v3777 = vsel %vm3169, %v3668, 0
      %3779 = vmatpush.msra.mxu0 0.0
      %3780 = vmatpush.msra.mxu0 0.0
      %3781 = vmatpush.msra.mxu0 0.0
      %3782 = vmatpush.msra.mxu0 0.0
      %3783 = vmatpush.msra.mxu0 0.0
      %3784 = vmatpush.msra.mxu0 0.0
      %3785 = vmatpush.msra.mxu0 0.0
      %3786 = vmatpush.msra.mxu0 0.0
      %3787 = vmatpush.msra.mxu0 0.0
      %3788 = vmatpush.msra.mxu0 0.0
      %3789 = vmatpush.msra.mxu0 0.0
      %3790 = vmatpush.msra.mxu0 0.0
      %3791 = vmatpush.msra.mxu0 0.0
      %3792 = vmatpush.msra.mxu0 0.0
      %3793 = vmatpush.msra.mxu0 0.0
      %3794 = vmatpush.msra.mxu0 %v3670
      %3795 = vmatmul.f32.gmra.mxu0 %v3672
      %v3796 = vpop.f32.mrf.mxu0
      %v3797 = vadd.f32 0.0, %v3796
      %3798 = vmatmul.f32.gmra.mxu0 %v3675
      %v3799 = vpop.f32.mrf.mxu0
      %v3800 = vadd.f32 0.0, %v3799
      %3801 = vmatmul.f32.gmra.mxu0 %v3678
      %v3802 = vpop.f32.mrf.mxu0
      %v3803 = vadd.f32 0.0, %v3802
      %3804 = vmatmul.f32.gmra.mxu0 %v3681
      %v3805 = vpop.f32.mrf.mxu0
      %v3806 = vadd.f32 0.0, %v3805
      %3807 = vmatmul.f32.gmra.mxu0 %v3684
      %v3808 = vpop.f32.mrf.mxu0
      %v3809 = vadd.f32 0.0, %v3808
      %3810 = vmatmul.f32.gmra.mxu0 %v3687
      %v3811 = vpop.f32.mrf.mxu0
      %v3812 = vadd.f32 0.0, %v3811
      %3813 = vmatmul.f32.gmra.mxu0 %v3690
      %v3814 = vpop.f32.mrf.mxu0
      %v3815 = vadd.f32 0.0, %v3814
      %3816 = vmatmul.f32.gmra.mxu0 %v3693
      %v3817 = vpop.f32.mrf.mxu0
      %v3818 = vadd.f32 0.0, %v3817
      %3819 = vmatmul.f32.gmra.mxu0 %v3696
      %v3820 = vpop.f32.mrf.mxu0
      %v3821 = vadd.f32 0.0, %v3820
      %3822 = vmatmul.f32.gmra.mxu0 %v3699
      %v3823 = vpop.f32.mrf.mxu0
      %v3824 = vadd.f32 0.0, %v3823
      %3825 = vmatmul.f32.gmra.mxu0 %v3702
      %v3826 = vpop.f32.mrf.mxu0
      %v3827 = vadd.f32 0.0, %v3826
      %3828 = vmatmul.f32.gmra.mxu0 %v3705
      %v3829 = vpop.f32.mrf.mxu0
      %v3830 = vadd.f32 0.0, %v3829
      %3831 = vmatmul.f32.gmra.mxu0 %v3708
      %v3832 = vpop.f32.mrf.mxu0
      %v3833 = vadd.f32 0.0, %v3832
      %3834 = vmatmul.f32.gmra.mxu0 %v3711
      %v3835 = vpop.f32.mrf.mxu0
      %v3836 = vadd.f32 0.0, %v3835
      %3837 = vmatmul.f32.gmra.mxu0 %v3714
      %v3838 = vpop.f32.mrf.mxu0
      %v3839 = vadd.f32 0.0, %v3838
      %3840 = vmatmul.f32.gmra.mxu0 %v3717
      %v3841 = vpop.f32.mrf.mxu0
      %v3842 = vadd.f32 0.0, %v3841
      %3843 = vmatmul.f32.gmra.mxu0 %v3720
      %v3844 = vpop.f32.mrf.mxu0
      %v3845 = vadd.f32 0.0, %v3844
      %3846 = vmatmul.f32.gmra.mxu0 %v3723
      %v3847 = vpop.f32.mrf.mxu0
      %v3848 = vadd.f32 0.0, %v3847
      %3849 = vmatmul.f32.gmra.mxu0 %v3726
      %v3850 = vpop.f32.mrf.mxu0
      %v3851 = vadd.f32 0.0, %v3850
      %3852 = vmatmul.f32.gmra.mxu0 %v3729
      %v3853 = vpop.f32.mrf.mxu0
      %v3854 = vadd.f32 0.0, %v3853
      %3855 = vmatmul.f32.gmra.mxu0 %v3732
      %v3856 = vpop.f32.mrf.mxu0
      %v3857 = vadd.f32 0.0, %v3856
      %3858 = vmatmul.f32.gmra.mxu0 %v3735
      %v3859 = vpop.f32.mrf.mxu0
      %v3860 = vadd.f32 0.0, %v3859
      %3861 = vmatmul.f32.gmra.mxu0 %v3738
      %v3862 = vpop.f32.mrf.mxu0
      %v3863 = vadd.f32 0.0, %v3862
      %3864 = vmatmul.f32.gmra.mxu0 %v3741
      %v3865 = vpop.f32.mrf.mxu0
      %v3866 = vadd.f32 0.0, %v3865
      %3867 = vmatmul.f32.gmra.mxu0 %v3744
      %v3868 = vpop.f32.mrf.mxu0
      %v3869 = vadd.f32 0.0, %v3868
      %3870 = vmatmul.f32.gmra.mxu0 %v3747
      %v3871 = vpop.f32.mrf.mxu0
      %v3872 = vadd.f32 0.0, %v3871
      %3873 = vmatmul.f32.gmra.mxu0 %v3750
      %v3874 = vpop.f32.mrf.mxu0
      %v3875 = vadd.f32 0.0, %v3874
      %3876 = vmatmul.f32.gmra.mxu0 %v3753
      %v3877 = vpop.f32.mrf.mxu0
      %v3878 = vadd.f32 0.0, %v3877
      %3879 = vmatmul.f32.gmra.mxu0 %v3756
      %v3880 = vpop.f32.mrf.mxu0
      %v3881 = vadd.f32 0.0, %v3880
      %3882 = vmatmul.f32.gmra.mxu0 %v3759
      %v3883 = vpop.f32.mrf.mxu0
      %v3884 = vadd.f32 0.0, %v3883
      %3885 = vmatmul.f32.gmra.mxu0 %v3762
      %v3886 = vpop.f32.mrf.mxu0
      %v3887 = vadd.f32 0.0, %v3886
      %3888 = vmatmul.f32.gmra.mxu0 %v3765
      %v3889 = vpop.f32.mrf.mxu0
      %v3890 = vadd.f32 0.0, %v3889
      %3891 = vmatmul.f32.gmra.mxu0 %v3768
      %v3892 = vpop.f32.mrf.mxu0
      %v3893 = vadd.f32 0.0, %v3892
      %3894 = vmatmul.f32.gmra.mxu0 %v3771
      %v3895 = vpop.f32.mrf.mxu0
      %v3896 = vadd.f32 0.0, %v3895
      %3897 = vmatmul.f32.gmra.mxu0 %v3774
      %v3898 = vpop.f32.mrf.mxu0
      %v3899 = vadd.f32 0.0, %v3898
      %3900 = vmatmul.f32.gmra.mxu0 %v3777
      %v3901 = vpop.f32.mrf.mxu0
      %v3902 = vadd.f32 0.0, %v3901
      %3903 = vdwg.mxu0
      %v3905 = vsel %vm3169, %v3596, 0
      %v3908 = vsel %vm3169, %v3597, 0
      %v3911 = vsel %vm3169, %v3598, 0
      %v3914 = vsel %vm3169, %v3599, 0
      %v3917 = vsel %vm3169, %v3600, 0
      %v3920 = vsel %vm3169, %v3601, 0
      %v3923 = vsel %vm3169, %v3602, 0
      %v3926 = vsel %vm3169, %v3603, 0
      %v3929 = vsel %vm3169, %v3604, 0
      %v3932 = vsel %vm3169, %v3605, 0
      %v3935 = vsel %vm3169, %v3606, 0
      %v3938 = vsel %vm3169, %v3607, 0
      %v3941 = vsel %vm3169, %v3608, 0
      %v3944 = vsel %vm3169, %v3609, 0
      %v3947 = vsel %vm3169, %v3610, 0
      %v3950 = vsel %vm3169, %v3611, 0
      %v3953 = vsel %vm3169, %v3612, 0
      %v3956 = vsel %vm3169, %v3613, 0
      %v3959 = vsel %vm3169, %v3614, 0
      %v3962 = vsel %vm3169, %v3615, 0
      %v3965 = vsel %vm3169, %v3616, 0
      %v3968 = vsel %vm3169, %v3617, 0
      %v3971 = vsel %vm3169, %v3618, 0
      %v3974 = vsel %vm3169, %v3619, 0
      %v3977 = vsel %vm3169, %v3620, 0
      %v3980 = vsel %vm3169, %v3621, 0
      %v3983 = vsel %vm3169, %v3622, 0
      %v3986 = vsel %vm3169, %v3623, 0
      %v3989 = vsel %vm3169, %v3624, 0
      %v3992 = vsel %vm3169, %v3625, 0
      %v3995 = vsel %vm3169, %v3626, 0
      %v3998 = vsel %vm3169, %v3627, 0
      %v4001 = vsel %vm3169, %v3628, 0
      %v4004 = vsel %vm3169, %v3629, 0
      %v4007 = vsel %vm3169, %v3630, 0
      %v4010 = vsel %vm3169, %v3631, 0
      %4012 = vmatpush.msra.mxu0 0.0
      %4013 = vmatpush.msra.mxu0 0.0
      %4014 = vmatpush.msra.mxu0 0.0
      %4015 = vmatpush.msra.mxu0 0.0
      %4016 = vmatpush.msra.mxu0 0.0
      %4017 = vmatpush.msra.mxu0 0.0
      %4018 = vmatpush.msra.mxu0 0.0
      %4019 = vmatpush.msra.mxu0 0.0
      %4020 = vmatpush.msra.mxu0 0.0
      %4021 = vmatpush.msra.mxu0 0.0
      %4022 = vmatpush.msra.mxu0 0.0
      %4023 = vmatpush.msra.mxu0 0.0
      %4024 = vmatpush.msra.mxu0 0.0
      %4025 = vmatpush.msra.mxu0 0.0
      %4026 = vmatpush.msra.mxu0 0.0
      %4027 = vmatpush.msra.mxu0 %v3632
      %4028 = vmatmul.f32.gmra.mxu0 %v3905
      %v4029 = vpop.f32.mrf.mxu0
      %v4030 = vadd.f32 %v3797, %v4029
      %4031 = vmatmul.f32.gmra.mxu0 %v3908
      %v4032 = vpop.f32.mrf.mxu0
      %v4033 = vadd.f32 %v3800, %v4032
      %4034 = vmatmul.f32.gmra.mxu0 %v3911
      %v4035 = vpop.f32.mrf.mxu0
      %v4036 = vadd.f32 %v3803, %v4035
      %4037 = vmatmul.f32.gmra.mxu0 %v3914
      %v4038 = vpop.f32.mrf.mxu0
      %v4039 = vadd.f32 %v3806, %v4038
      %4040 = vmatmul.f32.gmra.mxu0 %v3917
      %v4041 = vpop.f32.mrf.mxu0
      %v4042 = vadd.f32 %v3809, %v4041
      %4043 = vmatmul.f32.gmra.mxu0 %v3920
      %v4044 = vpop.f32.mrf.mxu0
      %v4045 = vadd.f32 %v3812, %v4044
      %4046 = vmatmul.f32.gmra.mxu0 %v3923
      %v4047 = vpop.f32.mrf.mxu0
      %v4048 = vadd.f32 %v3815, %v4047
      %4049 = vmatmul.f32.gmra.mxu0 %v3926
      %v4050 = vpop.f32.mrf.mxu0
      %v4051 = vadd.f32 %v3818, %v4050
      %4052 = vmatmul.f32.gmra.mxu0 %v3929
      %v4053 = vpop.f32.mrf.mxu0
      %v4054 = vadd.f32 %v3821, %v4053
      %4055 = vmatmul.f32.gmra.mxu0 %v3932
      %v4056 = vpop.f32.mrf.mxu0
      %v4057 = vadd.f32 %v3824, %v4056
      %4058 = vmatmul.f32.gmra.mxu0 %v3935
      %v4059 = vpop.f32.mrf.mxu0
      %v4060 = vadd.f32 %v3827, %v4059
      %4061 = vmatmul.f32.gmra.mxu0 %v3938
      %v4062 = vpop.f32.mrf.mxu0
      %v4063 = vadd.f32 %v3830, %v4062
      %4064 = vmatmul.f32.gmra.mxu0 %v3941
      %v4065 = vpop.f32.mrf.mxu0
      %v4066 = vadd.f32 %v3833, %v4065
      %4067 = vmatmul.f32.gmra.mxu0 %v3944
      %v4068 = vpop.f32.mrf.mxu0
      %v4069 = vadd.f32 %v3836, %v4068
      %4070 = vmatmul.f32.gmra.mxu0 %v3947
      %v4071 = vpop.f32.mrf.mxu0
      %v4072 = vadd.f32 %v3839, %v4071
      %4073 = vmatmul.f32.gmra.mxu0 %v3950
      %v4074 = vpop.f32.mrf.mxu0
      %v4075 = vadd.f32 %v3842, %v4074
      %4076 = vmatmul.f32.gmra.mxu0 %v3953
      %v4077 = vpop.f32.mrf.mxu0
      %v4078 = vadd.f32 %v3845, %v4077
      %4079 = vmatmul.f32.gmra.mxu0 %v3956
      %v4080 = vpop.f32.mrf.mxu0
      %v4081 = vadd.f32 %v3848, %v4080
      %4082 = vmatmul.f32.gmra.mxu0 %v3959
      %v4083 = vpop.f32.mrf.mxu0
      %v4084 = vadd.f32 %v3851, %v4083
      %4085 = vmatmul.f32.gmra.mxu0 %v3962
      %v4086 = vpop.f32.mrf.mxu0
      %v4087 = vadd.f32 %v3854, %v4086
      %4088 = vmatmul.f32.gmra.mxu0 %v3965
      %v4089 = vpop.f32.mrf.mxu0
      %v4090 = vadd.f32 %v3857, %v4089
      %4091 = vmatmul.f32.gmra.mxu0 %v3968
      %v4092 = vpop.f32.mrf.mxu0
      %v4093 = vadd.f32 %v3860, %v4092
      %4094 = vmatmul.f32.gmra.mxu0 %v3971
      %v4095 = vpop.f32.mrf.mxu0
      %v4096 = vadd.f32 %v3863, %v4095
      %4097 = vmatmul.f32.gmra.mxu0 %v3974
      %v4098 = vpop.f32.mrf.mxu0
      %v4099 = vadd.f32 %v3866, %v4098
      %4100 = vmatmul.f32.gmra.mxu0 %v3977
      %v4101 = vpop.f32.mrf.mxu0
      %v4102 = vadd.f32 %v3869, %v4101
      %4103 = vmatmul.f32.gmra.mxu0 %v3980
      %v4104 = vpop.f32.mrf.mxu0
      %v4105 = vadd.f32 %v3872, %v4104
      %4106 = vmatmul.f32.gmra.mxu0 %v3983
      %v4107 = vpop.f32.mrf.mxu0
      %v4108 = vadd.f32 %v3875, %v4107
      %4109 = vmatmul.f32.gmra.mxu0 %v3986
      %v4110 = vpop.f32.mrf.mxu0
      %v4111 = vadd.f32 %v3878, %v4110
      %4112 = vmatmul.f32.gmra.mxu0 %v3989
      %v4113 = vpop.f32.mrf.mxu0
      %v4114 = vadd.f32 %v3881, %v4113
      %4115 = vmatmul.f32.gmra.mxu0 %v3992
      %v4116 = vpop.f32.mrf.mxu0
      %v4117 = vadd.f32 %v3884, %v4116
      %4118 = vmatmul.f32.gmra.mxu0 %v3995
      %v4119 = vpop.f32.mrf.mxu0
      %v4120 = vadd.f32 %v3887, %v4119
      %4121 = vmatmul.f32.gmra.mxu0 %v3998
      %v4122 = vpop.f32.mrf.mxu0
      %v4123 = vadd.f32 %v3890, %v4122
      %4124 = vmatmul.f32.gmra.mxu0 %v4001
      %v4125 = vpop.f32.mrf.mxu0
      %v4126 = vadd.f32 %v3893, %v4125
      %4127 = vmatmul.f32.gmra.mxu0 %v4004
      %v4128 = vpop.f32.mrf.mxu0
      %v4129 = vadd.f32 %v3896, %v4128
      %4130 = vmatmul.f32.gmra.mxu0 %v4007
      %v4131 = vpop.f32.mrf.mxu0
      %v4132 = vadd.f32 %v3899, %v4131
      %4133 = vmatmul.f32.gmra.mxu0 %v4010
      %v4134 = vpop.f32.mrf.mxu0
      %v4135 = vadd.f32 %v3902, %v4134
      %4136 = vdwg.mxu0
      %v4137 = vld [vmem:[#allocation2 + $0x2] sm:$0xff]
      %v4138 = vld [vmem:[#allocation2 + $0xa] sm:$0xff]
      %v4139 = vld [vmem:[#allocation2 + $0x12] sm:$0xff]
      %v4140 = vld [vmem:[#allocation2 + $0x1a] sm:$0xff]
      %v4141 = vld [vmem:[#allocation2 + $0x22] sm:$0xff]
      %v4142 = vld [vmem:[#allocation2 + $0x2a] sm:$0xff]
      %v4143 = vld [vmem:[#allocation2 + $0x32] sm:$0xff]
      %v4144 = vld [vmem:[#allocation2 + $0x3a] sm:$0xff]
      %v4145 = vld [vmem:[#allocation2 + $0x42] sm:$0xff]
      %v4146 = vld [vmem:[#allocation2 + $0x4a] sm:$0xff]
      %v4147 = vld [vmem:[#allocation2 + $0x52] sm:$0xff]
      %v4148 = vld [vmem:[#allocation2 + $0x5a] sm:$0xff]
      %v4149 = vld [vmem:[#allocation2 + $0x62] sm:$0xff]
      %v4150 = vld [vmem:[#allocation2 + $0x6a] sm:$0xff]
      %v4151 = vld [vmem:[#allocation2 + $0x72] sm:$0xff]
      %v4152 = vld [vmem:[#allocation2 + $0x7a] sm:$0xff]
      %v4153 = vld [vmem:[#allocation2 + $0x82] sm:$0xff]
      %v4154 = vld [vmem:[#allocation2 + $0x8a] sm:$0xff]
      %v4155 = vld [vmem:[#allocation2 + $0x92] sm:$0xff]
      %v4156 = vld [vmem:[#allocation2 + $0x9a] sm:$0xff]
      %v4157 = vld [vmem:[#allocation2 + $0xa2] sm:$0xff]
      %v4158 = vld [vmem:[#allocation2 + $0xaa] sm:$0xff]
      %v4159 = vld [vmem:[#allocation2 + $0xb2] sm:$0xff]
      %v4160 = vld [vmem:[#allocation2 + $0xba] sm:$0xff]
      %v4161 = vld [vmem:[#allocation2 + $0xc2] sm:$0xff]
      %v4162 = vld [vmem:[#allocation2 + $0xca] sm:$0xff]
      %v4163 = vld [vmem:[#allocation2 + $0xd2] sm:$0xff]
      %v4164 = vld [vmem:[#allocation2 + $0xda] sm:$0xff]
      %v4165 = vld [vmem:[#allocation2 + $0xe2] sm:$0xff]
      %v4166 = vld [vmem:[#allocation2 + $0xea] sm:$0xff]
      %v4167 = vld [vmem:[#allocation2 + $0xf2] sm:$0xff]
      %v4168 = vld [vmem:[#allocation2 + $0xfa] sm:$0xff]
      %v4169 = vld [vmem:[#allocation2 + $0x102] sm:$0xff]
      %v4170 = vld [vmem:[#allocation2 + $0x10a] sm:$0xff]
      %v4171 = vld [vmem:[#allocation2 + $0x112] sm:$0xff]
      %v4172 = vld [vmem:[#allocation2 + $0x11a] sm:$0xff]
      %s4173 = scalar_lea.vmem %s3, 16
      %v4174 = vld [vmem:[%s4173] sm:$0xff]
      %v4176 = vsel %vm3169, %v4137, 0
      %v4179 = vsel %vm3169, %v4138, 0
      %v4182 = vsel %vm3169, %v4139, 0
      %v4185 = vsel %vm3169, %v4140, 0
      %v4188 = vsel %vm3169, %v4141, 0
      %v4191 = vsel %vm3169, %v4142, 0
      %v4194 = vsel %vm3169, %v4143, 0
      %v4197 = vsel %vm3169, %v4144, 0
      %v4200 = vsel %vm3169, %v4145, 0
      %v4203 = vsel %vm3169, %v4146, 0
      %v4206 = vsel %vm3169, %v4147, 0
      %v4209 = vsel %vm3169, %v4148, 0
      %v4212 = vsel %vm3169, %v4149, 0
      %v4215 = vsel %vm3169, %v4150, 0
      %v4218 = vsel %vm3169, %v4151, 0
      %v4221 = vsel %vm3169, %v4152, 0
      %v4224 = vsel %vm3169, %v4153, 0
      %v4227 = vsel %vm3169, %v4154, 0
      %v4230 = vsel %vm3169, %v4155, 0
      %v4233 = vsel %vm3169, %v4156, 0
      %v4236 = vsel %vm3169, %v4157, 0
      %v4239 = vsel %vm3169, %v4158, 0
      %v4242 = vsel %vm3169, %v4159, 0
      %v4245 = vsel %vm3169, %v4160, 0
      %v4248 = vsel %vm3169, %v4161, 0
      %v4251 = vsel %vm3169, %v4162, 0
      %v4254 = vsel %vm3169, %v4163, 0
      %v4257 = vsel %vm3169, %v4164, 0
      %v4260 = vsel %vm3169, %v4165, 0
      %v4263 = vsel %vm3169, %v4166, 0
      %v4266 = vsel %vm3169, %v4167, 0
      %v4269 = vsel %vm3169, %v4168, 0
      %v4272 = vsel %vm3169, %v4169, 0
      %v4275 = vsel %vm3169, %v4170, 0
      %v4278 = vsel %vm3169, %v4171, 0
      %v4281 = vsel %vm3169, %v4172, 0
      %4283 = vmatpush.msra.mxu0 0.0
      %4284 = vmatpush.msra.mxu0 0.0
      %4285 = vmatpush.msra.mxu0 0.0
      %4286 = vmatpush.msra.mxu0 0.0
      %4287 = vmatpush.msra.mxu0 0.0
      %4288 = vmatpush.msra.mxu0 0.0
      %4289 = vmatpush.msra.mxu0 0.0
      %4290 = vmatpush.msra.mxu0 0.0
      %4291 = vmatpush.msra.mxu0 0.0
      %4292 = vmatpush.msra.mxu0 0.0
      %4293 = vmatpush.msra.mxu0 0.0
      %4294 = vmatpush.msra.mxu0 0.0
      %4295 = vmatpush.msra.mxu0 0.0
      %4296 = vmatpush.msra.mxu0 0.0
      %4297 = vmatpush.msra.mxu0 0.0
      %4298 = vmatpush.msra.mxu0 %v4174
      %4299 = vmatmul.f32.gmra.mxu0 %v4176
      %v4300 = vpop.f32.mrf.mxu0
      %v4301 = vadd.f32 0.0, %v4300
      %4302 = vmatmul.f32.gmra.mxu0 %v4179
      %v4303 = vpop.f32.mrf.mxu0
      %v4304 = vadd.f32 0.0, %v4303
      %4305 = vmatmul.f32.gmra.mxu0 %v4182
      %v4306 = vpop.f32.mrf.mxu0
      %v4307 = vadd.f32 0.0, %v4306
      %4308 = vmatmul.f32.gmra.mxu0 %v4185
      %v4309 = vpop.f32.mrf.mxu0
      %v4310 = vadd.f32 0.0, %v4309
      %4311 = vmatmul.f32.gmra.mxu0 %v4188
      %v4312 = vpop.f32.mrf.mxu0
      %v4313 = vadd.f32 0.0, %v4312
      %4314 = vmatmul.f32.gmra.mxu0 %v4191
      %v4315 = vpop.f32.mrf.mxu0
      %v4316 = vadd.f32 0.0, %v4315
      %4317 = vmatmul.f32.gmra.mxu0 %v4194
      %v4318 = vpop.f32.mrf.mxu0
      %v4319 = vadd.f32 0.0, %v4318
      %4320 = vmatmul.f32.gmra.mxu0 %v4197
      %v4321 = vpop.f32.mrf.mxu0
      %v4322 = vadd.f32 0.0, %v4321
      %4323 = vmatmul.f32.gmra.mxu0 %v4200
      %v4324 = vpop.f32.mrf.mxu0
      %v4325 = vadd.f32 0.0, %v4324
      %4326 = vmatmul.f32.gmra.mxu0 %v4203
      %v4327 = vpop.f32.mrf.mxu0
      %v4328 = vadd.f32 0.0, %v4327
      %4329 = vmatmul.f32.gmra.mxu0 %v4206
      %v4330 = vpop.f32.mrf.mxu0
      %v4331 = vadd.f32 0.0, %v4330
      %4332 = vmatmul.f32.gmra.mxu0 %v4209
      %v4333 = vpop.f32.mrf.mxu0
      %v4334 = vadd.f32 0.0, %v4333
      %4335 = vmatmul.f32.gmra.mxu0 %v4212
      %v4336 = vpop.f32.mrf.mxu0
      %v4337 = vadd.f32 0.0, %v4336
      %4338 = vmatmul.f32.gmra.mxu0 %v4215
      %v4339 = vpop.f32.mrf.mxu0
      %v4340 = vadd.f32 0.0, %v4339
      %4341 = vmatmul.f32.gmra.mxu0 %v4218
      %v4342 = vpop.f32.mrf.mxu0
      %v4343 = vadd.f32 0.0, %v4342
      %4344 = vmatmul.f32.gmra.mxu0 %v4221
      %v4345 = vpop.f32.mrf.mxu0
      %v4346 = vadd.f32 0.0, %v4345
      %4347 = vmatmul.f32.gmra.mxu0 %v4224
      %v4348 = vpop.f32.mrf.mxu0
      %v4349 = vadd.f32 0.0, %v4348
      %4350 = vmatmul.f32.gmra.mxu0 %v4227
      %v4351 = vpop.f32.mrf.mxu0
      %v4352 = vadd.f32 0.0, %v4351
      %4353 = vmatmul.f32.gmra.mxu0 %v4230
      %v4354 = vpop.f32.mrf.mxu0
      %v4355 = vadd.f32 0.0, %v4354
      %4356 = vmatmul.f32.gmra.mxu0 %v4233
      %v4357 = vpop.f32.mrf.mxu0
      %v4358 = vadd.f32 0.0, %v4357
      %4359 = vmatmul.f32.gmra.mxu0 %v4236
      %v4360 = vpop.f32.mrf.mxu0
      %v4361 = vadd.f32 0.0, %v4360
      %4362 = vmatmul.f32.gmra.mxu0 %v4239
      %v4363 = vpop.f32.mrf.mxu0
      %v4364 = vadd.f32 0.0, %v4363
      %4365 = vmatmul.f32.gmra.mxu0 %v4242
      %v4366 = vpop.f32.mrf.mxu0
      %v4367 = vadd.f32 0.0, %v4366
      %4368 = vmatmul.f32.gmra.mxu0 %v4245
      %v4369 = vpop.f32.mrf.mxu0
      %v4370 = vadd.f32 0.0, %v4369
      %4371 = vmatmul.f32.gmra.mxu0 %v4248
      %v4372 = vpop.f32.mrf.mxu0
      %v4373 = vadd.f32 0.0, %v4372
      %4374 = vmatmul.f32.gmra.mxu0 %v4251
      %v4375 = vpop.f32.mrf.mxu0
      %v4376 = vadd.f32 0.0, %v4375
      %4377 = vmatmul.f32.gmra.mxu0 %v4254
      %v4378 = vpop.f32.mrf.mxu0
      %v4379 = vadd.f32 0.0, %v4378
      %4380 = vmatmul.f32.gmra.mxu0 %v4257
      %v4381 = vpop.f32.mrf.mxu0
      %v4382 = vadd.f32 0.0, %v4381
      %4383 = vmatmul.f32.gmra.mxu0 %v4260
      %v4384 = vpop.f32.mrf.mxu0
      %v4385 = vadd.f32 0.0, %v4384
      %4386 = vmatmul.f32.gmra.mxu0 %v4263
      %v4387 = vpop.f32.mrf.mxu0
      %v4388 = vadd.f32 0.0, %v4387
      %4389 = vmatmul.f32.gmra.mxu0 %v4266
      %v4390 = vpop.f32.mrf.mxu0
      %v4391 = vadd.f32 0.0, %v4390
      %4392 = vmatmul.f32.gmra.mxu0 %v4269
      %v4393 = vpop.f32.mrf.mxu0
      %v4394 = vadd.f32 0.0, %v4393
      %4395 = vmatmul.f32.gmra.mxu0 %v4272
      %v4396 = vpop.f32.mrf.mxu0
      %v4397 = vadd.f32 0.0, %v4396
      %4398 = vmatmul.f32.gmra.mxu0 %v4275
      %v4399 = vpop.f32.mrf.mxu0
      %v4400 = vadd.f32 0.0, %v4399
      %4401 = vmatmul.f32.gmra.mxu0 %v4278
      %v4402 = vpop.f32.mrf.mxu0
      %v4403 = vadd.f32 0.0, %v4402
      %4404 = vmatmul.f32.gmra.mxu0 %v4281
      %v4405 = vpop.f32.mrf.mxu0
      %v4406 = vadd.f32 0.0, %v4405
      %4407 = vdwg.mxu0
      %v4408 = vadd.f32 %v4030, %v4301
      %v4409 = vadd.f32 %v4033, %v4304
      %v4410 = vadd.f32 %v4036, %v4307
      %v4411 = vadd.f32 %v4039, %v4310
      %v4412 = vadd.f32 %v4042, %v4313
      %v4413 = vadd.f32 %v4045, %v4316
      %v4414 = vadd.f32 %v4048, %v4319
      %v4415 = vadd.f32 %v4051, %v4322
      %v4416 = vadd.f32 %v4054, %v4325
      %v4417 = vadd.f32 %v4057, %v4328
      %v4418 = vadd.f32 %v4060, %v4331
      %v4419 = vadd.f32 %v4063, %v4334
      %v4420 = vadd.f32 %v4066, %v4337
      %v4421 = vadd.f32 %v4069, %v4340
      %v4422 = vadd.f32 %v4072, %v4343
      %v4423 = vadd.f32 %v4075, %v4346
      %v4424 = vadd.f32 %v4078, %v4349
      %v4425 = vadd.f32 %v4081, %v4352
      %v4426 = vadd.f32 %v4084, %v4355
      %v4427 = vadd.f32 %v4087, %v4358
      %v4428 = vadd.f32 %v4090, %v4361
      %v4429 = vadd.f32 %v4093, %v4364
      %v4430 = vadd.f32 %v4096, %v4367
      %v4431 = vadd.f32 %v4099, %v4370
      %v4432 = vadd.f32 %v4102, %v4373
      %v4433 = vadd.f32 %v4105, %v4376
      %v4434 = vadd.f32 %v4108, %v4379
      %v4435 = vadd.f32 %v4111, %v4382
      %v4436 = vadd.f32 %v4114, %v4385
      %v4437 = vadd.f32 %v4117, %v4388
      %v4438 = vadd.f32 %v4120, %v4391
      %v4439 = vadd.f32 %v4123, %v4394
      %v4440 = vadd.f32 %v4126, %v4397
      %v4441 = vadd.f32 %v4129, %v4400
      %v4442 = vadd.f32 %v4132, %v4403
      %v4443 = vadd.f32 %v4135, %v4406
      %v4444 = vld [vmem:[#allocation2 + $0x12] sm:$0xff]
      %v4445 = vld [vmem:[#allocation2 + $0x1a] sm:$0xff]
      %v4446 = vld [vmem:[#allocation2 + $0x22] sm:$0xff]
      %v4447 = vld [vmem:[#allocation2 + $0x2a] sm:$0xff]
      %v4448 = vld [vmem:[#allocation2 + $0x32] sm:$0xff]
      %v4449 = vld [vmem:[#allocation2 + $0x3a] sm:$0xff]
      %v4450 = vld [vmem:[#allocation2 + $0x42] sm:$0xff]
      %v4451 = vld [vmem:[#allocation2 + $0x4a] sm:$0xff]
      %v4452 = vld [vmem:[#allocation2 + $0x52] sm:$0xff]
      %v4453 = vld [vmem:[#allocation2 + $0x5a] sm:$0xff]
      %v4454 = vld [vmem:[#allocation2 + $0x62] sm:$0xff]
      %v4455 = vld [vmem:[#allocation2 + $0x6a] sm:$0xff]
      %v4456 = vld [vmem:[#allocation2 + $0x72] sm:$0xff]
      %v4457 = vld [vmem:[#allocation2 + $0x7a] sm:$0xff]
      %v4458 = vld [vmem:[#allocation2 + $0x82] sm:$0xff]
      %v4459 = vld [vmem:[#allocation2 + $0x8a] sm:$0xff]
      %v4460 = vld [vmem:[#allocation2 + $0x92] sm:$0xff]
      %v4461 = vld [vmem:[#allocation2 + $0x9a] sm:$0xff]
      %v4462 = vld [vmem:[#allocation2 + $0xa2] sm:$0xff]
      %v4463 = vld [vmem:[#allocation2 + $0xaa] sm:$0xff]
      %v4464 = vld [vmem:[#allocation2 + $0xb2] sm:$0xff]
      %v4465 = vld [vmem:[#allocation2 + $0xba] sm:$0xff]
      %v4466 = vld [vmem:[#allocation2 + $0xc2] sm:$0xff]
      %v4467 = vld [vmem:[#allocation2 + $0xca] sm:$0xff]
      %v4468 = vld [vmem:[#allocation2 + $0xd2] sm:$0xff]
      %v4469 = vld [vmem:[#allocation2 + $0xda] sm:$0xff]
      %v4470 = vld [vmem:[#allocation2 + $0xe2] sm:$0xff]
      %v4471 = vld [vmem:[#allocation2 + $0xea] sm:$0xff]
      %v4472 = vld [vmem:[#allocation2 + $0xf2] sm:$0xff]
      %v4473 = vld [vmem:[#allocation2 + $0xfa] sm:$0xff]
      %v4474 = vld [vmem:[#allocation2 + $0x102] sm:$0xff]
      %v4475 = vld [vmem:[#allocation2 + $0x10a] sm:$0xff]
      %v4476 = vld [vmem:[#allocation2 + $0x112] sm:$0xff]
      %v4477 = vld [vmem:[#allocation2 + $0x11a] sm:$0xff]
      %v4478 = vld [vmem:[#allocation2 + $0x122] sm:$0xff]
      %v4479 = vld [vmem:[#allocation2 + $0x12a] sm:$0xff]
      %s4480 = scalar_lea.vmem %s3, 24
      %v4481 = vld [vmem:[%s4480] sm:$0xff]
      %v4483 = vsel %vm3169, %v4444, 0
      %v4486 = vsel %vm3169, %v4445, 0
      %v4489 = vsel %vm3169, %v4446, 0
      %v4492 = vsel %vm3169, %v4447, 0
      %v4495 = vsel %vm3169, %v4448, 0
      %v4498 = vsel %vm3169, %v4449, 0
      %v4501 = vsel %vm3169, %v4450, 0
      %v4504 = vsel %vm3169, %v4451, 0
      %v4507 = vsel %vm3169, %v4452, 0
      %v4510 = vsel %vm3169, %v4453, 0
      %v4513 = vsel %vm3169, %v4454, 0
      %v4516 = vsel %vm3169, %v4455, 0
      %v4519 = vsel %vm3169, %v4456, 0
      %v4522 = vsel %vm3169, %v4457, 0
      %v4525 = vsel %vm3169, %v4458, 0
      %v4528 = vsel %vm3169, %v4459, 0
      %v4531 = vsel %vm3169, %v4460, 0
      %v4534 = vsel %vm3169, %v4461, 0
      %v4537 = vsel %vm3169, %v4462, 0
      %v4540 = vsel %vm3169, %v4463, 0
      %v4543 = vsel %vm3169, %v4464, 0
      %v4546 = vsel %vm3169, %v4465, 0
      %v4549 = vsel %vm3169, %v4466, 0
      %v4552 = vsel %vm3169, %v4467, 0
      %v4555 = vsel %vm3169, %v4468, 0
      %v4558 = vsel %vm3169, %v4469, 0
      %v4561 = vsel %vm3169, %v4470, 0
      %v4564 = vsel %vm3169, %v4471, 0
      %v4567 = vsel %vm3169, %v4472, 0
      %v4570 = vsel %vm3169, %v4473, 0
      %v4573 = vsel %vm3169, %v4474, 0
      %v4576 = vsel %vm3169, %v4475, 0
      %v4579 = vsel %vm3169, %v4476, 0
      %v4582 = vsel %vm3169, %v4477, 0
      %v4585 = vsel %vm3169, %v4478, 0
      %v4588 = vsel %vm3169, %v4479, 0
      %4590 = vmatpush.msra.mxu0 0.0
      %4591 = vmatpush.msra.mxu0 0.0
      %4592 = vmatpush.msra.mxu0 0.0
      %4593 = vmatpush.msra.mxu0 0.0
      %4594 = vmatpush.msra.mxu0 0.0
      %4595 = vmatpush.msra.mxu0 0.0
      %4596 = vmatpush.msra.mxu0 0.0
      %4597 = vmatpush.msra.mxu0 0.0
      %4598 = vmatpush.msra.mxu0 0.0
      %4599 = vmatpush.msra.mxu0 0.0
      %4600 = vmatpush.msra.mxu0 0.0
      %4601 = vmatpush.msra.mxu0 0.0
      %4602 = vmatpush.msra.mxu0 0.0
      %4603 = vmatpush.msra.mxu0 0.0
      %4604 = vmatpush.msra.mxu0 0.0
      %4605 = vmatpush.msra.mxu0 %v4481
      %4606 = vmatmul.f32.gmra.mxu0 %v4483
      %v4607 = vpop.f32.mrf.mxu0
      %v4608 = vadd.f32 0.0, %v4607
      %4609 = vmatmul.f32.gmra.mxu0 %v4486
      %v4610 = vpop.f32.mrf.mxu0
      %v4611 = vadd.f32 0.0, %v4610
      %4612 = vmatmul.f32.gmra.mxu0 %v4489
      %v4613 = vpop.f32.mrf.mxu0
      %v4614 = vadd.f32 0.0, %v4613
      %4615 = vmatmul.f32.gmra.mxu0 %v4492
      %v4616 = vpop.f32.mrf.mxu0
      %v4617 = vadd.f32 0.0, %v4616
      %4618 = vmatmul.f32.gmra.mxu0 %v4495
      %v4619 = vpop.f32.mrf.mxu0
      %v4620 = vadd.f32 0.0, %v4619
      %4621 = vmatmul.f32.gmra.mxu0 %v4498
      %v4622 = vpop.f32.mrf.mxu0
      %v4623 = vadd.f32 0.0, %v4622
      %4624 = vmatmul.f32.gmra.mxu0 %v4501
      %v4625 = vpop.f32.mrf.mxu0
      %v4626 = vadd.f32 0.0, %v4625
      %4627 = vmatmul.f32.gmra.mxu0 %v4504
      %v4628 = vpop.f32.mrf.mxu0
      %v4629 = vadd.f32 0.0, %v4628
      %4630 = vmatmul.f32.gmra.mxu0 %v4507
      %v4631 = vpop.f32.mrf.mxu0
      %v4632 = vadd.f32 0.0, %v4631
      %4633 = vmatmul.f32.gmra.mxu0 %v4510
      %v4634 = vpop.f32.mrf.mxu0
      %v4635 = vadd.f32 0.0, %v4634
      %4636 = vmatmul.f32.gmra.mxu0 %v4513
      %v4637 = vpop.f32.mrf.mxu0
      %v4638 = vadd.f32 0.0, %v4637
      %4639 = vmatmul.f32.gmra.mxu0 %v4516
      %v4640 = vpop.f32.mrf.mxu0
      %v4641 = vadd.f32 0.0, %v4640
      %4642 = vmatmul.f32.gmra.mxu0 %v4519
      %v4643 = vpop.f32.mrf.mxu0
      %v4644 = vadd.f32 0.0, %v4643
      %4645 = vmatmul.f32.gmra.mxu0 %v4522
      %v4646 = vpop.f32.mrf.mxu0
      %v4647 = vadd.f32 0.0, %v4646
      %4648 = vmatmul.f32.gmra.mxu0 %v4525
      %v4649 = vpop.f32.mrf.mxu0
      %v4650 = vadd.f32 0.0, %v4649
      %4651 = vmatmul.f32.gmra.mxu0 %v4528
      %v4652 = vpop.f32.mrf.mxu0
      %v4653 = vadd.f32 0.0, %v4652
      %4654 = vmatmul.f32.gmra.mxu0 %v4531
      %v4655 = vpop.f32.mrf.mxu0
      %v4656 = vadd.f32 0.0, %v4655
      %4657 = vmatmul.f32.gmra.mxu0 %v4534
      %v4658 = vpop.f32.mrf.mxu0
      %v4659 = vadd.f32 0.0, %v4658
      %4660 = vmatmul.f32.gmra.mxu0 %v4537
      %v4661 = vpop.f32.mrf.mxu0
      %v4662 = vadd.f32 0.0, %v4661
      %4663 = vmatmul.f32.gmra.mxu0 %v4540
      %v4664 = vpop.f32.mrf.mxu0
      %v4665 = vadd.f32 0.0, %v4664
      %4666 = vmatmul.f32.gmra.mxu0 %v4543
      %v4667 = vpop.f32.mrf.mxu0
      %v4668 = vadd.f32 0.0, %v4667
      %4669 = vmatmul.f32.gmra.mxu0 %v4546
      %v4670 = vpop.f32.mrf.mxu0
      %v4671 = vadd.f32 0.0, %v4670
      %4672 = vmatmul.f32.gmra.mxu0 %v4549
      %v4673 = vpop.f32.mrf.mxu0
      %v4674 = vadd.f32 0.0, %v4673
      %4675 = vmatmul.f32.gmra.mxu0 %v4552
      %v4676 = vpop.f32.mrf.mxu0
      %v4677 = vadd.f32 0.0, %v4676
      %4678 = vmatmul.f32.gmra.mxu0 %v4555
      %v4679 = vpop.f32.mrf.mxu0
      %v4680 = vadd.f32 0.0, %v4679
      %4681 = vmatmul.f32.gmra.mxu0 %v4558
      %v4682 = vpop.f32.mrf.mxu0
      %v4683 = vadd.f32 0.0, %v4682
      %4684 = vmatmul.f32.gmra.mxu0 %v4561
      %v4685 = vpop.f32.mrf.mxu0
      %v4686 = vadd.f32 0.0, %v4685
      %4687 = vmatmul.f32.gmra.mxu0 %v4564
      %v4688 = vpop.f32.mrf.mxu0
      %v4689 = vadd.f32 0.0, %v4688
      %4690 = vmatmul.f32.gmra.mxu0 %v4567
      %v4691 = vpop.f32.mrf.mxu0
      %v4692 = vadd.f32 0.0, %v4691
      %4693 = vmatmul.f32.gmra.mxu0 %v4570
      %v4694 = vpop.f32.mrf.mxu0
      %v4695 = vadd.f32 0.0, %v4694
      %4696 = vmatmul.f32.gmra.mxu0 %v4573
      %v4697 = vpop.f32.mrf.mxu0
      %v4698 = vadd.f32 0.0, %v4697
      %4699 = vmatmul.f32.gmra.mxu0 %v4576
      %v4700 = vpop.f32.mrf.mxu0
      %v4701 = vadd.f32 0.0, %v4700
      %4702 = vmatmul.f32.gmra.mxu0 %v4579
      %v4703 = vpop.f32.mrf.mxu0
      %v4704 = vadd.f32 0.0, %v4703
      %4705 = vmatmul.f32.gmra.mxu0 %v4582
      %v4706 = vpop.f32.mrf.mxu0
      %v4707 = vadd.f32 0.0, %v4706
      %4708 = vmatmul.f32.gmra.mxu0 %v4585
      %v4709 = vpop.f32.mrf.mxu0
      %v4710 = vadd.f32 0.0, %v4709
      %4711 = vmatmul.f32.gmra.mxu0 %v4588
      %v4712 = vpop.f32.mrf.mxu0
      %v4713 = vadd.f32 0.0, %v4712
      %4714 = vdwg.mxu0
      %v4715 = vadd.f32 %v4408, %v4608
      %v4716 = vadd.f32 %v4409, %v4611
      %v4717 = vadd.f32 %v4410, %v4614
      %v4718 = vadd.f32 %v4411, %v4617
      %v4719 = vadd.f32 %v4412, %v4620
      %v4720 = vadd.f32 %v4413, %v4623
      %v4721 = vadd.f32 %v4414, %v4626
      %v4722 = vadd.f32 %v4415, %v4629
      %v4723 = vadd.f32 %v4416, %v4632
      %v4724 = vadd.f32 %v4417, %v4635
      %v4725 = vadd.f32 %v4418, %v4638
      %v4726 = vadd.f32 %v4419, %v4641
      %v4727 = vadd.f32 %v4420, %v4644
      %v4728 = vadd.f32 %v4421, %v4647
      %v4729 = vadd.f32 %v4422, %v4650
      %v4730 = vadd.f32 %v4423, %v4653
      %v4731 = vadd.f32 %v4424, %v4656
      %v4732 = vadd.f32 %v4425, %v4659
      %v4733 = vadd.f32 %v4426, %v4662
      %v4734 = vadd.f32 %v4427, %v4665
      %v4735 = vadd.f32 %v4428, %v4668
      %v4736 = vadd.f32 %v4429, %v4671
      %v4737 = vadd.f32 %v4430, %v4674
      %v4738 = vadd.f32 %v4431, %v4677
      %v4739 = vadd.f32 %v4432, %v4680
      %v4740 = vadd.f32 %v4433, %v4683
      %v4741 = vadd.f32 %v4434, %v4686
      %v4742 = vadd.f32 %v4435, %v4689
      %v4743 = vadd.f32 %v4436, %v4692
      %v4744 = vadd.f32 %v4437, %v4695
      %v4745 = vadd.f32 %v4438, %v4698
      %v4746 = vadd.f32 %v4439, %v4701
      %v4747 = vadd.f32 %v4440, %v4704
      %v4748 = vadd.f32 %v4441, %v4707
      %v4749 = vadd.f32 %v4442, %v4710
      %v4750 = vadd.f32 %v4443, %v4713
      %v4751 = vld [vmem:[#allocation2 + $0x13] sm:$0xff]
      %v4752 = vld [vmem:[#allocation2 + $0x1b] sm:$0xff]
      %v4753 = vld [vmem:[#allocation2 + $0x23] sm:$0xff]
      %v4754 = vld [vmem:[#allocation2 + $0x2b] sm:$0xff]
      %v4755 = vld [vmem:[#allocation2 + $0x33] sm:$0xff]
      %v4756 = vld [vmem:[#allocation2 + $0x3b] sm:$0xff]
      %v4757 = vld [vmem:[#allocation2 + $0x43] sm:$0xff]
      %v4758 = vld [vmem:[#allocation2 + $0x4b] sm:$0xff]
      %v4759 = vld [vmem:[#allocation2 + $0x53] sm:$0xff]
      %v4760 = vld [vmem:[#allocation2 + $0x5b] sm:$0xff]
      %v4761 = vld [vmem:[#allocation2 + $0x63] sm:$0xff]
      %v4762 = vld [vmem:[#allocation2 + $0x6b] sm:$0xff]
      %v4763 = vld [vmem:[#allocation2 + $0x73] sm:$0xff]
      %v4764 = vld [vmem:[#allocation2 + $0x7b] sm:$0xff]
      %v4765 = vld [vmem:[#allocation2 + $0x83] sm:$0xff]
      %v4766 = vld [vmem:[#allocation2 + $0x8b] sm:$0xff]
      %v4767 = vld [vmem:[#allocation2 + $0x93] sm:$0xff]
      %v4768 = vld [vmem:[#allocation2 + $0x9b] sm:$0xff]
      %v4769 = vld [vmem:[#allocation2 + $0xa3] sm:$0xff]
      %v4770 = vld [vmem:[#allocation2 + $0xab] sm:$0xff]
      %v4771 = vld [vmem:[#allocation2 + $0xb3] sm:$0xff]
      %v4772 = vld [vmem:[#allocation2 + $0xbb] sm:$0xff]
      %v4773 = vld [vmem:[#allocation2 + $0xc3] sm:$0xff]
      %v4774 = vld [vmem:[#allocation2 + $0xcb] sm:$0xff]
      %v4775 = vld [vmem:[#allocation2 + $0xd3] sm:$0xff]
      %v4776 = vld [vmem:[#allocation2 + $0xdb] sm:$0xff]
      %v4777 = vld [vmem:[#allocation2 + $0xe3] sm:$0xff]
      %v4778 = vld [vmem:[#allocation2 + $0xeb] sm:$0xff]
      %v4779 = vld [vmem:[#allocation2 + $0xf3] sm:$0xff]
      %v4780 = vld [vmem:[#allocation2 + $0xfb] sm:$0xff]
      %v4781 = vld [vmem:[#allocation2 + $0x103] sm:$0xff]
      %v4782 = vld [vmem:[#allocation2 + $0x10b] sm:$0xff]
      %v4783 = vld [vmem:[#allocation2 + $0x113] sm:$0xff]
      %v4784 = vld [vmem:[#allocation2 + $0x11b] sm:$0xff]
      %v4785 = vld [vmem:[#allocation2 + $0x123] sm:$0xff]
      %v4786 = vld [vmem:[#allocation2 + $0x12b] sm:$0xff]
      %s4787 = scalar_lea.vmem %s3, 32
      %v4788 = vld [vmem:[%s4787] sm:$0xff]
      %v4790 = vsel %vm3169, %v4751, 0
      %v4793 = vsel %vm3169, %v4752, 0
      %v4796 = vsel %vm3169, %v4753, 0
      %v4799 = vsel %vm3169, %v4754, 0
      %v4802 = vsel %vm3169, %v4755, 0
      %v4805 = vsel %vm3169, %v4756, 0
      %v4808 = vsel %vm3169, %v4757, 0
      %v4811 = vsel %vm3169, %v4758, 0
      %v4814 = vsel %vm3169, %v4759, 0
      %v4817 = vsel %vm3169, %v4760, 0
      %v4820 = vsel %vm3169, %v4761, 0
      %v4823 = vsel %vm3169, %v4762, 0
      %v4826 = vsel %vm3169, %v4763, 0
      %v4829 = vsel %vm3169, %v4764, 0
      %v4832 = vsel %vm3169, %v4765, 0
      %v4835 = vsel %vm3169, %v4766, 0
      %v4838 = vsel %vm3169, %v4767, 0
      %v4841 = vsel %vm3169, %v4768, 0
      %v4844 = vsel %vm3169, %v4769, 0
      %v4847 = vsel %vm3169, %v4770, 0
      %v4850 = vsel %vm3169, %v4771, 0
      %v4853 = vsel %vm3169, %v4772, 0
      %v4856 = vsel %vm3169, %v4773, 0
      %v4859 = vsel %vm3169, %v4774, 0
      %v4862 = vsel %vm3169, %v4775, 0
      %v4865 = vsel %vm3169, %v4776, 0
      %v4868 = vsel %vm3169, %v4777, 0
      %v4871 = vsel %vm3169, %v4778, 0
      %v4874 = vsel %vm3169, %v4779, 0
      %v4877 = vsel %vm3169, %v4780, 0
      %v4880 = vsel %vm3169, %v4781, 0
      %v4883 = vsel %vm3169, %v4782, 0
      %v4886 = vsel %vm3169, %v4783, 0
      %v4889 = vsel %vm3169, %v4784, 0
      %v4892 = vsel %vm3169, %v4785, 0
      %v4895 = vsel %vm3169, %v4786, 0
      %4897 = vmatpush.msra.mxu0 0.0
      %4898 = vmatpush.msra.mxu0 0.0
      %4899 = vmatpush.msra.mxu0 0.0
      %4900 = vmatpush.msra.mxu0 0.0
      %4901 = vmatpush.msra.mxu0 0.0
      %4902 = vmatpush.msra.mxu0 0.0
      %4903 = vmatpush.msra.mxu0 0.0
      %4904 = vmatpush.msra.mxu0 0.0
      %4905 = vmatpush.msra.mxu0 0.0
      %4906 = vmatpush.msra.mxu0 0.0
      %4907 = vmatpush.msra.mxu0 0.0
      %4908 = vmatpush.msra.mxu0 0.0
      %4909 = vmatpush.msra.mxu0 0.0
      %4910 = vmatpush.msra.mxu0 0.0
      %4911 = vmatpush.msra.mxu0 0.0
      %4912 = vmatpush.msra.mxu0 %v4788
      %4913 = vmatmul.f32.gmra.mxu0 %v4790
      %v4914 = vpop.f32.mrf.mxu0
      %v4915 = vadd.f32 0.0, %v4914
      %4916 = vmatmul.f32.gmra.mxu0 %v4793
      %v4917 = vpop.f32.mrf.mxu0
      %v4918 = vadd.f32 0.0, %v4917
      %4919 = vmatmul.f32.gmra.mxu0 %v4796
      %v4920 = vpop.f32.mrf.mxu0
      %v4921 = vadd.f32 0.0, %v4920
      %4922 = vmatmul.f32.gmra.mxu0 %v4799
      %v4923 = vpop.f32.mrf.mxu0
      %v4924 = vadd.f32 0.0, %v4923
      %4925 = vmatmul.f32.gmra.mxu0 %v4802
      %v4926 = vpop.f32.mrf.mxu0
      %v4927 = vadd.f32 0.0, %v4926
      %4928 = vmatmul.f32.gmra.mxu0 %v4805
      %v4929 = vpop.f32.mrf.mxu0
      %v4930 = vadd.f32 0.0, %v4929
      %4931 = vmatmul.f32.gmra.mxu0 %v4808
      %v4932 = vpop.f32.mrf.mxu0
      %v4933 = vadd.f32 0.0, %v4932
      %4934 = vmatmul.f32.gmra.mxu0 %v4811
      %v4935 = vpop.f32.mrf.mxu0
      %v4936 = vadd.f32 0.0, %v4935
      %4937 = vmatmul.f32.gmra.mxu0 %v4814
      %v4938 = vpop.f32.mrf.mxu0
      %v4939 = vadd.f32 0.0, %v4938
      %4940 = vmatmul.f32.gmra.mxu0 %v4817
      %v4941 = vpop.f32.mrf.mxu0
      %v4942 = vadd.f32 0.0, %v4941
      %4943 = vmatmul.f32.gmra.mxu0 %v4820
      %v4944 = vpop.f32.mrf.mxu0
      %v4945 = vadd.f32 0.0, %v4944
      %4946 = vmatmul.f32.gmra.mxu0 %v4823
      %v4947 = vpop.f32.mrf.mxu0
      %v4948 = vadd.f32 0.0, %v4947
      %4949 = vmatmul.f32.gmra.mxu0 %v4826
      %v4950 = vpop.f32.mrf.mxu0
      %v4951 = vadd.f32 0.0, %v4950
      %4952 = vmatmul.f32.gmra.mxu0 %v4829
      %v4953 = vpop.f32.mrf.mxu0
      %v4954 = vadd.f32 0.0, %v4953
      %4955 = vmatmul.f32.gmra.mxu0 %v4832
      %v4956 = vpop.f32.mrf.mxu0
      %v4957 = vadd.f32 0.0, %v4956
      %4958 = vmatmul.f32.gmra.mxu0 %v4835
      %v4959 = vpop.f32.mrf.mxu0
      %v4960 = vadd.f32 0.0, %v4959
      %4961 = vmatmul.f32.gmra.mxu0 %v4838
      %v4962 = vpop.f32.mrf.mxu0
      %v4963 = vadd.f32 0.0, %v4962
      %4964 = vmatmul.f32.gmra.mxu0 %v4841
      %v4965 = vpop.f32.mrf.mxu0
      %v4966 = vadd.f32 0.0, %v4965
      %4967 = vmatmul.f32.gmra.mxu0 %v4844
      %v4968 = vpop.f32.mrf.mxu0
      %v4969 = vadd.f32 0.0, %v4968
      %4970 = vmatmul.f32.gmra.mxu0 %v4847
      %v4971 = vpop.f32.mrf.mxu0
      %v4972 = vadd.f32 0.0, %v4971
      %4973 = vmatmul.f32.gmra.mxu0 %v4850
      %v4974 = vpop.f32.mrf.mxu0
      %v4975 = vadd.f32 0.0, %v4974
      %4976 = vmatmul.f32.gmra.mxu0 %v4853
      %v4977 = vpop.f32.mrf.mxu0
      %v4978 = vadd.f32 0.0, %v4977
      %4979 = vmatmul.f32.gmra.mxu0 %v4856
      %v4980 = vpop.f32.mrf.mxu0
      %v4981 = vadd.f32 0.0, %v4980
      %4982 = vmatmul.f32.gmra.mxu0 %v4859
      %v4983 = vpop.f32.mrf.mxu0
      %v4984 = vadd.f32 0.0, %v4983
      %4985 = vmatmul.f32.gmra.mxu0 %v4862
      %v4986 = vpop.f32.mrf.mxu0
      %v4987 = vadd.f32 0.0, %v4986
      %4988 = vmatmul.f32.gmra.mxu0 %v4865
      %v4989 = vpop.f32.mrf.mxu0
      %v4990 = vadd.f32 0.0, %v4989
      %4991 = vmatmul.f32.gmra.mxu0 %v4868
      %v4992 = vpop.f32.mrf.mxu0
      %v4993 = vadd.f32 0.0, %v4992
      %4994 = vmatmul.f32.gmra.mxu0 %v4871
      %v4995 = vpop.f32.mrf.mxu0
      %v4996 = vadd.f32 0.0, %v4995
      %4997 = vmatmul.f32.gmra.mxu0 %v4874
      %v4998 = vpop.f32.mrf.mxu0
      %v4999 = vadd.f32 0.0, %v4998
      %5000 = vmatmul.f32.gmra.mxu0 %v4877
      %v5001 = vpop.f32.mrf.mxu0
      %v5002 = vadd.f32 0.0, %v5001
      %5003 = vmatmul.f32.gmra.mxu0 %v4880
      %v5004 = vpop.f32.mrf.mxu0
      %v5005 = vadd.f32 0.0, %v5004
      %5006 = vmatmul.f32.gmra.mxu0 %v4883
      %v5007 = vpop.f32.mrf.mxu0
      %v5008 = vadd.f32 0.0, %v5007
      %5009 = vmatmul.f32.gmra.mxu0 %v4886
      %v5010 = vpop.f32.mrf.mxu0
      %v5011 = vadd.f32 0.0, %v5010
      %5012 = vmatmul.f32.gmra.mxu0 %v4889
      %v5013 = vpop.f32.mrf.mxu0
      %v5014 = vadd.f32 0.0, %v5013
      %5015 = vmatmul.f32.gmra.mxu0 %v4892
      %v5016 = vpop.f32.mrf.mxu0
      %v5017 = vadd.f32 0.0, %v5016
      %5018 = vmatmul.f32.gmra.mxu0 %v4895
      %v5019 = vpop.f32.mrf.mxu0
      %v5020 = vadd.f32 0.0, %v5019
      %5021 = vdwg.mxu0
      %v5022 = vadd.f32 %v4715, %v4915
      %v5023 = vadd.f32 %v4716, %v4918
      %v5024 = vadd.f32 %v4717, %v4921
      %v5025 = vadd.f32 %v4718, %v4924
      %v5026 = vadd.f32 %v4719, %v4927
      %v5027 = vadd.f32 %v4720, %v4930
      %v5028 = vadd.f32 %v4721, %v4933
      %v5029 = vadd.f32 %v4722, %v4936
      %v5030 = vadd.f32 %v4723, %v4939
      %v5031 = vadd.f32 %v4724, %v4942
      %v5032 = vadd.f32 %v4725, %v4945
      %v5033 = vadd.f32 %v4726, %v4948
      %v5034 = vadd.f32 %v4727, %v4951
      %v5035 = vadd.f32 %v4728, %v4954
      %v5036 = vadd.f32 %v4729, %v4957
      %v5037 = vadd.f32 %v4730, %v4960
      %v5038 = vadd.f32 %v4731, %v4963
      %v5039 = vadd.f32 %v4732, %v4966
      %v5040 = vadd.f32 %v4733, %v4969
      %v5041 = vadd.f32 %v4734, %v4972
      %v5042 = vadd.f32 %v4735, %v4975
      %v5043 = vadd.f32 %v4736, %v4978
      %v5044 = vadd.f32 %v4737, %v4981
      %v5045 = vadd.f32 %v4738, %v4984
      %v5046 = vadd.f32 %v4739, %v4987
      %v5047 = vadd.f32 %v4740, %v4990
      %v5048 = vadd.f32 %v4741, %v4993
      %v5049 = vadd.f32 %v4742, %v4996
      %v5050 = vadd.f32 %v4743, %v4999
      %v5051 = vadd.f32 %v4744, %v5002
      %v5052 = vadd.f32 %v4745, %v5005
      %v5053 = vadd.f32 %v4746, %v5008
      %v5054 = vadd.f32 %v4747, %v5011
      %v5055 = vadd.f32 %v4748, %v5014
      %v5056 = vadd.f32 %v4749, %v5017
      %v5057 = vadd.f32 %v4750, %v5020
      %v5058 = vld [vmem:[#allocation2 + $0x14] sm:$0xff]
      %v5059 = vld [vmem:[#allocation2 + $0x1c] sm:$0xff]
      %v5060 = vld [vmem:[#allocation2 + $0x24] sm:$0xff]
      %v5061 = vld [vmem:[#allocation2 + $0x2c] sm:$0xff]
      %v5062 = vld [vmem:[#allocation2 + $0x34] sm:$0xff]
      %v5063 = vld [vmem:[#allocation2 + $0x3c] sm:$0xff]
      %v5064 = vld [vmem:[#allocation2 + $0x44] sm:$0xff]
      %v5065 = vld [vmem:[#allocation2 + $0x4c] sm:$0xff]
      %v5066 = vld [vmem:[#allocation2 + $0x54] sm:$0xff]
      %v5067 = vld [vmem:[#allocation2 + $0x5c] sm:$0xff]
      %v5068 = vld [vmem:[#allocation2 + $0x64] sm:$0xff]
      %v5069 = vld [vmem:[#allocation2 + $0x6c] sm:$0xff]
      %v5070 = vld [vmem:[#allocation2 + $0x74] sm:$0xff]
      %v5071 = vld [vmem:[#allocation2 + $0x7c] sm:$0xff]
      %v5072 = vld [vmem:[#allocation2 + $0x84] sm:$0xff]
      %v5073 = vld [vmem:[#allocation2 + $0x8c] sm:$0xff]
      %v5074 = vld [vmem:[#allocation2 + $0x94] sm:$0xff]
      %v5075 = vld [vmem:[#allocation2 + $0x9c] sm:$0xff]
      %v5076 = vld [vmem:[#allocation2 + $0xa4] sm:$0xff]
      %v5077 = vld [vmem:[#allocation2 + $0xac] sm:$0xff]
      %v5078 = vld [vmem:[#allocation2 + $0xb4] sm:$0xff]
      %v5079 = vld [vmem:[#allocation2 + $0xbc] sm:$0xff]
      %v5080 = vld [vmem:[#allocation2 + $0xc4] sm:$0xff]
      %v5081 = vld [vmem:[#allocation2 + $0xcc] sm:$0xff]
      %v5082 = vld [vmem:[#allocation2 + $0xd4] sm:$0xff]
      %v5083 = vld [vmem:[#allocation2 + $0xdc] sm:$0xff]
      %v5084 = vld [vmem:[#allocation2 + $0xe4] sm:$0xff]
      %v5085 = vld [vmem:[#allocation2 + $0xec] sm:$0xff]
      %v5086 = vld [vmem:[#allocation2 + $0xf4] sm:$0xff]
      %v5087 = vld [vmem:[#allocation2 + $0xfc] sm:$0xff]
      %v5088 = vld [vmem:[#allocation2 + $0x104] sm:$0xff]
      %v5089 = vld [vmem:[#allocation2 + $0x10c] sm:$0xff]
      %v5090 = vld [vmem:[#allocation2 + $0x114] sm:$0xff]
      %v5091 = vld [vmem:[#allocation2 + $0x11c] sm:$0xff]
      %v5092 = vld [vmem:[#allocation2 + $0x124] sm:$0xff]
      %v5093 = vld [vmem:[#allocation2 + $0x12c] sm:$0xff]
      %s5094 = scalar_lea.vmem %s3, 40
      %v5095 = vld [vmem:[%s5094] sm:$0xff]
      %v5097 = vsel %vm3169, %v5058, 0
      %v5100 = vsel %vm3169, %v5059, 0
      %v5103 = vsel %vm3169, %v5060, 0
      %v5106 = vsel %vm3169, %v5061, 0
      %v5109 = vsel %vm3169, %v5062, 0
      %v5112 = vsel %vm3169, %v5063, 0
      %v5115 = vsel %vm3169, %v5064, 0
      %v5118 = vsel %vm3169, %v5065, 0
      %v5121 = vsel %vm3169, %v5066, 0
      %v5124 = vsel %vm3169, %v5067, 0
      %v5127 = vsel %vm3169, %v5068, 0
      %v5130 = vsel %vm3169, %v5069, 0
      %v5133 = vsel %vm3169, %v5070, 0
      %v5136 = vsel %vm3169, %v5071, 0
      %v5139 = vsel %vm3169, %v5072, 0
      %v5142 = vsel %vm3169, %v5073, 0
      %v5145 = vsel %vm3169, %v5074, 0
      %v5148 = vsel %vm3169, %v5075, 0
      %v5151 = vsel %vm3169, %v5076, 0
      %v5154 = vsel %vm3169, %v5077, 0
      %v5157 = vsel %vm3169, %v5078, 0
      %v5160 = vsel %vm3169, %v5079, 0
      %v5163 = vsel %vm3169, %v5080, 0
      %v5166 = vsel %vm3169, %v5081, 0
      %v5169 = vsel %vm3169, %v5082, 0
      %v5172 = vsel %vm3169, %v5083, 0
      %v5175 = vsel %vm3169, %v5084, 0
      %v5178 = vsel %vm3169, %v5085, 0
      %v5181 = vsel %vm3169, %v5086, 0
      %v5184 = vsel %vm3169, %v5087, 0
      %v5187 = vsel %vm3169, %v5088, 0
      %v5190 = vsel %vm3169, %v5089, 0
      %v5193 = vsel %vm3169, %v5090, 0
      %v5196 = vsel %vm3169, %v5091, 0
      %v5199 = vsel %vm3169, %v5092, 0
      %v5202 = vsel %vm3169, %v5093, 0
      %5204 = vmatpush.msra.mxu0 0.0
      %5205 = vmatpush.msra.mxu0 0.0
      %5206 = vmatpush.msra.mxu0 0.0
      %5207 = vmatpush.msra.mxu0 0.0
      %5208 = vmatpush.msra.mxu0 0.0
      %5209 = vmatpush.msra.mxu0 0.0
      %5210 = vmatpush.msra.mxu0 0.0
      %5211 = vmatpush.msra.mxu0 0.0
      %5212 = vmatpush.msra.mxu0 0.0
      %5213 = vmatpush.msra.mxu0 0.0
      %5214 = vmatpush.msra.mxu0 0.0
      %5215 = vmatpush.msra.mxu0 0.0
      %5216 = vmatpush.msra.mxu0 0.0
      %5217 = vmatpush.msra.mxu0 0.0
      %5218 = vmatpush.msra.mxu0 0.0
      %5219 = vmatpush.msra.mxu0 %v5095
      %5220 = vmatmul.f32.gmra.mxu0 %v5097
      %v5221 = vpop.f32.mrf.mxu0
      %v5222 = vadd.f32 0.0, %v5221
      %5223 = vmatmul.f32.gmra.mxu0 %v5100
      %v5224 = vpop.f32.mrf.mxu0
      %v5225 = vadd.f32 0.0, %v5224
      %5226 = vmatmul.f32.gmra.mxu0 %v5103
      %v5227 = vpop.f32.mrf.mxu0
      %v5228 = vadd.f32 0.0, %v5227
      %5229 = vmatmul.f32.gmra.mxu0 %v5106
      %v5230 = vpop.f32.mrf.mxu0
      %v5231 = vadd.f32 0.0, %v5230
      %5232 = vmatmul.f32.gmra.mxu0 %v5109
      %v5233 = vpop.f32.mrf.mxu0
      %v5234 = vadd.f32 0.0, %v5233
      %5235 = vmatmul.f32.gmra.mxu0 %v5112
      %v5236 = vpop.f32.mrf.mxu0
      %v5237 = vadd.f32 0.0, %v5236
      %5238 = vmatmul.f32.gmra.mxu0 %v5115
      %v5239 = vpop.f32.mrf.mxu0
      %v5240 = vadd.f32 0.0, %v5239
      %5241 = vmatmul.f32.gmra.mxu0 %v5118
      %v5242 = vpop.f32.mrf.mxu0
      %v5243 = vadd.f32 0.0, %v5242
      %5244 = vmatmul.f32.gmra.mxu0 %v5121
      %v5245 = vpop.f32.mrf.mxu0
      %v5246 = vadd.f32 0.0, %v5245
      %5247 = vmatmul.f32.gmra.mxu0 %v5124
      %v5248 = vpop.f32.mrf.mxu0
      %v5249 = vadd.f32 0.0, %v5248
      %5250 = vmatmul.f32.gmra.mxu0 %v5127
      %v5251 = vpop.f32.mrf.mxu0
      %v5252 = vadd.f32 0.0, %v5251
      %5253 = vmatmul.f32.gmra.mxu0 %v5130
      %v5254 = vpop.f32.mrf.mxu0
      %v5255 = vadd.f32 0.0, %v5254
      %5256 = vmatmul.f32.gmra.mxu0 %v5133
      %v5257 = vpop.f32.mrf.mxu0
      %v5258 = vadd.f32 0.0, %v5257
      %5259 = vmatmul.f32.gmra.mxu0 %v5136
      %v5260 = vpop.f32.mrf.mxu0
      %v5261 = vadd.f32 0.0, %v5260
      %5262 = vmatmul.f32.gmra.mxu0 %v5139
      %v5263 = vpop.f32.mrf.mxu0
      %v5264 = vadd.f32 0.0, %v5263
      %5265 = vmatmul.f32.gmra.mxu0 %v5142
      %v5266 = vpop.f32.mrf.mxu0
      %v5267 = vadd.f32 0.0, %v5266
      %5268 = vmatmul.f32.gmra.mxu0 %v5145
      %v5269 = vpop.f32.mrf.mxu0
      %v5270 = vadd.f32 0.0, %v5269
      %5271 = vmatmul.f32.gmra.mxu0 %v5148
      %v5272 = vpop.f32.mrf.mxu0
      %v5273 = vadd.f32 0.0, %v5272
      %5274 = vmatmul.f32.gmra.mxu0 %v5151
      %v5275 = vpop.f32.mrf.mxu0
      %v5276 = vadd.f32 0.0, %v5275
      %5277 = vmatmul.f32.gmra.mxu0 %v5154
      %v5278 = vpop.f32.mrf.mxu0
      %v5279 = vadd.f32 0.0, %v5278
      %5280 = vmatmul.f32.gmra.mxu0 %v5157
      %v5281 = vpop.f32.mrf.mxu0
      %v5282 = vadd.f32 0.0, %v5281
      %5283 = vmatmul.f32.gmra.mxu0 %v5160
      %v5284 = vpop.f32.mrf.mxu0
      %v5285 = vadd.f32 0.0, %v5284
      %5286 = vmatmul.f32.gmra.mxu0 %v5163
      %v5287 = vpop.f32.mrf.mxu0
      %v5288 = vadd.f32 0.0, %v5287
      %5289 = vmatmul.f32.gmra.mxu0 %v5166
      %v5290 = vpop.f32.mrf.mxu0
      %v5291 = vadd.f32 0.0, %v5290
      %5292 = vmatmul.f32.gmra.mxu0 %v5169
      %v5293 = vpop.f32.mrf.mxu0
      %v5294 = vadd.f32 0.0, %v5293
      %5295 = vmatmul.f32.gmra.mxu0 %v5172
      %v5296 = vpop.f32.mrf.mxu0
      %v5297 = vadd.f32 0.0, %v5296
      %5298 = vmatmul.f32.gmra.mxu0 %v5175
      %v5299 = vpop.f32.mrf.mxu0
      %v5300 = vadd.f32 0.0, %v5299
      %5301 = vmatmul.f32.gmra.mxu0 %v5178
      %v5302 = vpop.f32.mrf.mxu0
      %v5303 = vadd.f32 0.0, %v5302
      %5304 = vmatmul.f32.gmra.mxu0 %v5181
      %v5305 = vpop.f32.mrf.mxu0
      %v5306 = vadd.f32 0.0, %v5305
      %5307 = vmatmul.f32.gmra.mxu0 %v5184
      %v5308 = vpop.f32.mrf.mxu0
      %v5309 = vadd.f32 0.0, %v5308
      %5310 = vmatmul.f32.gmra.mxu0 %v5187
      %v5311 = vpop.f32.mrf.mxu0
      %v5312 = vadd.f32 0.0, %v5311
      %5313 = vmatmul.f32.gmra.mxu0 %v5190
      %v5314 = vpop.f32.mrf.mxu0
      %v5315 = vadd.f32 0.0, %v5314
      %5316 = vmatmul.f32.gmra.mxu0 %v5193
      %v5317 = vpop.f32.mrf.mxu0
      %v5318 = vadd.f32 0.0, %v5317
      %5319 = vmatmul.f32.gmra.mxu0 %v5196
      %v5320 = vpop.f32.mrf.mxu0
      %v5321 = vadd.f32 0.0, %v5320
      %5322 = vmatmul.f32.gmra.mxu0 %v5199
      %v5323 = vpop.f32.mrf.mxu0
      %v5324 = vadd.f32 0.0, %v5323
      %5325 = vmatmul.f32.gmra.mxu0 %v5202
      %v5326 = vpop.f32.mrf.mxu0
      %v5327 = vadd.f32 0.0, %v5326
      %5328 = vdwg.mxu0
      %v5329 = vadd.f32 %v5022, %v5222
      %v5330 = vadd.f32 %v5023, %v5225
      %v5331 = vadd.f32 %v5024, %v5228
      %v5332 = vadd.f32 %v5025, %v5231
      %v5333 = vadd.f32 %v5026, %v5234
      %v5334 = vadd.f32 %v5027, %v5237
      %v5335 = vadd.f32 %v5028, %v5240
      %v5336 = vadd.f32 %v5029, %v5243
      %v5337 = vadd.f32 %v5030, %v5246
      %v5338 = vadd.f32 %v5031, %v5249
      %v5339 = vadd.f32 %v5032, %v5252
      %v5340 = vadd.f32 %v5033, %v5255
      %v5341 = vadd.f32 %v5034, %v5258
      %v5342 = vadd.f32 %v5035, %v5261
      %v5343 = vadd.f32 %v5036, %v5264
      %v5344 = vadd.f32 %v5037, %v5267
      %v5345 = vadd.f32 %v5038, %v5270
      %v5346 = vadd.f32 %v5039, %v5273
      %v5347 = vadd.f32 %v5040, %v5276
      %v5348 = vadd.f32 %v5041, %v5279
      %v5349 = vadd.f32 %v5042, %v5282
      %v5350 = vadd.f32 %v5043, %v5285
      %v5351 = vadd.f32 %v5044, %v5288
      %v5352 = vadd.f32 %v5045, %v5291
      %v5353 = vadd.f32 %v5046, %v5294
      %v5354 = vadd.f32 %v5047, %v5297
      %v5355 = vadd.f32 %v5048, %v5300
      %v5356 = vadd.f32 %v5049, %v5303
      %v5357 = vadd.f32 %v5050, %v5306
      %v5358 = vadd.f32 %v5051, %v5309
      %v5359 = vadd.f32 %v5052, %v5312
      %v5360 = vadd.f32 %v5053, %v5315
      %v5361 = vadd.f32 %v5054, %v5318
      %v5362 = vadd.f32 %v5055, %v5321
      %v5363 = vadd.f32 %v5056, %v5324
      %v5364 = vadd.f32 %v5057, %v5327
      %v5365 = vld [vmem:[#allocation2 + $0x24] sm:$0xff]
      %v5366 = vld [vmem:[#allocation2 + $0x2c] sm:$0xff]
      %v5367 = vld [vmem:[#allocation2 + $0x34] sm:$0xff]
      %v5368 = vld [vmem:[#allocation2 + $0x3c] sm:$0xff]
      %v5369 = vld [vmem:[#allocation2 + $0x44] sm:$0xff]
      %v5370 = vld [vmem:[#allocation2 + $0x4c] sm:$0xff]
      %v5371 = vld [vmem:[#allocation2 + $0x54] sm:$0xff]
      %v5372 = vld [vmem:[#allocation2 + $0x5c] sm:$0xff]
      %v5373 = vld [vmem:[#allocation2 + $0x64] sm:$0xff]
      %v5374 = vld [vmem:[#allocation2 + $0x6c] sm:$0xff]
      %v5375 = vld [vmem:[#allocation2 + $0x74] sm:$0xff]
      %v5376 = vld [vmem:[#allocation2 + $0x7c] sm:$0xff]
      %v5377 = vld [vmem:[#allocation2 + $0x84] sm:$0xff]
      %v5378 = vld [vmem:[#allocation2 + $0x8c] sm:$0xff]
      %v5379 = vld [vmem:[#allocation2 + $0x94] sm:$0xff]
      %v5380 = vld [vmem:[#allocation2 + $0x9c] sm:$0xff]
      %v5381 = vld [vmem:[#allocation2 + $0xa4] sm:$0xff]
      %v5382 = vld [vmem:[#allocation2 + $0xac] sm:$0xff]
      %v5383 = vld [vmem:[#allocation2 + $0xb4] sm:$0xff]
      %v5384 = vld [vmem:[#allocation2 + $0xbc] sm:$0xff]
      %v5385 = vld [vmem:[#allocation2 + $0xc4] sm:$0xff]
      %v5386 = vld [vmem:[#allocation2 + $0xcc] sm:$0xff]
      %v5387 = vld [vmem:[#allocation2 + $0xd4] sm:$0xff]
      %v5388 = vld [vmem:[#allocation2 + $0xdc] sm:$0xff]
      %v5389 = vld [vmem:[#allocation2 + $0xe4] sm:$0xff]
      %v5390 = vld [vmem:[#allocation2 + $0xec] sm:$0xff]
      %v5391 = vld [vmem:[#allocation2 + $0xf4] sm:$0xff]
      %v5392 = vld [vmem:[#allocation2 + $0xfc] sm:$0xff]
      %v5393 = vld [vmem:[#allocation2 + $0x104] sm:$0xff]
      %v5394 = vld [vmem:[#allocation2 + $0x10c] sm:$0xff]
      %v5395 = vld [vmem:[#allocation2 + $0x114] sm:$0xff]
      %v5396 = vld [vmem:[#allocation2 + $0x11c] sm:$0xff]
      %v5397 = vld [vmem:[#allocation2 + $0x124] sm:$0xff]
      %v5398 = vld [vmem:[#allocation2 + $0x12c] sm:$0xff]
      %v5399 = vld [vmem:[#allocation2 + $0x134] sm:$0xff]
      %v5400 = vld [vmem:[#allocation2 + $0x13c] sm:$0xff]
      %s5401 = scalar_lea.vmem %s3, 48
      %v5402 = vld [vmem:[%s5401] sm:$0xff]
      %v5404 = vsel %vm3169, %v5365, 0
      %v5407 = vsel %vm3169, %v5366, 0
      %v5410 = vsel %vm3169, %v5367, 0
      %v5413 = vsel %vm3169, %v5368, 0
      %v5416 = vsel %vm3169, %v5369, 0
      %v5419 = vsel %vm3169, %v5370, 0
      %v5422 = vsel %vm3169, %v5371, 0
      %v5425 = vsel %vm3169, %v5372, 0
      %v5428 = vsel %vm3169, %v5373, 0
      %v5431 = vsel %vm3169, %v5374, 0
      %v5434 = vsel %vm3169, %v5375, 0
      %v5437 = vsel %vm3169, %v5376, 0
      %v5440 = vsel %vm3169, %v5377, 0
      %v5443 = vsel %vm3169, %v5378, 0
      %v5446 = vsel %vm3169, %v5379, 0
      %v5449 = vsel %vm3169, %v5380, 0
      %v5452 = vsel %vm3169, %v5381, 0
      %v5455 = vsel %vm3169, %v5382, 0
      %v5458 = vsel %vm3169, %v5383, 0
      %v5461 = vsel %vm3169, %v5384, 0
      %v5464 = vsel %vm3169, %v5385, 0
      %v5467 = vsel %vm3169, %v5386, 0
      %v5470 = vsel %vm3169, %v5387, 0
      %v5473 = vsel %vm3169, %v5388, 0
      %v5476 = vsel %vm3169, %v5389, 0
      %v5479 = vsel %vm3169, %v5390, 0
      %v5482 = vsel %vm3169, %v5391, 0
      %v5485 = vsel %vm3169, %v5392, 0
      %v5488 = vsel %vm3169, %v5393, 0
      %v5491 = vsel %vm3169, %v5394, 0
      %v5494 = vsel %vm3169, %v5395, 0
      %v5497 = vsel %vm3169, %v5396, 0
      %v5500 = vsel %vm3169, %v5397, 0
      %v5503 = vsel %vm3169, %v5398, 0
      %v5506 = vsel %vm3169, %v5399, 0
      %v5509 = vsel %vm3169, %v5400, 0
      %5511 = vmatpush.msra.mxu0 0.0
      %5512 = vmatpush.msra.mxu0 0.0
      %5513 = vmatpush.msra.mxu0 0.0
      %5514 = vmatpush.msra.mxu0 0.0
      %5515 = vmatpush.msra.mxu0 0.0
      %5516 = vmatpush.msra.mxu0 0.0
      %5517 = vmatpush.msra.mxu0 0.0
      %5518 = vmatpush.msra.mxu0 0.0
      %5519 = vmatpush.msra.mxu0 0.0
      %5520 = vmatpush.msra.mxu0 0.0
      %5521 = vmatpush.msra.mxu0 0.0
      %5522 = vmatpush.msra.mxu0 0.0
      %5523 = vmatpush.msra.mxu0 0.0
      %5524 = vmatpush.msra.mxu0 0.0
      %5525 = vmatpush.msra.mxu0 0.0
      %5526 = vmatpush.msra.mxu0 %v5402
      %5527 = vmatmul.f32.gmra.mxu0 %v5404
      %v5528 = vpop.f32.mrf.mxu0
      %v5529 = vadd.f32 0.0, %v5528
      %5530 = vmatmul.f32.gmra.mxu0 %v5407
      %v5531 = vpop.f32.mrf.mxu0
      %v5532 = vadd.f32 0.0, %v5531
      %5533 = vmatmul.f32.gmra.mxu0 %v5410
      %v5534 = vpop.f32.mrf.mxu0
      %v5535 = vadd.f32 0.0, %v5534
      %5536 = vmatmul.f32.gmra.mxu0 %v5413
      %v5537 = vpop.f32.mrf.mxu0
      %v5538 = vadd.f32 0.0, %v5537
      %5539 = vmatmul.f32.gmra.mxu0 %v5416
      %v5540 = vpop.f32.mrf.mxu0
      %v5541 = vadd.f32 0.0, %v5540
      %5542 = vmatmul.f32.gmra.mxu0 %v5419
      %v5543 = vpop.f32.mrf.mxu0
      %v5544 = vadd.f32 0.0, %v5543
      %5545 = vmatmul.f32.gmra.mxu0 %v5422
      %v5546 = vpop.f32.mrf.mxu0
      %v5547 = vadd.f32 0.0, %v5546
      %5548 = vmatmul.f32.gmra.mxu0 %v5425
      %v5549 = vpop.f32.mrf.mxu0
      %v5550 = vadd.f32 0.0, %v5549
      %5551 = vmatmul.f32.gmra.mxu0 %v5428
      %v5552 = vpop.f32.mrf.mxu0
      %v5553 = vadd.f32 0.0, %v5552
      %5554 = vmatmul.f32.gmra.mxu0 %v5431
      %v5555 = vpop.f32.mrf.mxu0
      %v5556 = vadd.f32 0.0, %v5555
      %5557 = vmatmul.f32.gmra.mxu0 %v5434
      %v5558 = vpop.f32.mrf.mxu0
      %v5559 = vadd.f32 0.0, %v5558
      %5560 = vmatmul.f32.gmra.mxu0 %v5437
      %v5561 = vpop.f32.mrf.mxu0
      %v5562 = vadd.f32 0.0, %v5561
      %5563 = vmatmul.f32.gmra.mxu0 %v5440
      %v5564 = vpop.f32.mrf.mxu0
      %v5565 = vadd.f32 0.0, %v5564
      %5566 = vmatmul.f32.gmra.mxu0 %v5443
      %v5567 = vpop.f32.mrf.mxu0
      %v5568 = vadd.f32 0.0, %v5567
      %5569 = vmatmul.f32.gmra.mxu0 %v5446
      %v5570 = vpop.f32.mrf.mxu0
      %v5571 = vadd.f32 0.0, %v5570
      %5572 = vmatmul.f32.gmra.mxu0 %v5449
      %v5573 = vpop.f32.mrf.mxu0
      %v5574 = vadd.f32 0.0, %v5573
      %5575 = vmatmul.f32.gmra.mxu0 %v5452
      %v5576 = vpop.f32.mrf.mxu0
      %v5577 = vadd.f32 0.0, %v5576
      %5578 = vmatmul.f32.gmra.mxu0 %v5455
      %v5579 = vpop.f32.mrf.mxu0
      %v5580 = vadd.f32 0.0, %v5579
      %5581 = vmatmul.f32.gmra.mxu0 %v5458
      %v5582 = vpop.f32.mrf.mxu0
      %v5583 = vadd.f32 0.0, %v5582
      %5584 = vmatmul.f32.gmra.mxu0 %v5461
      %v5585 = vpop.f32.mrf.mxu0
      %v5586 = vadd.f32 0.0, %v5585
      %5587 = vmatmul.f32.gmra.mxu0 %v5464
      %v5588 = vpop.f32.mrf.mxu0
      %v5589 = vadd.f32 0.0, %v5588
      %5590 = vmatmul.f32.gmra.mxu0 %v5467
      %v5591 = vpop.f32.mrf.mxu0
      %v5592 = vadd.f32 0.0, %v5591
      %5593 = vmatmul.f32.gmra.mxu0 %v5470
      %v5594 = vpop.f32.mrf.mxu0
      %v5595 = vadd.f32 0.0, %v5594
      %5596 = vmatmul.f32.gmra.mxu0 %v5473
      %v5597 = vpop.f32.mrf.mxu0
      %v5598 = vadd.f32 0.0, %v5597
      %5599 = vmatmul.f32.gmra.mxu0 %v5476
      %v5600 = vpop.f32.mrf.mxu0
      %v5601 = vadd.f32 0.0, %v5600
      %5602 = vmatmul.f32.gmra.mxu0 %v5479
      %v5603 = vpop.f32.mrf.mxu0
      %v5604 = vadd.f32 0.0, %v5603
      %5605 = vmatmul.f32.gmra.mxu0 %v5482
      %v5606 = vpop.f32.mrf.mxu0
      %v5607 = vadd.f32 0.0, %v5606
      %5608 = vmatmul.f32.gmra.mxu0 %v5485
      %v5609 = vpop.f32.mrf.mxu0
      %v5610 = vadd.f32 0.0, %v5609
      %5611 = vmatmul.f32.gmra.mxu0 %v5488
      %v5612 = vpop.f32.mrf.mxu0
      %v5613 = vadd.f32 0.0, %v5612
      %5614 = vmatmul.f32.gmra.mxu0 %v5491
      %v5615 = vpop.f32.mrf.mxu0
      %v5616 = vadd.f32 0.0, %v5615
      %5617 = vmatmul.f32.gmra.mxu0 %v5494
      %v5618 = vpop.f32.mrf.mxu0
      %v5619 = vadd.f32 0.0, %v5618
      %5620 = vmatmul.f32.gmra.mxu0 %v5497
      %v5621 = vpop.f32.mrf.mxu0
      %v5622 = vadd.f32 0.0, %v5621
      %5623 = vmatmul.f32.gmra.mxu0 %v5500
      %v5624 = vpop.f32.mrf.mxu0
      %v5625 = vadd.f32 0.0, %v5624
      %5626 = vmatmul.f32.gmra.mxu0 %v5503
      %v5627 = vpop.f32.mrf.mxu0
      %v5628 = vadd.f32 0.0, %v5627
      %5629 = vmatmul.f32.gmra.mxu0 %v5506
      %v5630 = vpop.f32.mrf.mxu0
      %v5631 = vadd.f32 0.0, %v5630
      %5632 = vmatmul.f32.gmra.mxu0 %v5509
      %v5633 = vpop.f32.mrf.mxu0
      %v5634 = vadd.f32 0.0, %v5633
      %5635 = vdwg.mxu0
      %v5636 = vadd.f32 %v5329, %v5529
      %v5637 = vadd.f32 %v5330, %v5532
      %v5638 = vadd.f32 %v5331, %v5535
      %v5639 = vadd.f32 %v5332, %v5538
      %v5640 = vadd.f32 %v5333, %v5541
      %v5641 = vadd.f32 %v5334, %v5544
      %v5642 = vadd.f32 %v5335, %v5547
      %v5643 = vadd.f32 %v5336, %v5550
      %v5644 = vadd.f32 %v5337, %v5553
      %v5645 = vadd.f32 %v5338, %v5556
      %v5646 = vadd.f32 %v5339, %v5559
      %v5647 = vadd.f32 %v5340, %v5562
      %v5648 = vadd.f32 %v5341, %v5565
      %v5649 = vadd.f32 %v5342, %v5568
      %v5650 = vadd.f32 %v5343, %v5571
      %v5651 = vadd.f32 %v5344, %v5574
      %v5652 = vadd.f32 %v5345, %v5577
      %v5653 = vadd.f32 %v5346, %v5580
      %v5654 = vadd.f32 %v5347, %v5583
      %v5655 = vadd.f32 %v5348, %v5586
      %v5656 = vadd.f32 %v5349, %v5589
      %v5657 = vadd.f32 %v5350, %v5592
      %v5658 = vadd.f32 %v5351, %v5595
      %v5659 = vadd.f32 %v5352, %v5598
      %v5660 = vadd.f32 %v5353, %v5601
      %v5661 = vadd.f32 %v5354, %v5604
      %v5662 = vadd.f32 %v5355, %v5607
      %v5663 = vadd.f32 %v5356, %v5610
      %v5664 = vadd.f32 %v5357, %v5613
      %v5665 = vadd.f32 %v5358, %v5616
      %v5666 = vadd.f32 %v5359, %v5619
      %v5667 = vadd.f32 %v5360, %v5622
      %v5668 = vadd.f32 %v5361, %v5625
      %v5669 = vadd.f32 %v5362, %v5628
      %v5670 = vadd.f32 %v5363, %v5631
      %v5671 = vadd.f32 %v5364, %v5634
      %v5672 = vld [vmem:[#allocation2 + $0x25] sm:$0xff]
      %v5673 = vld [vmem:[#allocation2 + $0x2d] sm:$0xff]
      %v5674 = vld [vmem:[#allocation2 + $0x35] sm:$0xff]
      %v5675 = vld [vmem:[#allocation2 + $0x3d] sm:$0xff]
      %v5676 = vld [vmem:[#allocation2 + $0x45] sm:$0xff]
      %v5677 = vld [vmem:[#allocation2 + $0x4d] sm:$0xff]
      %v5678 = vld [vmem:[#allocation2 + $0x55] sm:$0xff]
      %v5679 = vld [vmem:[#allocation2 + $0x5d] sm:$0xff]
      %v5680 = vld [vmem:[#allocation2 + $0x65] sm:$0xff]
      %v5681 = vld [vmem:[#allocation2 + $0x6d] sm:$0xff]
      %v5682 = vld [vmem:[#allocation2 + $0x75] sm:$0xff]
      %v5683 = vld [vmem:[#allocation2 + $0x7d] sm:$0xff]
      %v5684 = vld [vmem:[#allocation2 + $0x85] sm:$0xff]
      %v5685 = vld [vmem:[#allocation2 + $0x8d] sm:$0xff]
      %v5686 = vld [vmem:[#allocation2 + $0x95] sm:$0xff]
      %v5687 = vld [vmem:[#allocation2 + $0x9d] sm:$0xff]
      %v5688 = vld [vmem:[#allocation2 + $0xa5] sm:$0xff]
      %v5689 = vld [vmem:[#allocation2 + $0xad] sm:$0xff]
      %v5690 = vld [vmem:[#allocation2 + $0xb5] sm:$0xff]
      %v5691 = vld [vmem:[#allocation2 + $0xbd] sm:$0xff]
      %v5692 = vld [vmem:[#allocation2 + $0xc5] sm:$0xff]
      %v5693 = vld [vmem:[#allocation2 + $0xcd] sm:$0xff]
      %v5694 = vld [vmem:[#allocation2 + $0xd5] sm:$0xff]
      %v5695 = vld [vmem:[#allocation2 + $0xdd] sm:$0xff]
      %v5696 = vld [vmem:[#allocation2 + $0xe5] sm:$0xff]
      %v5697 = vld [vmem:[#allocation2 + $0xed] sm:$0xff]
      %v5698 = vld [vmem:[#allocation2 + $0xf5] sm:$0xff]
      %v5699 = vld [vmem:[#allocation2 + $0xfd] sm:$0xff]
      %v5700 = vld [vmem:[#allocation2 + $0x105] sm:$0xff]
      %v5701 = vld [vmem:[#allocation2 + $0x10d] sm:$0xff]
      %v5702 = vld [vmem:[#allocation2 + $0x115] sm:$0xff]
      %v5703 = vld [vmem:[#allocation2 + $0x11d] sm:$0xff]
      %v5704 = vld [vmem:[#allocation2 + $0x125] sm:$0xff]
      %v5705 = vld [vmem:[#allocation2 + $0x12d] sm:$0xff]
      %v5706 = vld [vmem:[#allocation2 + $0x135] sm:$0xff]
      %v5707 = vld [vmem:[#allocation2 + $0x13d] sm:$0xff]
      %s5708 = scalar_lea.vmem %s3, 56
      %v5709 = vld [vmem:[%s5708] sm:$0xff]
      %v5711 = vsel %vm3169, %v5672, 0
      %v5714 = vsel %vm3169, %v5673, 0
      %v5717 = vsel %vm3169, %v5674, 0
      %v5720 = vsel %vm3169, %v5675, 0
      %v5723 = vsel %vm3169, %v5676, 0
      %v5726 = vsel %vm3169, %v5677, 0
      %v5729 = vsel %vm3169, %v5678, 0
      %v5732 = vsel %vm3169, %v5679, 0
      %v5735 = vsel %vm3169, %v5680, 0
      %v5738 = vsel %vm3169, %v5681, 0
      %v5741 = vsel %vm3169, %v5682, 0
      %v5744 = vsel %vm3169, %v5683, 0
      %v5747 = vsel %vm3169, %v5684, 0
      %v5750 = vsel %vm3169, %v5685, 0
      %v5753 = vsel %vm3169, %v5686, 0
      %v5756 = vsel %vm3169, %v5687, 0
      %v5759 = vsel %vm3169, %v5688, 0
      %v5762 = vsel %vm3169, %v5689, 0
      %v5765 = vsel %vm3169, %v5690, 0
      %v5768 = vsel %vm3169, %v5691, 0
      %v5771 = vsel %vm3169, %v5692, 0
      %v5774 = vsel %vm3169, %v5693, 0
      %v5777 = vsel %vm3169, %v5694, 0
      %v5780 = vsel %vm3169, %v5695, 0
      %v5783 = vsel %vm3169, %v5696, 0
      %v5786 = vsel %vm3169, %v5697, 0
      %v5789 = vsel %vm3169, %v5698, 0
      %v5792 = vsel %vm3169, %v5699, 0
      %v5795 = vsel %vm3169, %v5700, 0
      %v5798 = vsel %vm3169, %v5701, 0
      %v5801 = vsel %vm3169, %v5702, 0
      %v5804 = vsel %vm3169, %v5703, 0
      %v5807 = vsel %vm3169, %v5704, 0
      %v5810 = vsel %vm3169, %v5705, 0
      %v5813 = vsel %vm3169, %v5706, 0
      %v5816 = vsel %vm3169, %v5707, 0
      %5818 = vmatpush.msra.mxu0 0.0
      %5819 = vmatpush.msra.mxu0 0.0
      %5820 = vmatpush.msra.mxu0 0.0
      %5821 = vmatpush.msra.mxu0 0.0
      %5822 = vmatpush.msra.mxu0 0.0
      %5823 = vmatpush.msra.mxu0 0.0
      %5824 = vmatpush.msra.mxu0 0.0
      %5825 = vmatpush.msra.mxu0 0.0
      %5826 = vmatpush.msra.mxu0 0.0
      %5827 = vmatpush.msra.mxu0 0.0
      %5828 = vmatpush.msra.mxu0 0.0
      %5829 = vmatpush.msra.mxu0 0.0
      %5830 = vmatpush.msra.mxu0 0.0
      %5831 = vmatpush.msra.mxu0 0.0
      %5832 = vmatpush.msra.mxu0 0.0
      %5833 = vmatpush.msra.mxu0 %v5709
      %5834 = vmatmul.f32.gmra.mxu0 %v5711
      %v5835 = vpop.f32.mrf.mxu0
      %v5836 = vadd.f32 0.0, %v5835
      %5837 = vmatmul.f32.gmra.mxu0 %v5714
      %v5838 = vpop.f32.mrf.mxu0
      %v5839 = vadd.f32 0.0, %v5838
      %5840 = vmatmul.f32.gmra.mxu0 %v5717
      %v5841 = vpop.f32.mrf.mxu0
      %v5842 = vadd.f32 0.0, %v5841
      %5843 = vmatmul.f32.gmra.mxu0 %v5720
      %v5844 = vpop.f32.mrf.mxu0
      %v5845 = vadd.f32 0.0, %v5844
      %5846 = vmatmul.f32.gmra.mxu0 %v5723
      %v5847 = vpop.f32.mrf.mxu0
      %v5848 = vadd.f32 0.0, %v5847
      %5849 = vmatmul.f32.gmra.mxu0 %v5726
      %v5850 = vpop.f32.mrf.mxu0
      %v5851 = vadd.f32 0.0, %v5850
      %5852 = vmatmul.f32.gmra.mxu0 %v5729
      %v5853 = vpop.f32.mrf.mxu0
      %v5854 = vadd.f32 0.0, %v5853
      %5855 = vmatmul.f32.gmra.mxu0 %v5732
      %v5856 = vpop.f32.mrf.mxu0
      %v5857 = vadd.f32 0.0, %v5856
      %5858 = vmatmul.f32.gmra.mxu0 %v5735
      %v5859 = vpop.f32.mrf.mxu0
      %v5860 = vadd.f32 0.0, %v5859
      %5861 = vmatmul.f32.gmra.mxu0 %v5738
      %v5862 = vpop.f32.mrf.mxu0
      %v5863 = vadd.f32 0.0, %v5862
      %5864 = vmatmul.f32.gmra.mxu0 %v5741
      %v5865 = vpop.f32.mrf.mxu0
      %v5866 = vadd.f32 0.0, %v5865
      %5867 = vmatmul.f32.gmra.mxu0 %v5744
      %v5868 = vpop.f32.mrf.mxu0
      %v5869 = vadd.f32 0.0, %v5868
      %5870 = vmatmul.f32.gmra.mxu0 %v5747
      %v5871 = vpop.f32.mrf.mxu0
      %v5872 = vadd.f32 0.0, %v5871
      %5873 = vmatmul.f32.gmra.mxu0 %v5750
      %v5874 = vpop.f32.mrf.mxu0
      %v5875 = vadd.f32 0.0, %v5874
      %5876 = vmatmul.f32.gmra.mxu0 %v5753
      %v5877 = vpop.f32.mrf.mxu0
      %v5878 = vadd.f32 0.0, %v5877
      %5879 = vmatmul.f32.gmra.mxu0 %v5756
      %v5880 = vpop.f32.mrf.mxu0
      %v5881 = vadd.f32 0.0, %v5880
      %5882 = vmatmul.f32.gmra.mxu0 %v5759
      %v5883 = vpop.f32.mrf.mxu0
      %v5884 = vadd.f32 0.0, %v5883
      %5885 = vmatmul.f32.gmra.mxu0 %v5762
      %v5886 = vpop.f32.mrf.mxu0
      %v5887 = vadd.f32 0.0, %v5886
      %5888 = vmatmul.f32.gmra.mxu0 %v5765
      %v5889 = vpop.f32.mrf.mxu0
      %v5890 = vadd.f32 0.0, %v5889
      %5891 = vmatmul.f32.gmra.mxu0 %v5768
      %v5892 = vpop.f32.mrf.mxu0
      %v5893 = vadd.f32 0.0, %v5892
      %5894 = vmatmul.f32.gmra.mxu0 %v5771
      %v5895 = vpop.f32.mrf.mxu0
      %v5896 = vadd.f32 0.0, %v5895
      %5897 = vmatmul.f32.gmra.mxu0 %v5774
      %v5898 = vpop.f32.mrf.mxu0
      %v5899 = vadd.f32 0.0, %v5898
      %5900 = vmatmul.f32.gmra.mxu0 %v5777
      %v5901 = vpop.f32.mrf.mxu0
      %v5902 = vadd.f32 0.0, %v5901
      %5903 = vmatmul.f32.gmra.mxu0 %v5780
      %v5904 = vpop.f32.mrf.mxu0
      %v5905 = vadd.f32 0.0, %v5904
      %5906 = vmatmul.f32.gmra.mxu0 %v5783
      %v5907 = vpop.f32.mrf.mxu0
      %v5908 = vadd.f32 0.0, %v5907
      %5909 = vmatmul.f32.gmra.mxu0 %v5786
      %v5910 = vpop.f32.mrf.mxu0
      %v5911 = vadd.f32 0.0, %v5910
      %5912 = vmatmul.f32.gmra.mxu0 %v5789
      %v5913 = vpop.f32.mrf.mxu0
      %v5914 = vadd.f32 0.0, %v5913
      %5915 = vmatmul.f32.gmra.mxu0 %v5792
      %v5916 = vpop.f32.mrf.mxu0
      %v5917 = vadd.f32 0.0, %v5916
      %5918 = vmatmul.f32.gmra.mxu0 %v5795
      %v5919 = vpop.f32.mrf.mxu0
      %v5920 = vadd.f32 0.0, %v5919
      %5921 = vmatmul.f32.gmra.mxu0 %v5798
      %v5922 = vpop.f32.mrf.mxu0
      %v5923 = vadd.f32 0.0, %v5922
      %5924 = vmatmul.f32.gmra.mxu0 %v5801
      %v5925 = vpop.f32.mrf.mxu0
      %v5926 = vadd.f32 0.0, %v5925
      %5927 = vmatmul.f32.gmra.mxu0 %v5804
      %v5928 = vpop.f32.mrf.mxu0
      %v5929 = vadd.f32 0.0, %v5928
      %5930 = vmatmul.f32.gmra.mxu0 %v5807
      %v5931 = vpop.f32.mrf.mxu0
      %v5932 = vadd.f32 0.0, %v5931
      %5933 = vmatmul.f32.gmra.mxu0 %v5810
      %v5934 = vpop.f32.mrf.mxu0
      %v5935 = vadd.f32 0.0, %v5934
      %5936 = vmatmul.f32.gmra.mxu0 %v5813
      %v5937 = vpop.f32.mrf.mxu0
      %v5938 = vadd.f32 0.0, %v5937
      %5939 = vmatmul.f32.gmra.mxu0 %v5816
      %v5940 = vpop.f32.mrf.mxu0
      %v5941 = vadd.f32 0.0, %v5940
      %5942 = vdwg.mxu0
      %v5943 = vadd.f32 %v5636, %v5836
      %v5944 = vadd.f32 %v5637, %v5839
      %v5945 = vadd.f32 %v5638, %v5842
      %v5946 = vadd.f32 %v5639, %v5845
      %v5947 = vadd.f32 %v5640, %v5848
      %v5948 = vadd.f32 %v5641, %v5851
      %v5949 = vadd.f32 %v5642, %v5854
      %v5950 = vadd.f32 %v5643, %v5857
      %v5951 = vadd.f32 %v5644, %v5860
      %v5952 = vadd.f32 %v5645, %v5863
      %v5953 = vadd.f32 %v5646, %v5866
      %v5954 = vadd.f32 %v5647, %v5869
      %v5955 = vadd.f32 %v5648, %v5872
      %v5956 = vadd.f32 %v5649, %v5875
      %v5957 = vadd.f32 %v5650, %v5878
      %v5958 = vadd.f32 %v5651, %v5881
      %v5959 = vadd.f32 %v5652, %v5884
      %v5960 = vadd.f32 %v5653, %v5887
      %v5961 = vadd.f32 %v5654, %v5890
      %v5962 = vadd.f32 %v5655, %v5893
      %v5963 = vadd.f32 %v5656, %v5896
      %v5964 = vadd.f32 %v5657, %v5899
      %v5965 = vadd.f32 %v5658, %v5902
      %v5966 = vadd.f32 %v5659, %v5905
      %v5967 = vadd.f32 %v5660, %v5908
      %v5968 = vadd.f32 %v5661, %v5911
      %v5969 = vadd.f32 %v5662, %v5914
      %v5970 = vadd.f32 %v5663, %v5917
      %v5971 = vadd.f32 %v5664, %v5920
      %v5972 = vadd.f32 %v5665, %v5923
      %v5973 = vadd.f32 %v5666, %v5926
      %v5974 = vadd.f32 %v5667, %v5929
      %v5975 = vadd.f32 %v5668, %v5932
      %v5976 = vadd.f32 %v5669, %v5935
      %v5977 = vadd.f32 %v5670, %v5938
      %v5978 = vadd.f32 %v5671, %v5941
      %v5979 = vld [vmem:[#allocation2 + $0x26] sm:$0xff]
      %v5980 = vld [vmem:[#allocation2 + $0x2e] sm:$0xff]
      %v5981 = vld [vmem:[#allocation2 + $0x36] sm:$0xff]
      %v5982 = vld [vmem:[#allocation2 + $0x3e] sm:$0xff]
      %v5983 = vld [vmem:[#allocation2 + $0x46] sm:$0xff]
      %v5984 = vld [vmem:[#allocation2 + $0x4e] sm:$0xff]
      %v5985 = vld [vmem:[#allocation2 + $0x56] sm:$0xff]
      %v5986 = vld [vmem:[#allocation2 + $0x5e] sm:$0xff]
      %v5987 = vld [vmem:[#allocation2 + $0x66] sm:$0xff]
      %v5988 = vld [vmem:[#allocation2 + $0x6e] sm:$0xff]
      %v5989 = vld [vmem:[#allocation2 + $0x76] sm:$0xff]
      %v5990 = vld [vmem:[#allocation2 + $0x7e] sm:$0xff]
      %v5991 = vld [vmem:[#allocation2 + $0x86] sm:$0xff]
      %v5992 = vld [vmem:[#allocation2 + $0x8e] sm:$0xff]
      %v5993 = vld [vmem:[#allocation2 + $0x96] sm:$0xff]
      %v5994 = vld [vmem:[#allocation2 + $0x9e] sm:$0xff]
      %v5995 = vld [vmem:[#allocation2 + $0xa6] sm:$0xff]
      %v5996 = vld [vmem:[#allocation2 + $0xae] sm:$0xff]
      %v5997 = vld [vmem:[#allocation2 + $0xb6] sm:$0xff]
      %v5998 = vld [vmem:[#allocation2 + $0xbe] sm:$0xff]
      %v5999 = vld [vmem:[#allocation2 + $0xc6] sm:$0xff]
      %v6000 = vld [vmem:[#allocation2 + $0xce] sm:$0xff]
      %v6001 = vld [vmem:[#allocation2 + $0xd6] sm:$0xff]
      %v6002 = vld [vmem:[#allocation2 + $0xde] sm:$0xff]
      %v6003 = vld [vmem:[#allocation2 + $0xe6] sm:$0xff]
      %v6004 = vld [vmem:[#allocation2 + $0xee] sm:$0xff]
      %v6005 = vld [vmem:[#allocation2 + $0xf6] sm:$0xff]
      %v6006 = vld [vmem:[#allocation2 + $0xfe] sm:$0xff]
      %v6007 = vld [vmem:[#allocation2 + $0x106] sm:$0xff]
      %v6008 = vld [vmem:[#allocation2 + $0x10e] sm:$0xff]
      %v6009 = vld [vmem:[#allocation2 + $0x116] sm:$0xff]
      %v6010 = vld [vmem:[#allocation2 + $0x11e] sm:$0xff]
      %v6011 = vld [vmem:[#allocation2 + $0x126] sm:$0xff]
      %v6012 = vld [vmem:[#allocation2 + $0x12e] sm:$0xff]
      %v6013 = vld [vmem:[#allocation2 + $0x136] sm:$0xff]
      %v6014 = vld [vmem:[#allocation2 + $0x13e] sm:$0xff]
      %s6015 = scalar_lea.vmem %s3, 64
      %v6016 = vld [vmem:[%s6015] sm:$0xff]
      %v6018 = vsel %vm3169, %v5979, 0
      %v6021 = vsel %vm3169, %v5980, 0
      %v6024 = vsel %vm3169, %v5981, 0
      %v6027 = vsel %vm3169, %v5982, 0
      %v6030 = vsel %vm3169, %v5983, 0
      %v6033 = vsel %vm3169, %v5984, 0
      %v6036 = vsel %vm3169, %v5985, 0
      %v6039 = vsel %vm3169, %v5986, 0
      %v6042 = vsel %vm3169, %v5987, 0
      %v6045 = vsel %vm3169, %v5988, 0
      %v6048 = vsel %vm3169, %v5989, 0
      %v6051 = vsel %vm3169, %v5990, 0
      %v6054 = vsel %vm3169, %v5991, 0
      %v6057 = vsel %vm3169, %v5992, 0
      %v6060 = vsel %vm3169, %v5993, 0
      %v6063 = vsel %vm3169, %v5994, 0
      %v6066 = vsel %vm3169, %v5995, 0
      %v6069 = vsel %vm3169, %v5996, 0
      %v6072 = vsel %vm3169, %v5997, 0
      %v6075 = vsel %vm3169, %v5998, 0
      %v6078 = vsel %vm3169, %v5999, 0
      %v6081 = vsel %vm3169, %v6000, 0
      %v6084 = vsel %vm3169, %v6001, 0
      %v6087 = vsel %vm3169, %v6002, 0
      %v6090 = vsel %vm3169, %v6003, 0
      %v6093 = vsel %vm3169, %v6004, 0
      %v6096 = vsel %vm3169, %v6005, 0
      %v6099 = vsel %vm3169, %v6006, 0
      %v6102 = vsel %vm3169, %v6007, 0
      %v6105 = vsel %vm3169, %v6008, 0
      %v6108 = vsel %vm3169, %v6009, 0
      %v6111 = vsel %vm3169, %v6010, 0
      %v6114 = vsel %vm3169, %v6011, 0
      %v6117 = vsel %vm3169, %v6012, 0
      %v6120 = vsel %vm3169, %v6013, 0
      %v6123 = vsel %vm3169, %v6014, 0
      %6125 = vmatpush.msra.mxu0 0.0
      %6126 = vmatpush.msra.mxu0 0.0
      %6127 = vmatpush.msra.mxu0 0.0
      %6128 = vmatpush.msra.mxu0 0.0
      %6129 = vmatpush.msra.mxu0 0.0
      %6130 = vmatpush.msra.mxu0 0.0
      %6131 = vmatpush.msra.mxu0 0.0
      %6132 = vmatpush.msra.mxu0 0.0
      %6133 = vmatpush.msra.mxu0 0.0
      %6134 = vmatpush.msra.mxu0 0.0
      %6135 = vmatpush.msra.mxu0 0.0
      %6136 = vmatpush.msra.mxu0 0.0
      %6137 = vmatpush.msra.mxu0 0.0
      %6138 = vmatpush.msra.mxu0 0.0
      %6139 = vmatpush.msra.mxu0 0.0
      %6140 = vmatpush.msra.mxu0 %v6016
      %6141 = vmatmul.f32.gmra.mxu0 %v6018
      %v6142 = vpop.f32.mrf.mxu0
      %v6143 = vadd.f32 0.0, %v6142
      %6144 = vmatmul.f32.gmra.mxu0 %v6021
      %v6145 = vpop.f32.mrf.mxu0
      %v6146 = vadd.f32 0.0, %v6145
      %6147 = vmatmul.f32.gmra.mxu0 %v6024
      %v6148 = vpop.f32.mrf.mxu0
      %v6149 = vadd.f32 0.0, %v6148
      %6150 = vmatmul.f32.gmra.mxu0 %v6027
      %v6151 = vpop.f32.mrf.mxu0
      %v6152 = vadd.f32 0.0, %v6151
      %6153 = vmatmul.f32.gmra.mxu0 %v6030
      %v6154 = vpop.f32.mrf.mxu0
      %v6155 = vadd.f32 0.0, %v6154
      %6156 = vmatmul.f32.gmra.mxu0 %v6033
      %v6157 = vpop.f32.mrf.mxu0
      %v6158 = vadd.f32 0.0, %v6157
      %6159 = vmatmul.f32.gmra.mxu0 %v6036
      %v6160 = vpop.f32.mrf.mxu0
      %v6161 = vadd.f32 0.0, %v6160
      %6162 = vmatmul.f32.gmra.mxu0 %v6039
      %v6163 = vpop.f32.mrf.mxu0
      %v6164 = vadd.f32 0.0, %v6163
      %6165 = vmatmul.f32.gmra.mxu0 %v6042
      %v6166 = vpop.f32.mrf.mxu0
      %v6167 = vadd.f32 0.0, %v6166
      %6168 = vmatmul.f32.gmra.mxu0 %v6045
      %v6169 = vpop.f32.mrf.mxu0
      %v6170 = vadd.f32 0.0, %v6169
      %6171 = vmatmul.f32.gmra.mxu0 %v6048
      %v6172 = vpop.f32.mrf.mxu0
      %v6173 = vadd.f32 0.0, %v6172
      %6174 = vmatmul.f32.gmra.mxu0 %v6051
      %v6175 = vpop.f32.mrf.mxu0
      %v6176 = vadd.f32 0.0, %v6175
      %6177 = vmatmul.f32.gmra.mxu0 %v6054
      %v6178 = vpop.f32.mrf.mxu0
      %v6179 = vadd.f32 0.0, %v6178
      %6180 = vmatmul.f32.gmra.mxu0 %v6057
      %v6181 = vpop.f32.mrf.mxu0
      %v6182 = vadd.f32 0.0, %v6181
      %6183 = vmatmul.f32.gmra.mxu0 %v6060
      %v6184 = vpop.f32.mrf.mxu0
      %v6185 = vadd.f32 0.0, %v6184
      %6186 = vmatmul.f32.gmra.mxu0 %v6063
      %v6187 = vpop.f32.mrf.mxu0
      %v6188 = vadd.f32 0.0, %v6187
      %6189 = vmatmul.f32.gmra.mxu0 %v6066
      %v6190 = vpop.f32.mrf.mxu0
      %v6191 = vadd.f32 0.0, %v6190
      %6192 = vmatmul.f32.gmra.mxu0 %v6069
      %v6193 = vpop.f32.mrf.mxu0
      %v6194 = vadd.f32 0.0, %v6193
      %6195 = vmatmul.f32.gmra.mxu0 %v6072
      %v6196 = vpop.f32.mrf.mxu0
      %v6197 = vadd.f32 0.0, %v6196
      %6198 = vmatmul.f32.gmra.mxu0 %v6075
      %v6199 = vpop.f32.mrf.mxu0
      %v6200 = vadd.f32 0.0, %v6199
      %6201 = vmatmul.f32.gmra.mxu0 %v6078
      %v6202 = vpop.f32.mrf.mxu0
      %v6203 = vadd.f32 0.0, %v6202
      %6204 = vmatmul.f32.gmra.mxu0 %v6081
      %v6205 = vpop.f32.mrf.mxu0
      %v6206 = vadd.f32 0.0, %v6205
      %6207 = vmatmul.f32.gmra.mxu0 %v6084
      %v6208 = vpop.f32.mrf.mxu0
      %v6209 = vadd.f32 0.0, %v6208
      %6210 = vmatmul.f32.gmra.mxu0 %v6087
      %v6211 = vpop.f32.mrf.mxu0
      %v6212 = vadd.f32 0.0, %v6211
      %6213 = vmatmul.f32.gmra.mxu0 %v6090
      %v6214 = vpop.f32.mrf.mxu0
      %v6215 = vadd.f32 0.0, %v6214
      %6216 = vmatmul.f32.gmra.mxu0 %v6093
      %v6217 = vpop.f32.mrf.mxu0
      %v6218 = vadd.f32 0.0, %v6217
      %6219 = vmatmul.f32.gmra.mxu0 %v6096
      %v6220 = vpop.f32.mrf.mxu0
      %v6221 = vadd.f32 0.0, %v6220
      %6222 = vmatmul.f32.gmra.mxu0 %v6099
      %v6223 = vpop.f32.mrf.mxu0
      %v6224 = vadd.f32 0.0, %v6223
      %6225 = vmatmul.f32.gmra.mxu0 %v6102
      %v6226 = vpop.f32.mrf.mxu0
      %v6227 = vadd.f32 0.0, %v6226
      %6228 = vmatmul.f32.gmra.mxu0 %v6105
      %v6229 = vpop.f32.mrf.mxu0
      %v6230 = vadd.f32 0.0, %v6229
      %6231 = vmatmul.f32.gmra.mxu0 %v6108
      %v6232 = vpop.f32.mrf.mxu0
      %v6233 = vadd.f32 0.0, %v6232
      %6234 = vmatmul.f32.gmra.mxu0 %v6111
      %v6235 = vpop.f32.mrf.mxu0
      %v6236 = vadd.f32 0.0, %v6235
      %6237 = vmatmul.f32.gmra.mxu0 %v6114
      %v6238 = vpop.f32.mrf.mxu0
      %v6239 = vadd.f32 0.0, %v6238
      %6240 = vmatmul.f32.gmra.mxu0 %v6117
      %v6241 = vpop.f32.mrf.mxu0
      %v6242 = vadd.f32 0.0, %v6241
      %6243 = vmatmul.f32.gmra.mxu0 %v6120
      %v6244 = vpop.f32.mrf.mxu0
      %v6245 = vadd.f32 0.0, %v6244
      %6246 = vmatmul.f32.gmra.mxu0 %v6123
      %v6247 = vpop.f32.mrf.mxu0
      %v6248 = vadd.f32 0.0, %v6247
      %6249 = vdwg.mxu0
      %v6250 = vadd.f32 %v5943, %v6143
      %v6251 = vadd.f32 %v5944, %v6146
      %v6252 = vadd.f32 %v5945, %v6149
      %v6253 = vadd.f32 %v5946, %v6152
      %v6254 = vadd.f32 %v5947, %v6155
      %v6255 = vadd.f32 %v5948, %v6158
      %v6256 = vadd.f32 %v5949, %v6161
      %v6257 = vadd.f32 %v5950, %v6164
      %v6258 = vadd.f32 %v5951, %v6167
      %v6259 = vadd.f32 %v5952, %v6170
      %v6260 = vadd.f32 %v5953, %v6173
      %v6261 = vadd.f32 %v5954, %v6176
      %v6262 = vadd.f32 %v5955, %v6179
      %v6263 = vadd.f32 %v5956, %v6182
      %v6264 = vadd.f32 %v5957, %v6185
      %v6265 = vadd.f32 %v5958, %v6188
      %v6266 = vadd.f32 %v5959, %v6191
      %v6267 = vadd.f32 %v5960, %v6194
      %v6268 = vadd.f32 %v5961, %v6197
      %v6269 = vadd.f32 %v5962, %v6200
      %v6270 = vadd.f32 %v5963, %v6203
      %v6271 = vadd.f32 %v5964, %v6206
      %v6272 = vadd.f32 %v5965, %v6209
      %v6273 = vadd.f32 %v5966, %v6212
      %v6274 = vadd.f32 %v5967, %v6215
      %v6275 = vadd.f32 %v5968, %v6218
      %v6276 = vadd.f32 %v5969, %v6221
      %v6277 = vadd.f32 %v5970, %v6224
      %v6278 = vadd.f32 %v5971, %v6227
      %v6279 = vadd.f32 %v5972, %v6230
      %v6280 = vadd.f32 %v5973, %v6233
      %v6281 = vadd.f32 %v5974, %v6236
      %v6282 = vadd.f32 %v5975, %v6239
      %v6283 = vadd.f32 %v5976, %v6242
      %v6284 = vadd.f32 %v5977, %v6245
      %v6285 = vadd.f32 %v5978, %v6248
      %v6286 = vmul.f32 %v6250, %v2956
      %v6287 = vmul.f32 %v6251, %v2961
      %v6288 = vmul.f32 %v6252, %v2966
      %v6289 = vmul.f32 %v6253, %v2971
      %v6290 = vmul.f32 %v6254, %v2976
      %v6291 = vmul.f32 %v6255, %v2981
      %v6292 = vmul.f32 %v6256, %v2986
      %v6293 = vmul.f32 %v6257, %v2991
      %v6294 = vmul.f32 %v6258, %v2996
      %v6295 = vmul.f32 %v6259, %v3001
      %v6296 = vmul.f32 %v6260, %v3006
      %v6297 = vmul.f32 %v6261, %v3011
      %v6298 = vmul.f32 %v6262, %v3016
      %v6299 = vmul.f32 %v6263, %v3021
      %v6300 = vmul.f32 %v6264, %v3026
      %v6301 = vmul.f32 %v6265, %v3031
      %v6302 = vmul.f32 %v6266, %v3036
      %v6303 = vmul.f32 %v6267, %v3041
      %v6304 = vmul.f32 %v6268, %v3046
      %v6305 = vmul.f32 %v6269, %v3051
      %v6306 = vmul.f32 %v6270, %v3056
      %v6307 = vmul.f32 %v6271, %v3061
      %v6308 = vmul.f32 %v6272, %v3066
      %v6309 = vmul.f32 %v6273, %v3071
      %v6310 = vmul.f32 %v6274, %v3076
      %v6311 = vmul.f32 %v6275, %v3081
      %v6312 = vmul.f32 %v6276, %v3086
      %v6313 = vmul.f32 %v6277, %v3091
      %v6314 = vmul.f32 %v6278, %v3096
      %v6315 = vmul.f32 %v6279, %v3101
      %v6316 = vmul.f32 %v6280, %v3106
      %v6317 = vmul.f32 %v6281, %v3111
      %v6318 = vmul.f32 %v6282, %v3116
      %v6319 = vmul.f32 %v6283, %v3121
      %v6320 = vmul.f32 %v6284, %v3126
      %v6321 = vmul.f32 %v6285, %v3131
      %v6322 = vsel %vm3169, %v6286, 0.0
      %v6323 = vsel %vm3169, %v6287, 0.0
      %v6324 = vadd.f32 %v6322, %v6323
      %v6325 = vsel %vm3169, %v6288, 0.0
      %v6326 = vadd.f32 %v6324, %v6325
      %v6327 = vsel %vm3169, %v6289, 0.0
      %v6328 = vadd.f32 %v6326, %v6327
      %v6329 = vsel %vm3169, %v6290, 0.0
      %v6330 = vadd.f32 %v6328, %v6329
      %v6331 = vsel %vm3169, %v6291, 0.0
      %v6332 = vadd.f32 %v6330, %v6331
      %v6333 = vsel %vm3169, %v6292, 0.0
      %v6334 = vadd.f32 %v6332, %v6333
      %v6335 = vsel %vm3169, %v6293, 0.0
      %v6336 = vadd.f32 %v6334, %v6335
      %v6337 = vsel %vm3169, %v6294, 0.0
      %v6338 = vadd.f32 %v6336, %v6337
      %v6339 = vsel %vm3169, %v6295, 0.0
      %v6340 = vadd.f32 %v6338, %v6339
      %v6341 = vsel %vm3169, %v6296, 0.0
      %v6342 = vadd.f32 %v6340, %v6341
      %v6343 = vsel %vm3169, %v6297, 0.0
      %v6344 = vadd.f32 %v6342, %v6343
      %v6345 = vsel %vm3169, %v6298, 0.0
      %v6346 = vadd.f32 %v6344, %v6345
      %v6347 = vsel %vm3169, %v6299, 0.0
      %v6348 = vadd.f32 %v6346, %v6347
      %v6349 = vsel %vm3169, %v6300, 0.0
      %v6350 = vadd.f32 %v6348, %v6349
      %v6351 = vsel %vm3169, %v6301, 0.0
      %v6352 = vadd.f32 %v6350, %v6351
      %v6353 = vsel %vm3169, %v6302, 0.0
      %v6354 = vadd.f32 %v6352, %v6353
      %v6355 = vsel %vm3169, %v6303, 0.0
      %v6356 = vadd.f32 %v6354, %v6355
      %v6357 = vsel %vm3169, %v6304, 0.0
      %v6358 = vadd.f32 %v6356, %v6357
      %v6359 = vsel %vm3169, %v6305, 0.0
      %v6360 = vadd.f32 %v6358, %v6359
      %v6361 = vsel %vm3169, %v6306, 0.0
      %v6362 = vadd.f32 %v6360, %v6361
      %v6363 = vsel %vm3169, %v6307, 0.0
      %v6364 = vadd.f32 %v6362, %v6363
      %v6365 = vsel %vm3169, %v6308, 0.0
      %v6366 = vadd.f32 %v6364, %v6365
      %v6367 = vsel %vm3169, %v6309, 0.0
      %v6368 = vadd.f32 %v6366, %v6367
      %v6369 = vsel %vm3169, %v6310, 0.0
      %v6370 = vadd.f32 %v6368, %v6369
      %v6371 = vsel %vm3169, %v6311, 0.0
      %v6372 = vadd.f32 %v6370, %v6371
      %v6373 = vsel %vm3169, %v6312, 0.0
      %v6374 = vadd.f32 %v6372, %v6373
      %v6375 = vsel %vm3169, %v6313, 0.0
      %v6376 = vadd.f32 %v6374, %v6375
      %v6377 = vsel %vm3169, %v6314, 0.0
      %v6378 = vadd.f32 %v6376, %v6377
      %v6379 = vsel %vm3169, %v6315, 0.0
      %v6380 = vadd.f32 %v6378, %v6379
      %v6381 = vsel %vm3169, %v6316, 0.0
      %v6382 = vadd.f32 %v6380, %v6381
      %v6383 = vsel %vm3169, %v6317, 0.0
      %v6384 = vadd.f32 %v6382, %v6383
      %v6385 = vsel %vm3169, %v6318, 0.0
      %v6386 = vadd.f32 %v6384, %v6385
      %v6387 = vsel %vm3169, %v6319, 0.0
      %v6388 = vadd.f32 %v6386, %v6387
      %v6389 = vsel %vm3169, %v6320, 0.0
      %v6390 = vadd.f32 %v6388, %v6389
      %v6391 = vsel %vm3169, %v6321, 0.0
      %v6392 = vadd.f32 %v6390, %v6391
      %v6393 = vrot.slane %v6392, 4
      %v6394 = vadd.f32 %v6392, %v6393
      %v6395 = vrot.slane %v6394, 2
      %v6396 = vadd.f32 %v6394, %v6395
      %v6397 = vrot.slane %v6396, 1
      %v6398 = vadd.f32 %v6396, %v6397
      %v6399 = vmul.f32 %v6398, 0.00390625
      %v6400 = vmul.f32 %v6286, %v6286
      %v6401 = vmul.f32 %v6287, %v6287
      %v6402 = vmul.f32 %v6288, %v6288
      %v6403 = vmul.f32 %v6289, %v6289
      %v6404 = vmul.f32 %v6290, %v6290
      %v6405 = vmul.f32 %v6291, %v6291
      %v6406 = vmul.f32 %v6292, %v6292
      %v6407 = vmul.f32 %v6293, %v6293
      %v6408 = vmul.f32 %v6294, %v6294
      %v6409 = vmul.f32 %v6295, %v6295
      %v6410 = vmul.f32 %v6296, %v6296
      %v6411 = vmul.f32 %v6297, %v6297
      %v6412 = vmul.f32 %v6298, %v6298
      %v6413 = vmul.f32 %v6299, %v6299
      %v6414 = vmul.f32 %v6300, %v6300
      %v6415 = vmul.f32 %v6301, %v6301
      %v6416 = vmul.f32 %v6302, %v6302
      %v6417 = vmul.f32 %v6303, %v6303
      %v6418 = vmul.f32 %v6304, %v6304
      %v6419 = vmul.f32 %v6305, %v6305
      %v6420 = vmul.f32 %v6306, %v6306
      %v6421 = vmul.f32 %v6307, %v6307
      %v6422 = vmul.f32 %v6308, %v6308
      %v6423 = vmul.f32 %v6309, %v6309
      %v6424 = vmul.f32 %v6310, %v6310
      %v6425 = vmul.f32 %v6311, %v6311
      %v6426 = vmul.f32 %v6312, %v6312
      %v6427 = vmul.f32 %v6313, %v6313
      %v6428 = vmul.f32 %v6314, %v6314
      %v6429 = vmul.f32 %v6315, %v6315
      %v6430 = vmul.f32 %v6316, %v6316
      %v6431 = vmul.f32 %v6317, %v6317
      %v6432 = vmul.f32 %v6318, %v6318
      %v6433 = vmul.f32 %v6319, %v6319
      %v6434 = vmul.f32 %v6320, %v6320
      %v6435 = vmul.f32 %v6321, %v6321
      %v6436 = vsel %vm3169, %v6400, 0.0
      %v6437 = vsel %vm3169, %v6401, 0.0
      %v6438 = vadd.f32 %v6436, %v6437
      %v6439 = vsel %vm3169, %v6402, 0.0
      %v6440 = vadd.f32 %v6438, %v6439
      %v6441 = vsel %vm3169, %v6403, 0.0
      %v6442 = vadd.f32 %v6440, %v6441
      %v6443 = vsel %vm3169, %v6404, 0.0
      %v6444 = vadd.f32 %v6442, %v6443
      %v6445 = vsel %vm3169, %v6405, 0.0
      %v6446 = vadd.f32 %v6444, %v6445
      %v6447 = vsel %vm3169, %v6406, 0.0
      %v6448 = vadd.f32 %v6446, %v6447
      %v6449 = vsel %vm3169, %v6407, 0.0
      %v6450 = vadd.f32 %v6448, %v6449
      %v6451 = vsel %vm3169, %v6408, 0.0
      %v6452 = vadd.f32 %v6450, %v6451
      %v6453 = vsel %vm3169, %v6409, 0.0
      %v6454 = vadd.f32 %v6452, %v6453
      %v6455 = vsel %vm3169, %v6410, 0.0
      %v6456 = vadd.f32 %v6454, %v6455
      %v6457 = vsel %vm3169, %v6411, 0.0
      %v6458 = vadd.f32 %v6456, %v6457
      %v6459 = vsel %vm3169, %v6412, 0.0
      %v6460 = vadd.f32 %v6458, %v6459
      %v6461 = vsel %vm3169, %v6413, 0.0
      %v6462 = vadd.f32 %v6460, %v6461
      %v6463 = vsel %vm3169, %v6414, 0.0
      %v6464 = vadd.f32 %v6462, %v6463
      %v6465 = vsel %vm3169, %v6415, 0.0
      %v6466 = vadd.f32 %v6464, %v6465
      %v6467 = vsel %vm3169, %v6416, 0.0
      %v6468 = vadd.f32 %v6466, %v6467
      %v6469 = vsel %vm3169, %v6417, 0.0
      %v6470 = vadd.f32 %v6468, %v6469
      %v6471 = vsel %vm3169, %v6418, 0.0
      %v6472 = vadd.f32 %v6470, %v6471
      %v6473 = vsel %vm3169, %v6419, 0.0
      %v6474 = vadd.f32 %v6472, %v6473
      %v6475 = vsel %vm3169, %v6420, 0.0
      %v6476 = vadd.f32 %v6474, %v6475
      %v6477 = vsel %vm3169, %v6421, 0.0
      %v6478 = vadd.f32 %v6476, %v6477
      %v6479 = vsel %vm3169, %v6422, 0.0
      %v6480 = vadd.f32 %v6478, %v6479
      %v6481 = vsel %vm3169, %v6423, 0.0
      %v6482 = vadd.f32 %v6480, %v6481
      %v6483 = vsel %vm3169, %v6424, 0.0
      %v6484 = vadd.f32 %v6482, %v6483
      %v6485 = vsel %vm3169, %v6425, 0.0
      %v6486 = vadd.f32 %v6484, %v6485
      %v6487 = vsel %vm3169, %v6426, 0.0
      %v6488 = vadd.f32 %v6486, %v6487
      %v6489 = vsel %vm3169, %v6427, 0.0
      %v6490 = vadd.f32 %v6488, %v6489
      %v6491 = vsel %vm3169, %v6428, 0.0
      %v6492 = vadd.f32 %v6490, %v6491
      %v6493 = vsel %vm3169, %v6429, 0.0
      %v6494 = vadd.f32 %v6492, %v6493
      %v6495 = vsel %vm3169, %v6430, 0.0
      %v6496 = vadd.f32 %v6494, %v6495
      %v6497 = vsel %vm3169, %v6431, 0.0
      %v6498 = vadd.f32 %v6496, %v6497
      %v6499 = vsel %vm3169, %v6432, 0.0
      %v6500 = vadd.f32 %v6498, %v6499
      %v6501 = vsel %vm3169, %v6433, 0.0
      %v6502 = vadd.f32 %v6500, %v6501
      %v6503 = vsel %vm3169, %v6434, 0.0
      %v6504 = vadd.f32 %v6502, %v6503
      %v6505 = vsel %vm3169, %v6435, 0.0
      %v6506 = vadd.f32 %v6504, %v6505
      %v6507 = vrot.slane %v6506, 4
      %v6508 = vadd.f32 %v6506, %v6507
      %v6509 = vrot.slane %v6508, 2
      %v6510 = vadd.f32 %v6508, %v6509
      %v6511 = vrot.slane %v6510, 1
      %v6512 = vadd.f32 %v6510, %v6511
      %v6513 = vmul.f32 %v6512, 0.00390625
      %v6514 = vmul.f32 %v6399, %v6399
      %v6515 = vsub.f32 %v6513, %v6514
      %v6516 = vadd.f32 %v6515, 1e-05
      %v6517 = vrsqrt.pop %v6516
      %v6518 = vmul.f32 %v6517, %v6516
      %v6519 = vmul.f32 %v6518, %v6517
      %v6520 = vmul.f32 0.5, %v6519
      %v6521 = vsub.f32 1.5, %v6520
      %v6522 = vmul.f32 %v6517, %v6521
      %vm6523 = vweird.f32 %v6516
      %vm6524 = vweird.f32 %v6517
      %vm6525 = vmor %vm6523, %vm6524
      %v6526 = vsel %vm6525, %v6517, %v6522
      %v6527 = vsub.f32 %v6286, %v6399
      %v6528 = vsub.f32 %v6287, %v6399
      %v6529 = vsub.f32 %v6288, %v6399
      %v6530 = vsub.f32 %v6289, %v6399
      %v6531 = vsub.f32 %v6290, %v6399
      %v6532 = vsub.f32 %v6291, %v6399
      %v6533 = vsub.f32 %v6292, %v6399
      %v6534 = vsub.f32 %v6293, %v6399
      %v6535 = vsub.f32 %v6294, %v6399
      %v6536 = vsub.f32 %v6295, %v6399
      %v6537 = vsub.f32 %v6296, %v6399
      %v6538 = vsub.f32 %v6297, %v6399
      %v6539 = vsub.f32 %v6298, %v6399
      %v6540 = vsub.f32 %v6299, %v6399
      %v6541 = vsub.f32 %v6300, %v6399
      %v6542 = vsub.f32 %v6301, %v6399
      %v6543 = vsub.f32 %v6302, %v6399
      %v6544 = vsub.f32 %v6303, %v6399
      %v6545 = vsub.f32 %v6304, %v6399
      %v6546 = vsub.f32 %v6305, %v6399
      %v6547 = vsub.f32 %v6306, %v6399
      %v6548 = vsub.f32 %v6307, %v6399
      %v6549 = vsub.f32 %v6308, %v6399
      %v6550 = vsub.f32 %v6309, %v6399
      %v6551 = vsub.f32 %v6310, %v6399
      %v6552 = vsub.f32 %v6311, %v6399
      %v6553 = vsub.f32 %v6312, %v6399
      %v6554 = vsub.f32 %v6313, %v6399
      %v6555 = vsub.f32 %v6314, %v6399
      %v6556 = vsub.f32 %v6315, %v6399
      %v6557 = vsub.f32 %v6316, %v6399
      %v6558 = vsub.f32 %v6317, %v6399
      %v6559 = vsub.f32 %v6318, %v6399
      %v6560 = vsub.f32 %v6319, %v6399
      %v6561 = vsub.f32 %v6320, %v6399
      %v6562 = vsub.f32 %v6321, %v6399
      %v6563 = vmul.f32 %v6527, %v6526
      %v6564 = vmul.f32 %v6528, %v6526
      %v6565 = vmul.f32 %v6529, %v6526
      %v6566 = vmul.f32 %v6530, %v6526
      %v6567 = vmul.f32 %v6531, %v6526
      %v6568 = vmul.f32 %v6532, %v6526
      %v6569 = vmul.f32 %v6533, %v6526
      %v6570 = vmul.f32 %v6534, %v6526
      %v6571 = vmul.f32 %v6535, %v6526
      %v6572 = vmul.f32 %v6536, %v6526
      %v6573 = vmul.f32 %v6537, %v6526
      %v6574 = vmul.f32 %v6538, %v6526
      %v6575 = vmul.f32 %v6539, %v6526
      %v6576 = vmul.f32 %v6540, %v6526
      %v6577 = vmul.f32 %v6541, %v6526
      %v6578 = vmul.f32 %v6542, %v6526
      %v6579 = vmul.f32 %v6543, %v6526
      %v6580 = vmul.f32 %v6544, %v6526
      %v6581 = vmul.f32 %v6545, %v6526
      %v6582 = vmul.f32 %v6546, %v6526
      %v6583 = vmul.f32 %v6547, %v6526
      %v6584 = vmul.f32 %v6548, %v6526
      %v6585 = vmul.f32 %v6549, %v6526
      %v6586 = vmul.f32 %v6550, %v6526
      %v6587 = vmul.f32 %v6551, %v6526
      %v6588 = vmul.f32 %v6552, %v6526
      %v6589 = vmul.f32 %v6553, %v6526
      %v6590 = vmul.f32 %v6554, %v6526
      %v6591 = vmul.f32 %v6555, %v6526
      %v6592 = vmul.f32 %v6556, %v6526
      %v6593 = vmul.f32 %v6557, %v6526
      %v6594 = vmul.f32 %v6558, %v6526
      %v6595 = vmul.f32 %v6559, %v6526
      %v6596 = vmul.f32 %v6560, %v6526
      %v6597 = vmul.f32 %v6561, %v6526
      %v6598 = vmul.f32 %v6562, %v6526
      %v6599 = vmax.f32 %v6563, 0.0
      %v6600 = vmax.f32 %v6564, 0.0
      %v6601 = vmax.f32 %v6565, 0.0
      %v6602 = vmax.f32 %v6566, 0.0
      %v6603 = vmax.f32 %v6567, 0.0
      %v6604 = vmax.f32 %v6568, 0.0
      %v6605 = vmax.f32 %v6569, 0.0
      %v6606 = vmax.f32 %v6570, 0.0
      %v6607 = vmax.f32 %v6571, 0.0
      %v6608 = vmax.f32 %v6572, 0.0
      %v6609 = vmax.f32 %v6573, 0.0
      %v6610 = vmax.f32 %v6574, 0.0
      %v6611 = vmax.f32 %v6575, 0.0
      %v6612 = vmax.f32 %v6576, 0.0
      %v6613 = vmax.f32 %v6577, 0.0
      %v6614 = vmax.f32 %v6578, 0.0
      %v6615 = vmax.f32 %v6579, 0.0
      %v6616 = vmax.f32 %v6580, 0.0
      %v6617 = vmax.f32 %v6581, 0.0
      %v6618 = vmax.f32 %v6582, 0.0
      %v6619 = vmax.f32 %v6583, 0.0
      %v6620 = vmax.f32 %v6584, 0.0
      %v6621 = vmax.f32 %v6585, 0.0
      %v6622 = vmax.f32 %v6586, 0.0
      %v6623 = vmax.f32 %v6587, 0.0
      %v6624 = vmax.f32 %v6588, 0.0
      %v6625 = vmax.f32 %v6589, 0.0
      %v6626 = vmax.f32 %v6590, 0.0
      %v6627 = vmax.f32 %v6591, 0.0
      %v6628 = vmax.f32 %v6592, 0.0
      %v6629 = vmax.f32 %v6593, 0.0
      %v6630 = vmax.f32 %v6594, 0.0
      %v6631 = vmax.f32 %v6595, 0.0
      %v6632 = vmax.f32 %v6596, 0.0
      %v6633 = vmax.f32 %v6597, 0.0
      %v6634 = vmax.f32 %v6598, 0.0
      %6635 = vst.msk [vmem:[%s197] sm:$0xff] %vm3169, %v6599
      %6636 = vst.msk [vmem:[%s197 + $0x8] sm:$0xff] %vm3169, %v6600
      %6637 = vst.msk [vmem:[%s197 + $0x10] sm:$0xff] %vm3169, %v6601
      %6638 = vst.msk [vmem:[%s197 + $0x18] sm:$0xff] %vm3169, %v6602
      %6639 = vst.msk [vmem:[%s197 + $0x20] sm:$0xff] %vm3169, %v6603
      %6640 = vst.msk [vmem:[%s197 + $0x28] sm:$0xff] %vm3169, %v6604
      %6641 = vst.msk [vmem:[%s197 + $0x30] sm:$0xff] %vm3169, %v6605
      %6642 = vst.msk [vmem:[%s197 + $0x38] sm:$0xff] %vm3169, %v6606
      %6643 = vst.msk [vmem:[%s197 + $0x40] sm:$0xff] %vm3169, %v6607
      %6644 = vst.msk [vmem:[%s197 + $0x48] sm:$0xff] %vm3169, %v6608
      %6645 = vst.msk [vmem:[%s197 + $0x50] sm:$0xff] %vm3169, %v6609
      %6646 = vst.msk [vmem:[%s197 + $0x58] sm:$0xff] %vm3169, %v6610
      %6647 = vst.msk [vmem:[%s197 + $0x60] sm:$0xff] %vm3169, %v6611
      %6648 = vst.msk [vmem:[%s197 + $0x68] sm:$0xff] %vm3169, %v6612
      %6649 = vst.msk [vmem:[%s197 + $0x70] sm:$0xff] %vm3169, %v6613
      %6650 = vst.msk [vmem:[%s197 + $0x78] sm:$0xff] %vm3169, %v6614
      %6651 = vst.msk [vmem:[%s197 + $0x80] sm:$0xff] %vm3169, %v6615
      %6652 = vst.msk [vmem:[%s197 + $0x88] sm:$0xff] %vm3169, %v6616
      %6653 = vst.msk [vmem:[%s197 + $0x90] sm:$0xff] %vm3169, %v6617
      %6654 = vst.msk [vmem:[%s197 + $0x98] sm:$0xff] %vm3169, %v6618
      %6655 = vst.msk [vmem:[%s197 + $0xa0] sm:$0xff] %vm3169, %v6619
      %6656 = vst.msk [vmem:[%s197 + $0xa8] sm:$0xff] %vm3169, %v6620
      %6657 = vst.msk [vmem:[%s197 + $0xb0] sm:$0xff] %vm3169, %v6621
      %6658 = vst.msk [vmem:[%s197 + $0xb8] sm:$0xff] %vm3169, %v6622
      %6659 = vst.msk [vmem:[%s197 + $0xc0] sm:$0xff] %vm3169, %v6623
      %6660 = vst.msk [vmem:[%s197 + $0xc8] sm:$0xff] %vm3169, %v6624
      %6661 = vst.msk [vmem:[%s197 + $0xd0] sm:$0xff] %vm3169, %v6625
      %6662 = vst.msk [vmem:[%s197 + $0xd8] sm:$0xff] %vm3169, %v6626
      %6663 = vst.msk [vmem:[%s197 + $0xe0] sm:$0xff] %vm3169, %v6627
      %6664 = vst.msk [vmem:[%s197 + $0xe8] sm:$0xff] %vm3169, %v6628
      %6665 = vst.msk [vmem:[%s197 + $0xf0] sm:$0xff] %vm3169, %v6629
      %6666 = vst.msk [vmem:[%s197 + $0xf8] sm:$0xff] %vm3169, %v6630
      %6667 = vst.msk [vmem:[%s197 + $0x100] sm:$0xff] %vm3169, %v6631
      %6668 = vst.msk [vmem:[%s197 + $0x108] sm:$0xff] %vm3169, %v6632
      %6669 = vst.msk [vmem:[%s197 + $0x110] sm:$0xff] %vm3169, %v6633
      %6670 = vst.msk [vmem:[%s197 + $0x118] sm:$0xff] %vm3169, %v6634
      %p6671 = scmp.lt.s32.totalorder %s15, 1
      %s6672 = scalar_select %p6671, %s15, 1
      %s6673 = smul.addr %s6672, 36
      %s6674 = smul.addr %s6673, 8
      %s6675 = scalar_lea.vmem %s4, %s6674
      // Predicated region
      $region37: #{conv_block_forward.1} parent=35 // pred_check
        %p6676 = pneg %p122
      $region38: #{conv_block_forward.1} parent=35 // pred_check_branch
        %6678 = sbr.rel (%p6676) target = $region40
      $region39: #{conv_block_forward.1} parent=35 // pred_region
        _
      $region40: #{conv_block_forward.1} parent=35 // pred_fallthru
        _
    $region36: #{conv_block_forward.1} parent=5 // pred_fallthru
      _
    %p6679 = scmp.le.s32.totalorder 2, %s10
    // Predicated region
    $region41: #{conv_block_forward.1} parent=5 // pred_check
      %p6680 = pneg %p6679
    $region42: #{conv_block_forward.1} parent=5 // pred_check_branch
      %6682 = sbr.rel (%p6680) target = $region44
    $region43: #{conv_block_forward.1} parent=5 // pred_region
      %s6683 = ssub.s32 %s10, 2
      // Predicated region
      $region45: #{conv_block_forward.1} parent=43 // pred_check
        %p6684 = pneg %p128
      $region46: #{conv_block_forward.1} parent=43 // pred_check_branch
        %6686 = sbr.rel (%p6684) target = $region48
      $region47: #{conv_block_forward.1} parent=43 // pred_region
        %p6687 = scmp.lt.s32.totalorder %s16, 1
        %s6688 = scalar_select %p6687, %s16, 1
        %s6689 = smul.addr %s6688, 36
        %s6690 = smul.addr %s6689, 8
        %s6691 = scalar_lea.vmem %s4, %s6690
      $region48: #{conv_block_forward.1} parent=43 // pred_fallthru
        _
    $region44: #{conv_block_forward.1} parent=5 // pred_fallthru
      _
  $region6: #{conv_block_forward.1} parent=0 // loop_footer
    %s14 = sadd.s32 1, %s10
  $region7: #{conv_block_forward.1} parent=0 // loop_footer_branch
    %9 = sbr.rel target = $region3
  $region8: #{conv_block_forward.1} parent=0 // loop_exit
    _

</llo_original>
